<compile_context>
chip_gen: v7x
topology: tpu7x:2x2x1
jax: 0.10.0
libtpu: 0.0.40
codegen_flags: <defaults>
</compile_context>

<pallas_src>
import functools
import math

import jax
import jax.numpy as jnp
from jax.experimental import pallas as pl
from jax.experimental.pallas import tpu as pltpu

LN_EPS = 1e-5                       # PyTorch LayerNorm default
_SQRT_2_OVER_PI = math.sqrt(2.0 / math.pi)
LANES = 128                         # width of the packed parameter slab


def _round8(n):
    return ((n + 7) // 8) * 8


# ----------------------------- math helpers -----------------------------
def _gelu(x):
    # tanh-approx GELU: the tanh goes to the EUP (separate VLIW slot).
    return 0.5 * x * (1.0 + jnp.tanh(_SQRT_2_OVER_PI * (x + 0.044715 * x * x * x)))


def _silu(x):
    return x * jax.nn.sigmoid(x)          # logistic -> EUP


def _layernorm(x, gamma, beta):
    mu = jnp.mean(x, axis=-1, keepdims=True)
    xc = x - mu
    var = jnp.mean(xc * xc, axis=-1, keepdims=True)
    return xc * jax.lax.rsqrt(var + LN_EPS) * gamma + beta


# --------------------- packed-parameter slab layout ----------------------
_VEC_KEYS = ("lang_ln1_g", "lang_ln1_b", "lang_ln2_g", "lang_ln2_b",
             "vis_ln1_g", "vis_ln1_b", "vis_ln2_g", "vis_ln2_b",
             "fusnorm_g", "fusnorm_b", "wp_ln_g", "wp_ln_b",
             "c1_ln_g", "c1_ln_b", "c2_ln_g", "c2_ln_b",
             "lang_b", "vis_b", "fus_b", "wp_b", "c1_b", "c2_b", "c3_b")
_MAT_KEYS = ("lang_w", "vis_w", "fus_w", "wp_w", "c1_w", "c2_w", "c3_w")


def _build_layout(params):
    """name -> (row_offset, rows, cols) inside the [total_rows, 128] slab."""
    layout = {}
    off = 0
    for k in _VEC_KEYS:                        # one row per vector
        layout[k] = (off, 1, params[k].shape[-1])
        off += 1
    for k in _MAT_KEYS:                        # weights start on 8-row tiles
        off = _round8(off)
        rows, cols = params[k].shape
        layout[k] = (off, rows, cols)
        off += rows
    return layout, _round8(off)


def _pack_params(params, layout, total_rows):
    slab = jnp.zeros((total_rows, LANES), jnp.float32)
    for k, (off, rows, cols) in layout.items():
        slab = slab.at[off:off + rows, :cols].set(
            params[k].reshape(rows, cols).astype(jnp.float32))
    return slab


# --------------------------- fused forward kernel ------------------------
def two_stream_kernel(lang_ref, vis_ref, p_ref, out_ref, *,
                      layout, num_clips, bp, num_frames, window):
    NC, Bp, NF, W = num_clips, bp, num_frames, window
    NCB = NC * Bp
    H = layout["lang_w"][2]
    O = layout["c3_w"][2]

    def vec(name):                             # [1, cols] static slice
        off, _, cols = layout[name]
        return p_ref[off:off + 1, :cols]

    def mat(name):                             # [rows, cols] static slice
        off, rows, cols = layout[name]
        return p_ref[off:off + rows, :cols]

    def mat_block(name, blk, rows, cols):      # blk-th [rows, cols] block
        off = layout[name][0] + blk * rows
        return p_ref[off:off + rows, :cols]

    # ---- lang_proj_head over ALL clips at once: LN -> Linear -> GELU -> LN
    x = _layernorm(lang_ref[...], vec("lang_ln1_g"), vec("lang_ln1_b"))
    x = jnp.dot(x, mat("lang_w"), preferred_element_type=jnp.float32) + vec("lang_b")
    lang_p = _layernorm(_gelu(x), vec("lang_ln2_g"), vec("lang_ln2_b"))   # [NC*Bp, H]

    # ---- vision_proj_head over ALL clips & frames at once (frame-major rows)
    y = _layernorm(vis_ref[...], vec("vis_ln1_g"), vec("vis_ln1_b"))
    y = jnp.dot(y, mat("vis_w"), preferred_element_type=jnp.float32) + vec("vis_b")
    vis_p = _layernorm(_gelu(y), vec("vis_ln2_g"), vec("vis_ln2_b"))      # [NF*NC*Bp, H]

    # ---- fusion_proj: no lane-axis concat — sum of tile-aligned K=H matmuls
    #      fe = sum_f vis_p[frame f] @ Wf  +  lang_p @ Wlang  +  b
    fe = jnp.dot(lang_p, mat_block("fus_w", NF, H, H),
                 preferred_element_type=jnp.float32) + vec("fus_b")
    for f in range(NF):                        # static unroll, NF MXU passes
        fe = fe + jnp.dot(vis_p[f * NCB:(f + 1) * NCB, :],
                          mat_block("fus_w", f, H, H),
                          preferred_element_type=jnp.float32)
    clips = _silu(_layernorm(fe, vec("fusnorm_g"), vec("fusnorm_b")))     # [NC*Bp, H]
    # Dropout(0.2) after SiLU is identity in eval mode.

    # ---- window_proj: sum over the 2W window clips (Bp-row aligned slabs)
    win = vec("wp_b")
    j = 0
    for c in range(NC):
        if c == W:
            continue
        win = win + jnp.dot(clips[c * Bp:(c + 1) * Bp, :],
                            mat_block("wp_w", j, H, H),
                            preferred_element_type=jnp.float32)
        j += 1
    win = _gelu(_layernorm(win, vec("wp_ln_g"), vec("wp_ln_b")))          # Dropout = id

    target = clips[W * Bp:(W + 1) * Bp, :]                                # aligned plane

    # ---- classifier: cat([target, window]) @ c1_w  ==  two K=H matmuls
    x = (jnp.dot(target, mat_block("c1_w", 0, H, H), preferred_element_type=jnp.float32)
         + jnp.dot(win, mat_block("c1_w", 1, H, H), preferred_element_type=jnp.float32)
         + vec("c1_b"))
    x = _silu(_layernorm(x, vec("c1_ln_g"), vec("c1_ln_b")))              # Dropout = id
    x = jnp.dot(x, mat("c2_w"), preferred_element_type=jnp.float32) + vec("c2_b")
    x = _silu(_layernorm(x, vec("c2_ln_g"), vec("c2_ln_b")))              # Dropout = id

    # ---- final Linear against the FULL 128-lane (zero-padded) weight/bias
    #      rows so both output writes are unmasked full-lane stores.
    c3_off, c3_rows, _ = layout["c3_w"]
    c3b_off = layout["c3_b"][0]
    logits = (jnp.dot(x, p_ref[c3_off:c3_off + c3_rows, :],
                      preferred_element_type=jnp.float32)
              + p_ref[c3b_off:c3b_off + 1, :])                            # [Bp, 128]
    out_ref[0:Bp, :] = logits

    lane = jax.lax.broadcasted_iota(jnp.int32, logits.shape, 1)
    masked = jnp.where(lane < O, logits, -jnp.inf)                        # pad lanes off
    m = jnp.max(masked, axis=-1, keepdims=True)
    e = jnp.exp(masked - m)
    out_ref[Bp:2 * Bp, :] = e / jnp.sum(e, axis=-1, keepdims=True)        # exact softmax


# ------------------------------- wrapper ---------------------------------
@jax.jit
def two_stream_forward(lang_feats, vision_feats, params):
    """Full TwoStream.forward (eval) starting from backbone features.

    lang_feats:   [num_clips, B, Dl]     (BERT pooler_output per clip)
    vision_feats: [num_clips, B, NF, Dv] (ResNet features per frame)
    """
    num_clips, B, Dl = lang_feats.shape
    _, _, NF, Dv = vision_feats.shape
    W = (num_clips - 1) // 2
    O = params["c3_w"].shape[1]
    Bp = _round8(B)                     # pad batch to a sublane-tile multiple

    # Host-side (XLA) layout plumbing: pad batch, flatten to lane-dense 2-D.
    lang_pad = jnp.pad(lang_feats.astype(jnp.float32),
                       ((0, 0), (0, Bp - B), (0, 0)))
    lang_flat = lang_pad.reshape(num_clips * Bp, Dl)            # row = c*Bp + b
    vis_pad = jnp.pad(jnp.transpose(vision_feats.astype(jnp.float32), (2, 0, 1, 3)),
                      ((0, 0), (0, 0), (0, Bp - B), (0, 0)))
    vis_flat = vis_pad.reshape(NF * num_clips * Bp, Dv)         # row = f*NC*Bp + c*Bp + b

    layout, total_rows = _build_layout(params)
    slab = _pack_params(params, layout, total_rows)             # ONE parameter DMA

    kernel = functools.partial(two_stream_kernel, layout=layout,
                               num_clips=num_clips, bp=Bp,
                               num_frames=NF, window=W)

    # Single fused invocation, everything VMEM-resident (3 input DMAs, 1 output
    # DMA); merged lane-dense [2*Bp, 128] output: logits rows then probs rows.
    # TODO(synk): for the real sliding-window workload, add a grid over window
    #             positions with a constant-index weight BlockSpec so the slab
    #             stays VMEM-resident across positions, and mark that axis
    #             "parallel" to use both TensorCores on v7x.
    out = pl.pallas_call(
        kernel,
        out_shape=jax.ShapeDtypeStruct((2 * Bp, LANES), jnp.float32),
        compiler_params=pltpu.CompilerParams(vmem_limit_bytes=16 * 1024 * 1024),
    )(lang_flat, vis_flat, slab)

    logits = out[:B, :O]
    probs = out[Bp:Bp + B, :O]
    return logits, probs


# ----------------------------- parameters -------------------------------
def init_params(key, Dl, Dv, NF, H, W, O):
    ks = jax.random.split(key, 8)

    def lin(k, fan_in, fan_out, std=None, bias_val=0.01):
        if std is None:
            std = math.sqrt(2.0 / fan_out)  # kaiming_normal(fan_out, relu)
        w = std * jax.random.normal(k, (fan_in, fan_out), jnp.float32)
        b = jnp.full((1, fan_out), bias_val, jnp.float32)
        return w, b

    def ln(n):
        return jnp.ones((1, n), jnp.float32), jnp.zeros((1, n), jnp.float32)

    p = {}
    p["lang_ln1_g"], p["lang_ln1_b"] = ln(Dl)
    p["lang_w"], p["lang_b"] = lin(ks[0], Dl, H)
    p["lang_ln2_g"], p["lang_ln2_b"] = ln(H)
    p["vis_ln1_g"], p["vis_ln1_b"] = ln(Dv)
    p["vis_w"], p["vis_b"] = lin(ks[1], Dv, H)
    p["vis_ln2_g"], p["vis_ln2_b"] = ln(H)
    p["fus_w"], p["fus_b"] = lin(ks[2], (NF + 1) * H, H,
                                 std=1.0 / math.sqrt((NF + 1) * H),
                                 bias_val=0.0)
    p["fusnorm_g"], p["fusnorm_b"] = ln(H)
    p["wp_w"], p["wp_b"] = lin(ks[3], 2 * W * H, H)
    p["wp_ln_g"], p["wp_ln_b"] = ln(H)
    p["c1_w"], p["c1_b"] = lin(ks[4], 2 * H, H)
    p["c1_ln_g"], p["c1_ln_b"] = ln(H)
    p["c2_w"], p["c2_b"] = lin(ks[5], H, H // 2)
    p["c2_ln_g"], p["c2_ln_b"] = ln(H // 2)
    p["c3_w"], p["c3_b"] = lin(ks[6], H // 2, O)
    return p


# --------------------------- pure-JAX reference --------------------------
def two_stream_ref(lang_feats, vision_feats, p):
    num_clips, B, _ = lang_feats.shape
    W = (num_clips - 1) // 2

    clip_embs = []
    for i in range(num_clips):
        lang = lang_feats[i]
        lp = _layernorm(_gelu(_layernorm(lang, p["lang_ln1_g"], p["lang_ln1_b"])
                              @ p["lang_w"] + p["lang_b"]),
                        p["lang_ln2_g"], p["lang_ln2_b"])
        vis = vision_feats[i]
        vp = _layernorm(_gelu(_layernorm(vis, p["vis_ln1_g"], p["vis_ln1_b"])
                              @ p["vis_w"] + p["vis_b"]),
                        p["vis_ln2_g"], p["vis_ln2_b"])
        concat = jnp.concatenate([vp, lp[:, None, :]], axis=1).reshape(B, -1)
        fe = concat @ p["fus_w"] + p["fus_b"]
        clip_embs.append(_silu(_layernorm(fe, p["fusnorm_g"], p["fusnorm_b"])))

    target = clip_embs[W]
    window = jnp.concatenate([jnp.stack(clip_embs[:W], axis=1),
                              jnp.stack(clip_embs[W + 1:], axis=1)],
                             axis=1).reshape(B, -1)
    window = _gelu(_layernorm(window @ p["wp_w"] + p["wp_b"],
                              p["wp_ln_g"], p["wp_ln_b"]))
    fusion = jnp.concatenate([target, window], axis=-1)
    x = _silu(_layernorm(fusion @ p["c1_w"] + p["c1_b"], p["c1_ln_g"], p["c1_ln_b"]))
    x = _silu(_layernorm(x @ p["c2_w"] + p["c2_b"], p["c2_ln_g"], p["c2_ln_b"]))
    logits = x @ p["c3_w"] + p["c3_b"]
    probs = jax.nn.softmax(logits, axis=-1)
    return logits, probs


# --------------------------------- main ----------------------------------
if __name__ == "__main__":
    B = 2                 # batch
    W = 2                 # window_size -> num_clips = 2*W + 1
    NF = 4                # segment_size (frames per clip)
    Dl = 32               # lang_embed_size
    Dv = 48               # vision_embed_size
    H = 32                # hidden_size
    O = 2                 # output_size (binary)
    num_clips = 2 * W + 1

    key = jax.random.PRNGKey(0)
    k_lang, k_vis, k_par = jax.random.split(key, 3)
    # Backbone (BERT pooler / ResNet) features, pre-extracted:
    lang_feats = jax.random.normal(k_lang, (num_clips, B, Dl), jnp.float32)
    vision_feats = jax.random.normal(k_vis, (num_clips, B, NF, Dv), jnp.float32)
    params = init_params(k_par, Dl, Dv, NF, H, W, O)

    logits, probs = two_stream_forward(lang_feats, vision_feats, params)
    jax.block_until_ready((logits, probs))

    ref_logits, ref_probs = two_stream_ref(lang_feats, vision_feats, params)
    assert logits.shape == (B, O) and probs.shape == (B, O)
    assert jnp.allclose(logits, ref_logits, atol=5e-2, rtol=5e-2)
    assert jnp.allclose(probs, ref_probs, atol=5e-2, rtol=5e-2)
    print("KERNEL_OK")
</pallas_src>

<mosaic_0001>
module attributes {stable_mosaic.version = 11 : i64} {
  func.func @two_stream_kernel(%arg0: memref<40x32xf32, #tpu.memory_space<vmem>>, %arg1: memref<160x48xf32, #tpu.memory_space<vmem>>, %arg2: memref<504x128xf32, #tpu.memory_space<vmem>>, %arg3: memref<16x128xf32, #tpu.memory_space<vmem>>) attributes {dimension_semantics = [], scalar_prefetch = 0 : i64, scratch_operands = 0 : i64, tpu.core_type = #tpu.core_type<tc>} {
    %c0 = arith.constant 0 : index
    %c0_0 = arith.constant 0 : index
    %0 = vector.load %arg0[%c0, %c0_0] : memref<40x32xf32, #tpu.memory_space<vmem>>, vector<40x32xf32>
    %c0_1 = arith.constant 0 : index
    %c0_2 = arith.constant 0 : index
    %1 = vector.load %arg2[%c0_1, %c0_2] : memref<504x128xf32, #tpu.memory_space<vmem>>, vector<1x32xf32>
    %c1 = arith.constant 1 : index
    %c0_3 = arith.constant 0 : index
    %2 = vector.load %arg2[%c1, %c0_3] : memref<504x128xf32, #tpu.memory_space<vmem>>, vector<1x32xf32>
    %cst = arith.constant dense<0.000000e+00> : vector<40xf32>
    %3 = vector.multi_reduction <add>, %0, %cst [1] : vector<40x32xf32> to vector<40xf32>
    %4 = vector.shape_cast %3 : vector<40xf32> to vector<40x1xf32>
    %cst_4 = arith.constant 3.200000e+01 : f32
    %5 = vector.broadcast %cst_4 : f32 to vector<40x1xf32>
    %6 = arith.divf %4, %5 : vector<40x1xf32>
    %7 = vector.broadcast %6 : vector<40x1xf32> to vector<40x32xf32>
    %8 = arith.subf %0, %7 : vector<40x32xf32>
    %9 = arith.mulf %8, %8 : vector<40x32xf32>
    %cst_5 = arith.constant dense<0.000000e+00> : vector<40xf32>
    %10 = vector.multi_reduction <add>, %9, %cst_5 [1] : vector<40x32xf32> to vector<40xf32>
    %11 = vector.shape_cast %10 : vector<40xf32> to vector<40x1xf32>
    %cst_6 = arith.constant 3.200000e+01 : f32
    %12 = vector.broadcast %cst_6 : f32 to vector<40x1xf32>
    %13 = arith.divf %11, %12 : vector<40x1xf32>
    %cst_7 = arith.constant 9.99999974E-6 : f32
    %14 = vector.broadcast %cst_7 : f32 to vector<40x1xf32>
    %15 = arith.addf %13, %14 : vector<40x1xf32>
    %16 = math.rsqrt %15 : vector<40x1xf32>
    %17 = vector.broadcast %16 : vector<40x1xf32> to vector<40x32xf32>
    %18 = arith.mulf %8, %17 : vector<40x32xf32>
    %19 = vector.broadcast %1 : vector<1x32xf32> to vector<40x32xf32>
    %20 = arith.mulf %18, %19 : vector<40x32xf32>
    %21 = vector.broadcast %2 : vector<1x32xf32> to vector<40x32xf32>
    %22 = arith.addf %20, %21 : vector<40x32xf32>
    %c24 = arith.constant 24 : index
    %c0_8 = arith.constant 0 : index
    %23 = vector.load %arg2[%c24, %c0_8] : memref<504x128xf32, #tpu.memory_space<vmem>>, vector<32x32xf32>
    %cst_9 = arith.constant dense<0.000000e+00> : vector<40x32xf32>
    %24 = tpu.matmul %22, %23, %cst_9 {dimension_numbers = #tpu.dot_dimension_numbers<[1], [0], [0], [1], [0, 0, 1, 1], [], []>} : vector<40x32xf32>, vector<32x32xf32>, vector<40x32xf32> -> vector<40x32xf32>
    %c16 = arith.constant 16 : index
    %c0_10 = arith.constant 0 : index
    %25 = vector.load %arg2[%c16, %c0_10] : memref<504x128xf32, #tpu.memory_space<vmem>>, vector<1x32xf32>
    %26 = vector.broadcast %25 : vector<1x32xf32> to vector<40x32xf32>
    %27 = arith.addf %24, %26 : vector<40x32xf32>
    %cst_11 = arith.constant 5.000000e-01 : f32
    %28 = vector.broadcast %cst_11 : f32 to vector<40x32xf32>
    %29 = arith.mulf %28, %27 : vector<40x32xf32>
    %cst_12 = arith.constant 4.471500e-02 : f32
    %30 = vector.broadcast %cst_12 : f32 to vector<40x32xf32>
    %31 = arith.mulf %30, %27 : vector<40x32xf32>
    %32 = arith.mulf %31, %27 : vector<40x32xf32>
    %33 = arith.mulf %32, %27 : vector<40x32xf32>
    %34 = arith.addf %27, %33 : vector<40x32xf32>
    %cst_13 = arith.constant 0.797884583 : f32
    %35 = vector.broadcast %cst_13 : f32 to vector<40x32xf32>
    %36 = arith.mulf %35, %34 : vector<40x32xf32>
    %37 = math.tanh %36 : vector<40x32xf32>
    %cst_14 = arith.constant 1.000000e+00 : f32
    %38 = vector.broadcast %cst_14 : f32 to vector<40x32xf32>
    %39 = arith.addf %38, %37 : vector<40x32xf32>
    %40 = arith.mulf %29, %39 : vector<40x32xf32>
    %c2 = arith.constant 2 : index
    %c0_15 = arith.constant 0 : index
    %41 = vector.load %arg2[%c2, %c0_15] : memref<504x128xf32, #tpu.memory_space<vmem>>, vector<1x32xf32>
    %c3 = arith.constant 3 : index
    %c0_16 = arith.constant 0 : index
    %42 = vector.load %arg2[%c3, %c0_16] : memref<504x128xf32, #tpu.memory_space<vmem>>, vector<1x32xf32>
    %cst_17 = arith.constant dense<0.000000e+00> : vector<40xf32>
    %43 = vector.multi_reduction <add>, %40, %cst_17 [1] : vector<40x32xf32> to vector<40xf32>
    %44 = vector.shape_cast %43 : vector<40xf32> to vector<40x1xf32>
    %cst_18 = arith.constant 3.200000e+01 : f32
    %45 = vector.broadcast %cst_18 : f32 to vector<40x1xf32>
    %46 = arith.divf %44, %45 : vector<40x1xf32>
    %47 = vector.broadcast %46 : vector<40x1xf32> to vector<40x32xf32>
    %48 = arith.subf %40, %47 : vector<40x32xf32>
    %49 = arith.mulf %48, %48 : vector<40x32xf32>
    %cst_19 = arith.constant dense<0.000000e+00> : vector<40xf32>
    %50 = vector.multi_reduction <add>, %49, %cst_19 [1] : vector<40x32xf32> to vector<40xf32>
    %51 = vector.shape_cast %50 : vector<40xf32> to vector<40x1xf32>
    %cst_20 = arith.constant 3.200000e+01 : f32
    %52 = vector.broadcast %cst_20 : f32 to vector<40x1xf32>
    %53 = arith.divf %51, %52 : vector<40x1xf32>
    %cst_21 = arith.constant 9.99999974E-6 : f32
    %54 = vector.broadcast %cst_21 : f32 to vector<40x1xf32>
    %55 = arith.addf %53, %54 : vector<40x1xf32>
    %56 = math.rsqrt %55 : vector<40x1xf32>
    %57 = vector.broadcast %56 : vector<40x1xf32> to vector<40x32xf32>
    %58 = arith.mulf %48, %57 : vector<40x32xf32>
    %59 = vector.broadcast %41 : vector<1x32xf32> to vector<40x32xf32>
    %60 = arith.mulf %58, %59 : vector<40x32xf32>
    %61 = vector.broadcast %42 : vector<1x32xf32> to vector<40x32xf32>
    %62 = arith.addf %60, %61 : vector<40x32xf32>
    %c0_22 = arith.constant 0 : index
    %c0_23 = arith.constant 0 : index
    %63 = vector.load %arg1[%c0_22, %c0_23] : memref<160x48xf32, #tpu.memory_space<vmem>>, vector<160x48xf32>
    %c4 = arith.constant 4 : index
    %c0_24 = arith.constant 0 : index
    %64 = vector.load %arg2[%c4, %c0_24] : memref<504x128xf32, #tpu.memory_space<vmem>>, vector<1x48xf32>
    %c5 = arith.constant 5 : index
    %c0_25 = arith.constant 0 : index
    %65 = vector.load %arg2[%c5, %c0_25] : memref<504x128xf32, #tpu.memory_space<vmem>>, vector<1x48xf32>
    %cst_26 = arith.constant dense<0.000000e+00> : vector<160xf32>
    %66 = vector.multi_reduction <add>, %63, %cst_26 [1] : vector<160x48xf32> to vector<160xf32>
    %67 = vector.shape_cast %66 : vector<160xf32> to vector<160x1xf32>
    %cst_27 = arith.constant 4.800000e+01 : f32
    %68 = vector.broadcast %cst_27 : f32 to vector<160x1xf32>
    %69 = arith.divf %67, %68 : vector<160x1xf32>
    %70 = vector.broadcast %69 : vector<160x1xf32> to vector<160x48xf32>
    %71 = arith.subf %63, %70 : vector<160x48xf32>
    %72 = arith.mulf %71, %71 : vector<160x48xf32>
    %cst_28 = arith.constant dense<0.000000e+00> : vector<160xf32>
    %73 = vector.multi_reduction <add>, %72, %cst_28 [1] : vector<160x48xf32> to vector<160xf32>
    %74 = vector.shape_cast %73 : vector<160xf32> to vector<160x1xf32>
    %cst_29 = arith.constant 4.800000e+01 : f32
    %75 = vector.broadcast %cst_29 : f32 to vector<160x1xf32>
    %76 = arith.divf %74, %75 : vector<160x1xf32>
    %cst_30 = arith.constant 9.99999974E-6 : f32
    %77 = vector.broadcast %cst_30 : f32 to vector<160x1xf32>
    %78 = arith.addf %76, %77 : vector<160x1xf32>
    %79 = math.rsqrt %78 : vector<160x1xf32>
    %80 = vector.broadcast %79 : vector<160x1xf32> to vector<160x48xf32>
    %81 = arith.mulf %71, %80 : vector<160x48xf32>
    %82 = vector.broadcast %64 : vector<1x48xf32> to vector<160x48xf32>
    %83 = arith.mulf %81, %82 : vector<160x48xf32>
    %84 = vector.broadcast %65 : vector<1x48xf32> to vector<160x48xf32>
    %85 = arith.addf %83, %84 : vector<160x48xf32>
    %c56 = arith.constant 56 : index
    %c0_31 = arith.constant 0 : index
    %86 = vector.load %arg2[%c56, %c0_31] : memref<504x128xf32, #tpu.memory_space<vmem>>, vector<48x32xf32>
    %cst_32 = arith.constant dense<0.000000e+00> : vector<160x32xf32>
    %87 = tpu.matmul %85, %86, %cst_32 {dimension_numbers = #tpu.dot_dimension_numbers<[1], [0], [0], [1], [0, 0, 1, 1], [], []>} : vector<160x48xf32>, vector<48x32xf32>, vector<160x32xf32> -> vector<160x32xf32>
    %c17 = arith.constant 17 : index
    %c0_33 = arith.constant 0 : index
    %88 = vector.load %arg2[%c17, %c0_33] : memref<504x128xf32, #tpu.memory_space<vmem>>, vector<1x32xf32>
    %89 = vector.broadcast %88 : vector<1x32xf32> to vector<160x32xf32>
    %90 = arith.addf %87, %89 : vector<160x32xf32>
    %cst_34 = arith.constant 5.000000e-01 : f32
    %91 = vector.broadcast %cst_34 : f32 to vector<160x32xf32>
    %92 = arith.mulf %91, %90 : vector<160x32xf32>
    %cst_35 = arith.constant 4.471500e-02 : f32
    %93 = vector.broadcast %cst_35 : f32 to vector<160x32xf32>
    %94 = arith.mulf %93, %90 : vector<160x32xf32>
    %95 = arith.mulf %94, %90 : vector<160x32xf32>
    %96 = arith.mulf %95, %90 : vector<160x32xf32>
    %97 = arith.addf %90, %96 : vector<160x32xf32>
    %cst_36 = arith.constant 0.797884583 : f32
    %98 = vector.broadcast %cst_36 : f32 to vector<160x32xf32>
    %99 = arith.mulf %98, %97 : vector<160x32xf32>
    %100 = math.tanh %99 : vector<160x32xf32>
    %cst_37 = arith.constant 1.000000e+00 : f32
    %101 = vector.broadcast %cst_37 : f32 to vector<160x32xf32>
    %102 = arith.addf %101, %100 : vector<160x32xf32>
    %103 = arith.mulf %92, %102 : vector<160x32xf32>
    %c6 = arith.constant 6 : index
    %c0_38 = arith.constant 0 : index
    %104 = vector.load %arg2[%c6, %c0_38] : memref<504x128xf32, #tpu.memory_space<vmem>>, vector<1x32xf32>
    %c7 = arith.constant 7 : index
    %c0_39 = arith.constant 0 : index
    %105 = vector.load %arg2[%c7, %c0_39] : memref<504x128xf32, #tpu.memory_space<vmem>>, vector<1x32xf32>
    %cst_40 = arith.constant dense<0.000000e+00> : vector<160xf32>
    %106 = vector.multi_reduction <add>, %103, %cst_40 [1] : vector<160x32xf32> to vector<160xf32>
    %107 = vector.shape_cast %106 : vector<160xf32> to vector<160x1xf32>
    %cst_41 = arith.constant 3.200000e+01 : f32
    %108 = vector.broadcast %cst_41 : f32 to vector<160x1xf32>
    %109 = arith.divf %107, %108 : vector<160x1xf32>
    %110 = vector.broadcast %109 : vector<160x1xf32> to vector<160x32xf32>
    %111 = arith.subf %103, %110 : vector<160x32xf32>
    %112 = arith.mulf %111, %111 : vector<160x32xf32>
    %cst_42 = arith.constant dense<0.000000e+00> : vector<160xf32>
    %113 = vector.multi_reduction <add>, %112, %cst_42 [1] : vector<160x32xf32> to vector<160xf32>
    %114 = vector.shape_cast %113 : vector<160xf32> to vector<160x1xf32>
    %cst_43 = arith.constant 3.200000e+01 : f32
    %115 = vector.broadcast %cst_43 : f32 to vector<160x1xf32>
    %116 = arith.divf %114, %115 : vector<160x1xf32>
    %cst_44 = arith.constant 9.99999974E-6 : f32
    %117 = vector.broadcast %cst_44 : f32 to vector<160x1xf32>
    %118 = arith.addf %116, %117 : vector<160x1xf32>
    %119 = math.rsqrt %118 : vector<160x1xf32>
    %120 = vector.broadcast %119 : vector<160x1xf32> to vector<160x32xf32>
    %121 = arith.mulf %111, %120 : vector<160x32xf32>
    %122 = vector.broadcast %104 : vector<1x32xf32> to vector<160x32xf32>
    %123 = arith.mulf %121, %122 : vector<160x32xf32>
    %124 = vector.broadcast %105 : vector<1x32xf32> to vector<160x32xf32>
    %125 = arith.addf %123, %124 : vector<160x32xf32>
    %c232 = arith.constant 232 : index
    %c0_45 = arith.constant 0 : index
    %126 = vector.load %arg2[%c232, %c0_45] : memref<504x128xf32, #tpu.memory_space<vmem>>, vector<32x32xf32>
    %cst_46 = arith.constant dense<0.000000e+00> : vector<40x32xf32>
    %127 = tpu.matmul %62, %126, %cst_46 {dimension_numbers = #tpu.dot_dimension_numbers<[1], [0], [0], [1], [0, 0, 1, 1], [], []>} : vector<40x32xf32>, vector<32x32xf32>, vector<40x32xf32> -> vector<40x32xf32>
    %c18 = arith.constant 18 : index
    %c0_47 = arith.constant 0 : index
    %128 = vector.load %arg2[%c18, %c0_47] : memref<504x128xf32, #tpu.memory_space<vmem>>, vector<1x32xf32>
    %129 = vector.broadcast %128 : vector<1x32xf32> to vector<40x32xf32>
    %130 = arith.addf %127, %129 : vector<40x32xf32>
    %131 = vector.extract_strided_slice %125 {offsets = [0, 0], sizes = [40, 32], strides = [1, 1]} : vector<160x32xf32> to vector<40x32xf32>
    %c104 = arith.constant 104 : index
    %c0_48 = arith.constant 0 : index
    %132 = vector.load %arg2[%c104, %c0_48] : memref<504x128xf32, #tpu.memory_space<vmem>>, vector<32x32xf32>
    %cst_49 = arith.constant dense<0.000000e+00> : vector<40x32xf32>
    %133 = tpu.matmul %131, %132, %cst_49 {dimension_numbers = #tpu.dot_dimension_numbers<[1], [0], [0], [1], [0, 0, 1, 1], [], []>} : vector<40x32xf32>, vector<32x32xf32>, vector<40x32xf32> -> vector<40x32xf32>
    %134 = arith.addf %130, %133 : vector<40x32xf32>
    %135 = vector.extract_strided_slice %125 {offsets = [40, 0], sizes = [40, 32], strides = [1, 1]} : vector<160x32xf32> to vector<40x32xf32>
    %c136 = arith.constant 136 : index
    %c0_50 = arith.constant 0 : index
    %136 = vector.load %arg2[%c136, %c0_50] : memref<504x128xf32, #tpu.memory_space<vmem>>, vector<32x32xf32>
    %cst_51 = arith.constant dense<0.000000e+00> : vector<40x32xf32>
    %137 = tpu.matmul %135, %136, %cst_51 {dimension_numbers = #tpu.dot_dimension_numbers<[1], [0], [0], [1], [0, 0, 1, 1], [], []>} : vector<40x32xf32>, vector<32x32xf32>, vector<40x32xf32> -> vector<40x32xf32>
    %138 = arith.addf %134, %137 : vector<40x32xf32>
    %139 = vector.extract_strided_slice %125 {offsets = [80, 0], sizes = [40, 32], strides = [1, 1]} : vector<160x32xf32> to vector<40x32xf32>
    %c168 = arith.constant 168 : index
    %c0_52 = arith.constant 0 : index
    %140 = vector.load %arg2[%c168, %c0_52] : memref<504x128xf32, #tpu.memory_space<vmem>>, vector<32x32xf32>
    %cst_53 = arith.constant dense<0.000000e+00> : vector<40x32xf32>
    %141 = tpu.matmul %139, %140, %cst_53 {dimension_numbers = #tpu.dot_dimension_numbers<[1], [0], [0], [1], [0, 0, 1, 1], [], []>} : vector<40x32xf32>, vector<32x32xf32>, vector<40x32xf32> -> vector<40x32xf32>
    %142 = arith.addf %138, %141 : vector<40x32xf32>
    %143 = vector.extract_strided_slice %125 {offsets = [120, 0], sizes = [40, 32], strides = [1, 1]} : vector<160x32xf32> to vector<40x32xf32>
    %c200 = arith.constant 200 : index
    %c0_54 = arith.constant 0 : index
    %144 = vector.load %arg2[%c200, %c0_54] : memref<504x128xf32, #tpu.memory_space<vmem>>, vector<32x32xf32>
    %cst_55 = arith.constant dense<0.000000e+00> : vector<40x32xf32>
    %145 = tpu.matmul %143, %144, %cst_55 {dimension_numbers = #tpu.dot_dimension_numbers<[1], [0], [0], [1], [0, 0, 1, 1], [], []>} : vector<40x32xf32>, vector<32x32xf32>, vector<40x32xf32> -> vector<40x32xf32>
    %146 = arith.addf %142, %145 : vector<40x32xf32>
    %c8 = arith.constant 8 : index
    %c0_56 = arith.constant 0 : index
    %147 = vector.load %arg2[%c8, %c0_56] : memref<504x128xf32, #tpu.memory_space<vmem>>, vector<1x32xf32>
    %c9 = arith.constant 9 : index
    %c0_57 = arith.constant 0 : index
    %148 = vector.load %arg2[%c9, %c0_57] : memref<504x128xf32, #tpu.memory_space<vmem>>, vector<1x32xf32>
    %cst_58 = arith.constant dense<0.000000e+00> : vector<40xf32>
    %149 = vector.multi_reduction <add>, %146, %cst_58 [1] : vector<40x32xf32> to vector<40xf32>
    %150 = vector.shape_cast %149 : vector<40xf32> to vector<40x1xf32>
    %cst_59 = arith.constant 3.200000e+01 : f32
    %151 = vector.broadcast %cst_59 : f32 to vector<40x1xf32>
    %152 = arith.divf %150, %151 : vector<40x1xf32>
    %153 = vector.broadcast %152 : vector<40x1xf32> to vector<40x32xf32>
    %154 = arith.subf %146, %153 : vector<40x32xf32>
    %155 = arith.mulf %154, %154 : vector<40x32xf32>
    %cst_60 = arith.constant dense<0.000000e+00> : vector<40xf32>
    %156 = vector.multi_reduction <add>, %155, %cst_60 [1] : vector<40x32xf32> to vector<40xf32>
    %157 = vector.shape_cast %156 : vector<40xf32> to vector<40x1xf32>
    %cst_61 = arith.constant 3.200000e+01 : f32
    %158 = vector.broadcast %cst_61 : f32 to vector<40x1xf32>
    %159 = arith.divf %157, %158 : vector<40x1xf32>
    %cst_62 = arith.constant 9.99999974E-6 : f32
    %160 = vector.broadcast %cst_62 : f32 to vector<40x1xf32>
    %161 = arith.addf %159, %160 : vector<40x1xf32>
    %162 = math.rsqrt %161 : vector<40x1xf32>
    %163 = vector.broadcast %162 : vector<40x1xf32> to vector<40x32xf32>
    %164 = arith.mulf %154, %163 : vector<40x32xf32>
    %165 = vector.broadcast %147 : vector<1x32xf32> to vector<40x32xf32>
    %166 = arith.mulf %164, %165 : vector<40x32xf32>
    %167 = vector.broadcast %148 : vector<1x32xf32> to vector<40x32xf32>
    %168 = arith.addf %166, %167 : vector<40x32xf32>
    %169 = arith.negf %168 : vector<40x32xf32>
    %170 = math.exp %169 : vector<40x32xf32>
    %cst_63 = arith.constant 1.000000e+00 : f32
    %171 = vector.broadcast %cst_63 : f32 to vector<40x32xf32>
    %172 = arith.addf %171, %170 : vector<40x32xf32>
    %173 = arith.divf %171, %172 : vector<40x32xf32>
    %174 = arith.mulf %168, %173 : vector<40x32xf32>
    %c19 = arith.constant 19 : index
    %c0_64 = arith.constant 0 : index
    %175 = vector.load %arg2[%c19, %c0_64] : memref<504x128xf32, #tpu.memory_space<vmem>>, vector<1x32xf32>
    %176 = vector.extract_strided_slice %174 {offsets = [0, 0], sizes = [8, 32], strides = [1, 1]} : vector<40x32xf32> to vector<8x32xf32>
    %c264 = arith.constant 264 : index
    %c0_65 = arith.constant 0 : index
    %177 = vector.load %arg2[%c264, %c0_65] : memref<504x128xf32, #tpu.memory_space<vmem>>, vector<32x32xf32>
    %cst_66 = arith.constant dense<0.000000e+00> : vector<8x32xf32>
    %178 = tpu.matmul %176, %177, %cst_66 {dimension_numbers = #tpu.dot_dimension_numbers<[1], [0], [0], [1], [0, 0, 1, 1], [], []>} : vector<8x32xf32>, vector<32x32xf32>, vector<8x32xf32> -> vector<8x32xf32>
    %179 = vector.broadcast %175 : vector<1x32xf32> to vector<8x32xf32>
    %180 = arith.addf %179, %178 : vector<8x32xf32>
    %181 = vector.extract_strided_slice %174 {offsets = [8, 0], sizes = [8, 32], strides = [1, 1]} : vector<40x32xf32> to vector<8x32xf32>
    %c296 = arith.constant 296 : index
    %c0_67 = arith.constant 0 : index
    %182 = vector.load %arg2[%c296, %c0_67] : memref<504x128xf32, #tpu.memory_space<vmem>>, vector<32x32xf32>
    %cst_68 = arith.constant dense<0.000000e+00> : vector<8x32xf32>
    %183 = tpu.matmul %181, %182, %cst_68 {dimension_numbers = #tpu.dot_dimension_numbers<[1], [0], [0], [1], [0, 0, 1, 1], [], []>} : vector<8x32xf32>, vector<32x32xf32>, vector<8x32xf32> -> vector<8x32xf32>
    %184 = arith.addf %180, %183 : vector<8x32xf32>
    %185 = vector.extract_strided_slice %174 {offsets = [24, 0], sizes = [8, 32], strides = [1, 1]} : vector<40x32xf32> to vector<8x32xf32>
    %c328 = arith.constant 328 : index
    %c0_69 = arith.constant 0 : index
    %186 = vector.load %arg2[%c328, %c0_69] : memref<504x128xf32, #tpu.memory_space<vmem>>, vector<32x32xf32>
    %cst_70 = arith.constant dense<0.000000e+00> : vector<8x32xf32>
    %187 = tpu.matmul %185, %186, %cst_70 {dimension_numbers = #tpu.dot_dimension_numbers<[1], [0], [0], [1], [0, 0, 1, 1], [], []>} : vector<8x32xf32>, vector<32x32xf32>, vector<8x32xf32> -> vector<8x32xf32>
    %188 = arith.addf %184, %187 : vector<8x32xf32>
    %189 = vector.extract_strided_slice %174 {offsets = [32, 0], sizes = [8, 32], strides = [1, 1]} : vector<40x32xf32> to vector<8x32xf32>
    %c360 = arith.constant 360 : index
    %c0_71 = arith.constant 0 : index
    %190 = vector.load %arg2[%c360, %c0_71] : memref<504x128xf32, #tpu.memory_space<vmem>>, vector<32x32xf32>
    %cst_72 = arith.constant dense<0.000000e+00> : vector<8x32xf32>
    %191 = tpu.matmul %189, %190, %cst_72 {dimension_numbers = #tpu.dot_dimension_numbers<[1], [0], [0], [1], [0, 0, 1, 1], [], []>} : vector<8x32xf32>, vector<32x32xf32>, vector<8x32xf32> -> vector<8x32xf32>
    %192 = arith.addf %188, %191 : vector<8x32xf32>
    %c10 = arith.constant 10 : index
    %c0_73 = arith.constant 0 : index
    %193 = vector.load %arg2[%c10, %c0_73] : memref<504x128xf32, #tpu.memory_space<vmem>>, vector<1x32xf32>
    %c11 = arith.constant 11 : index
    %c0_74 = arith.constant 0 : index
    %194 = vector.load %arg2[%c11, %c0_74] : memref<504x128xf32, #tpu.memory_space<vmem>>, vector<1x32xf32>
    %cst_75 = arith.constant dense<0.000000e+00> : vector<8xf32>
    %195 = vector.multi_reduction <add>, %192, %cst_75 [1] : vector<8x32xf32> to vector<8xf32>
    %196 = vector.shape_cast %195 : vector<8xf32> to vector<8x1xf32>
    %cst_76 = arith.constant 3.200000e+01 : f32
    %197 = vector.broadcast %cst_76 : f32 to vector<8x1xf32>
    %198 = arith.divf %196, %197 : vector<8x1xf32>
    %199 = vector.broadcast %198 : vector<8x1xf32> to vector<8x32xf32>
    %200 = arith.subf %192, %199 : vector<8x32xf32>
    %201 = arith.mulf %200, %200 : vector<8x32xf32>
    %cst_77 = arith.constant dense<0.000000e+00> : vector<8xf32>
    %202 = vector.multi_reduction <add>, %201, %cst_77 [1] : vector<8x32xf32> to vector<8xf32>
    %203 = vector.shape_cast %202 : vector<8xf32> to vector<8x1xf32>
    %cst_78 = arith.constant 3.200000e+01 : f32
    %204 = vector.broadcast %cst_78 : f32 to vector<8x1xf32>
    %205 = arith.divf %203, %204 : vector<8x1xf32>
    %cst_79 = arith.constant 9.99999974E-6 : f32
    %206 = vector.broadcast %cst_79 : f32 to vector<8x1xf32>
    %207 = arith.addf %205, %206 : vector<8x1xf32>
    %208 = math.rsqrt %207 : vector<8x1xf32>
    %209 = vector.broadcast %208 : vector<8x1xf32> to vector<8x32xf32>
    %210 = arith.mulf %200, %209 : vector<8x32xf32>
    %211 = vector.broadcast %193 : vector<1x32xf32> to vector<8x32xf32>
    %212 = arith.mulf %210, %211 : vector<8x32xf32>
    %213 = vector.broadcast %194 : vector<1x32xf32> to vector<8x32xf32>
    %214 = arith.addf %212, %213 : vector<8x32xf32>
    %cst_80 = arith.constant 5.000000e-01 : f32
    %215 = vector.broadcast %cst_80 : f32 to vector<8x32xf32>
    %216 = arith.mulf %215, %214 : vector<8x32xf32>
    %cst_81 = arith.constant 4.471500e-02 : f32
    %217 = vector.broadcast %cst_81 : f32 to vector<8x32xf32>
    %218 = arith.mulf %217, %214 : vector<8x32xf32>
    %219 = arith.mulf %218, %214 : vector<8x32xf32>
    %220 = arith.mulf %219, %214 : vector<8x32xf32>
    %221 = arith.addf %214, %220 : vector<8x32xf32>
    %cst_82 = arith.constant 0.797884583 : f32
    %222 = vector.broadcast %cst_82 : f32 to vector<8x32xf32>
    %223 = arith.mulf %222, %221 : vector<8x32xf32>
    %224 = math.tanh %223 : vector<8x32xf32>
    %cst_83 = arith.constant 1.000000e+00 : f32
    %225 = vector.broadcast %cst_83 : f32 to vector<8x32xf32>
    %226 = arith.addf %225, %224 : vector<8x32xf32>
    %227 = arith.mulf %216, %226 : vector<8x32xf32>
    %228 = vector.extract_strided_slice %174 {offsets = [16, 0], sizes = [8, 32], strides = [1, 1]} : vector<40x32xf32> to vector<8x32xf32>
    %c392 = arith.constant 392 : index
    %c0_84 = arith.constant 0 : index
    %229 = vector.load %arg2[%c392, %c0_84] : memref<504x128xf32, #tpu.memory_space<vmem>>, vector<32x32xf32>
    %cst_85 = arith.constant dense<0.000000e+00> : vector<8x32xf32>
    %230 = tpu.matmul %228, %229, %cst_85 {dimension_numbers = #tpu.dot_dimension_numbers<[1], [0], [0], [1], [0, 0, 1, 1], [], []>} : vector<8x32xf32>, vector<32x32xf32>, vector<8x32xf32> -> vector<8x32xf32>
    %c424 = arith.constant 424 : index
    %c0_86 = arith.constant 0 : index
    %231 = vector.load %arg2[%c424, %c0_86] : memref<504x128xf32, #tpu.memory_space<vmem>>, vector<32x32xf32>
    %cst_87 = arith.constant dense<0.000000e+00> : vector<8x32xf32>
    %232 = tpu.matmul %227, %231, %cst_87 {dimension_numbers = #tpu.dot_dimension_numbers<[1], [0], [0], [1], [0, 0, 1, 1], [], []>} : vector<8x32xf32>, vector<32x32xf32>, vector<8x32xf32> -> vector<8x32xf32>
    %233 = arith.addf %230, %232 : vector<8x32xf32>
    %c20 = arith.constant 20 : index
    %c0_88 = arith.constant 0 : index
    %234 = vector.load %arg2[%c20, %c0_88] : memref<504x128xf32, #tpu.memory_space<vmem>>, vector<1x32xf32>
    %235 = vector.broadcast %234 : vector<1x32xf32> to vector<8x32xf32>
    %236 = arith.addf %233, %235 : vector<8x32xf32>
    %c12 = arith.constant 12 : index
    %c0_89 = arith.constant 0 : index
    %237 = vector.load %arg2[%c12, %c0_89] : memref<504x128xf32, #tpu.memory_space<vmem>>, vector<1x32xf32>
    %c13 = arith.constant 13 : index
    %c0_90 = arith.constant 0 : index
    %238 = vector.load %arg2[%c13, %c0_90] : memref<504x128xf32, #tpu.memory_space<vmem>>, vector<1x32xf32>
    %cst_91 = arith.constant dense<0.000000e+00> : vector<8xf32>
    %239 = vector.multi_reduction <add>, %236, %cst_91 [1] : vector<8x32xf32> to vector<8xf32>
    %240 = vector.shape_cast %239 : vector<8xf32> to vector<8x1xf32>
    %cst_92 = arith.constant 3.200000e+01 : f32
    %241 = vector.broadcast %cst_92 : f32 to vector<8x1xf32>
    %242 = arith.divf %240, %241 : vector<8x1xf32>
    %243 = vector.broadcast %242 : vector<8x1xf32> to vector<8x32xf32>
    %244 = arith.subf %236, %243 : vector<8x32xf32>
    %245 = arith.mulf %244, %244 : vector<8x32xf32>
    %cst_93 = arith.constant dense<0.000000e+00> : vector<8xf32>
    %246 = vector.multi_reduction <add>, %245, %cst_93 [1] : vector<8x32xf32> to vector<8xf32>
    %247 = vector.shape_cast %246 : vector<8xf32> to vector<8x1xf32>
    %cst_94 = arith.constant 3.200000e+01 : f32
    %248 = vector.broadcast %cst_94 : f32 to vector<8x1xf32>
    %249 = arith.divf %247, %248 : vector<8x1xf32>
    %cst_95 = arith.constant 9.99999974E-6 : f32
    %250 = vector.broadcast %cst_95 : f32 to vector<8x1xf32>
    %251 = arith.addf %249, %250 : vector<8x1xf32>
    %252 = math.rsqrt %251 : vector<8x1xf32>
    %253 = vector.broadcast %252 : vector<8x1xf32> to vector<8x32xf32>
    %254 = arith.mulf %244, %253 : vector<8x32xf32>
    %255 = vector.broadcast %237 : vector<1x32xf32> to vector<8x32xf32>
    %256 = arith.mulf %254, %255 : vector<8x32xf32>
    %257 = vector.broadcast %238 : vector<1x32xf32> to vector<8x32xf32>
    %258 = arith.addf %256, %257 : vector<8x32xf32>
    %259 = arith.negf %258 : vector<8x32xf32>
    %260 = math.exp %259 : vector<8x32xf32>
    %cst_96 = arith.constant 1.000000e+00 : f32
    %261 = vector.broadcast %cst_96 : f32 to vector<8x32xf32>
    %262 = arith.addf %261, %260 : vector<8x32xf32>
    %263 = arith.divf %261, %262 : vector<8x32xf32>
    %264 = arith.mulf %258, %263 : vector<8x32xf32>
    %c456 = arith.constant 456 : index
    %c0_97 = arith.constant 0 : index
    %265 = vector.load %arg2[%c456, %c0_97] : memref<504x128xf32, #tpu.memory_space<vmem>>, vector<32x16xf32>
    %cst_98 = arith.constant dense<0.000000e+00> : vector<8x16xf32>
    %266 = tpu.matmul %264, %265, %cst_98 {dimension_numbers = #tpu.dot_dimension_numbers<[1], [0], [0], [1], [0, 0, 1, 1], [], []>} : vector<8x32xf32>, vector<32x16xf32>, vector<8x16xf32> -> vector<8x16xf32>
    %c21 = arith.constant 21 : index
    %c0_99 = arith.constant 0 : index
    %267 = vector.load %arg2[%c21, %c0_99] : memref<504x128xf32, #tpu.memory_space<vmem>>, vector<1x16xf32>
    %268 = vector.broadcast %267 : vector<1x16xf32> to vector<8x16xf32>
    %269 = arith.addf %266, %268 : vector<8x16xf32>
    %c14 = arith.constant 14 : index
    %c0_100 = arith.constant 0 : index
    %270 = vector.load %arg2[%c14, %c0_100] : memref<504x128xf32, #tpu.memory_space<vmem>>, vector<1x16xf32>
    %c15 = arith.constant 15 : index
    %c0_101 = arith.constant 0 : index
    %271 = vector.load %arg2[%c15, %c0_101] : memref<504x128xf32, #tpu.memory_space<vmem>>, vector<1x16xf32>
    %cst_102 = arith.constant dense<0.000000e+00> : vector<8xf32>
    %272 = vector.multi_reduction <add>, %269, %cst_102 [1] : vector<8x16xf32> to vector<8xf32>
    %273 = vector.shape_cast %272 : vector<8xf32> to vector<8x1xf32>
    %cst_103 = arith.constant 1.600000e+01 : f32
    %274 = vector.broadcast %cst_103 : f32 to vector<8x1xf32>
    %275 = arith.divf %273, %274 : vector<8x1xf32>
    %276 = vector.broadcast %275 : vector<8x1xf32> to vector<8x16xf32>
    %277 = arith.subf %269, %276 : vector<8x16xf32>
    %278 = arith.mulf %277, %277 : vector<8x16xf32>
    %cst_104 = arith.constant dense<0.000000e+00> : vector<8xf32>
    %279 = vector.multi_reduction <add>, %278, %cst_104 [1] : vector<8x16xf32> to vector<8xf32>
    %280 = vector.shape_cast %279 : vector<8xf32> to vector<8x1xf32>
    %cst_105 = arith.constant 1.600000e+01 : f32
    %281 = vector.broadcast %cst_105 : f32 to vector<8x1xf32>
    %282 = arith.divf %280, %281 : vector<8x1xf32>
    %cst_106 = arith.constant 9.99999974E-6 : f32
    %283 = vector.broadcast %cst_106 : f32 to vector<8x1xf32>
    %284 = arith.addf %282, %283 : vector<8x1xf32>
    %285 = math.rsqrt %284 : vector<8x1xf32>
    %286 = vector.broadcast %285 : vector<8x1xf32> to vector<8x16xf32>
    %287 = arith.mulf %277, %286 : vector<8x16xf32>
    %288 = vector.broadcast %270 : vector<1x16xf32> to vector<8x16xf32>
    %289 = arith.mulf %287, %288 : vector<8x16xf32>
    %290 = vector.broadcast %271 : vector<1x16xf32> to vector<8x16xf32>
    %291 = arith.addf %289, %290 : vector<8x16xf32>
    %292 = arith.negf %291 : vector<8x16xf32>
    %293 = math.exp %292 : vector<8x16xf32>
    %cst_107 = arith.constant 1.000000e+00 : f32
    %294 = vector.broadcast %cst_107 : f32 to vector<8x16xf32>
    %295 = arith.addf %294, %293 : vector<8x16xf32>
    %296 = arith.divf %294, %295 : vector<8x16xf32>
    %297 = arith.mulf %291, %296 : vector<8x16xf32>
    %c488 = arith.constant 488 : index
    %c0_108 = arith.constant 0 : index
    %298 = vector.load %arg2[%c488, %c0_108] : memref<504x128xf32, #tpu.memory_space<vmem>>, vector<16x128xf32>
    %cst_109 = arith.constant dense<0.000000e+00> : vector<8x128xf32>
    %299 = tpu.matmul %297, %298, %cst_109 {dimension_numbers = #tpu.dot_dimension_numbers<[1], [0], [0], [1], [0, 0, 1, 1], [], []>} : vector<8x16xf32>, vector<16x128xf32>, vector<8x128xf32> -> vector<8x128xf32>
    %c22 = arith.constant 22 : index
    %c0_110 = arith.constant 0 : index
    %300 = vector.load %arg2[%c22, %c0_110] : memref<504x128xf32, #tpu.memory_space<vmem>>, vector<1x128xf32>
    %301 = vector.broadcast %300 : vector<1x128xf32> to vector<8x128xf32>
    %302 = arith.addf %299, %301 : vector<8x128xf32>
    %c0_111 = arith.constant 0 : index
    %c0_112 = arith.constant 0 : index
    %303 = vector.load %arg3[%c0_111, %c0_112] : memref<16x128xf32, #tpu.memory_space<vmem>>, vector<8x128xf32>
    tpu.vector_store %arg3[%c0_111, %c0_112], %302 {strides = array<i32>} : memref<16x128xf32, #tpu.memory_space<vmem>>, vector<8x128xf32>,
    %304 = tpu.iota {dimensions = array<i32: 1>} : vector<8x128xi32>
    %c2_i32 = arith.constant 2 : i32
    %305 = vector.broadcast %c2_i32 : i32 to vector<8x128xi32>
    %306 = arith.cmpi slt, %304, %305 : vector<8x128xi32>
    %cst_113 = arith.constant 0xFF800000 : f32
    %307 = vector.broadcast %cst_113 : f32 to vector<8x128xf32>
    %308 = arith.select %306, %302, %307 : vector<8x128xi1>, vector<8x128xf32>
    %cst_114 = arith.constant dense<0xFF800000> : vector<8xf32>
    %309 = vector.multi_reduction <maximumf>, %308, %cst_114 [1] : vector<8x128xf32> to vector<8xf32>
    %310 = vector.shape_cast %309 : vector<8xf32> to vector<8x1xf32>
    %311 = vector.broadcast %310 : vector<8x1xf32> to vector<8x128xf32>
    %312 = arith.subf %308, %311 : vector<8x128xf32>
    %313 = math.exp %312 : vector<8x128xf32>
    %cst_115 = arith.constant dense<0.000000e+00> : vector<8xf32>
    %314 = vector.multi_reduction <add>, %313, %cst_115 [1] : vector<8x128xf32> to vector<8xf32>
    %315 = vector.shape_cast %314 : vector<8xf32> to vector<8x1xf32>
    %316 = vector.broadcast %315 : vector<8x1xf32> to vector<8x128xf32>
    %317 = arith.divf %313, %316 : vector<8x128xf32>
    %c8_116 = arith.constant 8 : index
    %c0_117 = arith.constant 0 : index
    %318 = vector.load %arg3[%c8_116, %c0_117] : memref<16x128xf32, #tpu.memory_space<vmem>>, vector<8x128xf32>
    tpu.vector_store %arg3[%c8_116, %c0_117], %317 {strides = array<i32>} : memref<16x128xf32, #tpu.memory_space<vmem>>, vector<8x128xf32>,
    return
  }
}

</mosaic_0001>

<llo_original>
// kernel: two_stream_forward.1
$region0: #{two_stream_forward.1}
  #allocation0 [shape = 'u32[]', space=smem, size = 0x4, offset = 0x4, fixed_abs, tag = 'smem constant byte address 0x4 - core index']
  #allocation1 [shape = 'u32[144,128]{1,0:T(1,128)}', space=vmem, size = 0x12000, scoped, tag = 'internal scratch']
  %s0 = inlined_call_operand.vmem [shape: f32[40,32], index: 0, kind: input, shape index: {}]
  %s1 = inlined_call_operand.vmem [shape: f32[160,48], index: 1, kind: input, shape index: {}]
  %s2 = inlined_call_operand.vmem [shape: f32[504,128], index: 2, kind: input, shape index: {}]
  %s3 = inlined_call_operand.vmem [shape: f32[16,128], index: 3, kind: output, shape index: {}]
  %s4 = sld [smem:[#allocation0]]
  $region22: #{two_stream_forward.1} parent=0
    _
  %s6 = ssub.s32 1, %s4
  %s7 = scalar_select 0, %s6, %s4
  // Predicated region
  $region2: #{two_stream_forward.1} parent=0 // pred_check
    _
  $region3: #{two_stream_forward.1} parent=0 // pred_check_branch
    %9 = sbr.rel (0) target = $region5
  $region4: #{two_stream_forward.1} parent=0 // pred_region
    _
  $region5: #{two_stream_forward.1} parent=0 // pred_fallthru
    _
  // Predicated region
  $region6: #{two_stream_forward.1} parent=0 // pred_check
    _
  $region7: #{two_stream_forward.1} parent=0 // pred_check_branch
    %11 = sbr.rel (0) target = $region9
  $region8: #{two_stream_forward.1} parent=0 // pred_region
    _
  $region9: #{two_stream_forward.1} parent=0 // pred_fallthru
    _
  // Predicated region
  $region10: #{two_stream_forward.1} parent=0 // pred_check
    _
  $region11: #{two_stream_forward.1} parent=0 // pred_check_branch
    %13 = sbr.rel (0) target = $region13
  $region12: #{two_stream_forward.1} parent=0 // pred_region
    _
  $region13: #{two_stream_forward.1} parent=0 // pred_fallthru
    _
  %v14 = vld [vmem:[%s0] sm:$0xff]
  %v15 = vld [vmem:[%s0 + $0x8] sm:$0xff]
  %v16 = vld [vmem:[%s0 + $0x10] sm:$0xff]
  %v17 = vld [vmem:[%s0 + $0x18] sm:$0xff]
  %v18 = vld [vmem:[%s0 + $0x20] sm:$0xff]
  %v19 = vld [vmem:[%s2] sm:$0x1]
  %v20 = vld [vmem:[%s2 + $0x1] sm:$0x1]
  %vm21 = vcmask 261120
  %v22 = vsel %vm21, %v14, 0.0
  %23 = vadd.xlane.f32.xlu0 %v22
  %v24 = vpop.xlane.xlu0 %23
  %v25 = vsel %vm21, %v15, 0.0
  %26 = vadd.xlane.f32.xlu0 %v25
  %v27 = vpop.xlane.xlu0 %26
  %v28 = vsel %vm21, %v16, 0.0
  %29 = vadd.xlane.f32.xlu0 %v28
  %v30 = vpop.xlane.xlu0 %29
  %v31 = vsel %vm21, %v17, 0.0
  %32 = vadd.xlane.f32.xlu0 %v31
  %v33 = vpop.xlane.xlu0 %32
  %v34 = vsel %vm21, %v18, 0.0
  %35 = vadd.xlane.f32.xlu0 %v34
  %v36 = vpop.xlane.xlu0 %35
  %v37 = vrcp.pop 32.0
  %v38 = vmul.f32 %v24, %v37
  %v39 = vmul.f32 %v27, %v37
  %v40 = vmul.f32 %v30, %v37
  %v41 = vmul.f32 %v33, %v37
  %v42 = vmul.f32 %v36, %v37
  %v43 = vsub.f32 %v14, %v38
  %v44 = vsub.f32 %v15, %v39
  %v45 = vsub.f32 %v16, %v40
  %v46 = vsub.f32 %v17, %v41
  %v47 = vsub.f32 %v18, %v42
  %v48 = vmul.f32 %v43, %v43
  %v49 = vmul.f32 %v44, %v44
  %v50 = vmul.f32 %v45, %v45
  %v51 = vmul.f32 %v46, %v46
  %v52 = vmul.f32 %v47, %v47
  %v53 = vsel %vm21, %v48, 0.0
  %54 = vadd.xlane.f32.xlu0 %v53
  %v55 = vpop.xlane.xlu0 %54
  %v56 = vsel %vm21, %v49, 0.0
  %57 = vadd.xlane.f32.xlu0 %v56
  %v58 = vpop.xlane.xlu0 %57
  %v59 = vsel %vm21, %v50, 0.0
  %60 = vadd.xlane.f32.xlu0 %v59
  %v61 = vpop.xlane.xlu0 %60
  %v62 = vsel %vm21, %v51, 0.0
  %63 = vadd.xlane.f32.xlu0 %v62
  %v64 = vpop.xlane.xlu0 %63
  %v65 = vsel %vm21, %v52, 0.0
  %66 = vadd.xlane.f32.xlu0 %v65
  %v67 = vpop.xlane.xlu0 %66
  %v68 = vmul.f32 %v55, %v37
  %v69 = vmul.f32 %v58, %v37
  %v70 = vmul.f32 %v61, %v37
  %v71 = vmul.f32 %v64, %v37
  %v72 = vmul.f32 %v67, %v37
  %v73 = vadd.f32 %v68, 1e-05
  %v74 = vadd.f32 %v69, 1e-05
  %v75 = vadd.f32 %v70, 1e-05
  %v76 = vadd.f32 %v71, 1e-05
  %v77 = vadd.f32 %v72, 1e-05
  %v78 = vrsqrt.pop %v73
  %v79 = vrsqrt.pop %v74
  %v80 = vrsqrt.pop %v75
  %v81 = vrsqrt.pop %v76
  %v82 = vrsqrt.pop %v77
  %v83 = vmul.f32 %v43, %v78
  %v84 = vmul.f32 %v44, %v79
  %v85 = vmul.f32 %v45, %v80
  %v86 = vmul.f32 %v46, %v81
  %v87 = vmul.f32 %v47, %v82
  %v88 = vlaneseq
  %v89 = vshrl.u32 %v88, 7
  %v90 = vsub.s32 0, %v89
  %v91 = vrot.slane %v19, %v90
  %v92 = vmul.f32 %v83, %v91
  %v93 = vmul.f32 %v84, %v91
  %v94 = vmul.f32 %v85, %v91
  %v95 = vmul.f32 %v86, %v91
  %v96 = vmul.f32 %v87, %v91
  %v97 = vlaneseq
  %v98 = vshrl.u32 %v97, 7
  %v99 = vsub.s32 0, %v98
  %v100 = vrot.slane %v20, %v99
  %v101 = vadd.f32 %v92, %v100
  %v102 = vadd.f32 %v93, %v100
  %v103 = vadd.f32 %v94, %v100
  %v104 = vadd.f32 %v95, %v100
  %v105 = vadd.f32 %v96, %v100
  %v106 = vld [vmem:[%s2 + $0x18] sm:$0xff]
  %v107 = vld [vmem:[%s2 + $0x20] sm:$0xff]
  %v108 = vld [vmem:[%s2 + $0x28] sm:$0xff]
  %v109 = vld [vmem:[%s2 + $0x30] sm:$0xff]
  %v110 = vld [vmem:[%s2 + $0x10] sm:$0x1]
  %v111 = vlaneseq
  %v112 = vshrl.u32 %v111, 7
  %v113 = vsub.s32 0, %v112
  %v114 = vrot.slane %v110, %v113
  %v116 = vsel %vm21, %v101, 0
  %v119 = vsel %vm21, %v102, 0
  %v122 = vsel %vm21, %v103, 0
  %v125 = vsel %vm21, %v104, 0
  %v128 = vsel %vm21, %v105, 0
  %130 = vmatprep.subr.mxu0 0.0
  %131 = vmatpush1.msra.mxu0 %v106
  %132 = vmatprep.subr.mxu0 0.0
  %133 = vmatpush1.msra.mxu0 %v107
  %134 = vmatprep.subr.mxu0 0.0
  %135 = vmatpush1.msra.mxu0 %v108
  %136 = vmatprep.subr.mxu0 0.0
  %137 = vmatpush1.msra.mxu0 %v109
  %138 = vmatprep.subr.mxu0 0.0
  %139 = vmatpush1.msra.mxu0 0.0
  %140 = vmatprep.subr.mxu0 0.0
  %141 = vmatpush1.msra.mxu0 0.0
  %142 = vmatprep.subr.mxu0 0.0
  %143 = vmatpush1.msra.mxu0 0.0
  %144 = vmatprep.subr.mxu0 0.0
  %145 = vmatpush1.msra.mxu0 0.0
  %146 = vmatprep.subr.mxu0 0.0
  %147 = vmatpush1.msra.mxu0 0.0
  %148 = vmatprep.subr.mxu0 0.0
  %149 = vmatpush1.msra.mxu0 0.0
  %150 = vmatprep.subr.mxu0 0.0
  %151 = vmatpush1.msra.mxu0 0.0
  %152 = vmatprep.subr.mxu0 0.0
  %153 = vmatpush1.msra.mxu0 0.0
  %154 = vmatprep.subr.mxu0 0.0
  %155 = vmatpush1.msra.mxu0 0.0
  %156 = vmatprep.subr.mxu0 0.0
  %157 = vmatpush1.msra.mxu0 0.0
  %158 = vmatprep.subr.mxu0 0.0
  %159 = vmatpush1.msra.mxu0 0.0
  %160 = vmatprep.subr.mxu0 0.0
  %161 = vmatpush1.msra.mxu0 0.0
  %162 = vmatprep.subr.mxu0 0.0
  %163 = vmatpush1.msra.mxu0 0.0
  %164 = vmatprep.subr.mxu0 0.0
  %165 = vmatpush1.msra.mxu0 0.0
  %166 = vmatprep.subr.mxu0 0.0
  %167 = vmatpush1.msra.mxu0 0.0
  %168 = vmatprep.subr.mxu0 0.0
  %169 = vmatpush1.msra.mxu0 0.0
  %170 = vmatprep.subr.mxu0 0.0
  %171 = vmatpush1.msra.mxu0 0.0
  %172 = vmatprep.subr.mxu0 0.0
  %173 = vmatpush1.msra.mxu0 0.0
  %174 = vmatprep.subr.mxu0 0.0
  %175 = vmatpush1.msra.mxu0 0.0
  %176 = vmatprep.subr.mxu0 0.0
  %177 = vmatpush1.msra.mxu0 0.0
  %178 = vmatprep.subr.mxu0 0.0
  %179 = vmatpush1.msra.mxu0 0.0
  %180 = vmatprep.subr.mxu0 0.0
  %181 = vmatpush1.msra.mxu0 0.0
  %182 = vmatprep.subr.mxu0 0.0
  %183 = vmatpush1.msra.mxu0 0.0
  %184 = vmatprep.subr.mxu0 0.0
  %185 = vmatpush1.msra.mxu0 0.0
  %186 = vmatprep.subr.mxu0 0.0
  %187 = vmatpush1.msra.mxu0 0.0
  %188 = vmatprep.subr.mxu0 0.0
  %189 = vmatpush1.msra.mxu0 0.0
  %190 = vmatprep.subr.mxu0 0.0
  %191 = vmatpush1.msra.mxu0 0.0
  %192 = vmatprep.subr.mxu0 0.0
  %193 = vmatpush1.msra.mxu0 0.0
  %194 = vmatprep.mubr.f32.mxu0 0.0
  %195 = vmatmul.mubr.f32.gmra.mrb[0].mxu0 %v116
  %v196 = vpop.f32.mrb[0].mxu0
  %v197 = vadd.f32 %v114, %v196
  %v198 = vpop.f32.mrb[0].mxu0
  %199 = vmatprep.mubr.f32.mxu0 0.0
  %200 = vmatmul.mubr.f32.gmra.mrb[0].mxu0 %v119
  %v201 = vpop.f32.mrb[0].mxu0
  %v202 = vadd.f32 %v114, %v201
  %v203 = vpop.f32.mrb[0].mxu0
  %204 = vmatprep.mubr.f32.mxu0 0.0
  %205 = vmatmul.mubr.f32.gmra.mrb[0].mxu0 %v122
  %v206 = vpop.f32.mrb[0].mxu0
  %v207 = vadd.f32 %v114, %v206
  %v208 = vpop.f32.mrb[0].mxu0
  %209 = vmatprep.mubr.f32.mxu0 0.0
  %210 = vmatmul.mubr.f32.gmra.mrb[0].mxu0 %v125
  %v211 = vpop.f32.mrb[0].mxu0
  %v212 = vadd.f32 %v114, %v211
  %v213 = vpop.f32.mrb[0].mxu0
  %214 = vmatprep.mubr.f32.mxu0 0.0
  %215 = vmatmul.mubr.f32.gmra.mrb[0].mxu0 %v128
  %v216 = vpop.f32.mrb[0].mxu0
  %v217 = vadd.f32 %v114, %v216
  %v218 = vpop.f32.mrb[0].mxu0
  %219 = vdwg.mxu0
  %v220 = vmul.f32 %v197, 0.5
  %v221 = vmul.f32 %v202, 0.5
  %v222 = vmul.f32 %v207, 0.5
  %v223 = vmul.f32 %v212, 0.5
  %v224 = vmul.f32 %v217, 0.5
  %v225 = vmul.f32 %v197, 0.044715
  %v226 = vmul.f32 %v202, 0.044715
  %v227 = vmul.f32 %v207, 0.044715
  %v228 = vmul.f32 %v212, 0.044715
  %v229 = vmul.f32 %v217, 0.044715
  %v230 = vmul.f32 %v225, %v197
  %v231 = vmul.f32 %v226, %v202
  %v232 = vmul.f32 %v227, %v207
  %v233 = vmul.f32 %v228, %v212
  %v234 = vmul.f32 %v229, %v217
  %v235 = vmul.f32 %v230, %v197
  %v236 = vmul.f32 %v231, %v202
  %v237 = vmul.f32 %v232, %v207
  %v238 = vmul.f32 %v233, %v212
  %v239 = vmul.f32 %v234, %v217
  %v240 = vadd.f32 %v197, %v235
  %v241 = vadd.f32 %v202, %v236
  %v242 = vadd.f32 %v207, %v237
  %v243 = vadd.f32 %v212, %v238
  %v244 = vadd.f32 %v217, %v239
  %v245 = vmul.f32 %v240, 0.7978846
  %v246 = vmul.f32 %v241, 0.7978846
  %v247 = vmul.f32 %v242, 0.7978846
  %v248 = vmul.f32 %v243, 0.7978846
  %v249 = vmul.f32 %v244, 0.7978846
  %v250 = vtanh.pop %v245
  %v251 = vtanh.pop %v246
  %v252 = vtanh.pop %v247
  %v253 = vtanh.pop %v248
  %v254 = vtanh.pop %v249
  %v255 = vadd.f32 %v250, 1.0
  %v256 = vadd.f32 %v251, 1.0
  %v257 = vadd.f32 %v252, 1.0
  %v258 = vadd.f32 %v253, 1.0
  %v259 = vadd.f32 %v254, 1.0
  %v260 = vmul.f32 %v220, %v255
  %v261 = vmul.f32 %v221, %v256
  %v262 = vmul.f32 %v222, %v257
  %v263 = vmul.f32 %v223, %v258
  %v264 = vmul.f32 %v224, %v259
  %v265 = vld [vmem:[%s2 + $0x2] sm:$0x1]
  %v266 = vld [vmem:[%s2 + $0x3] sm:$0x1]
  %v267 = vsel %vm21, %v260, 0.0
  %268 = vadd.xlane.f32.xlu0 %v267
  %v269 = vpop.xlane.xlu0 %268
  %v270 = vsel %vm21, %v261, 0.0
  %271 = vadd.xlane.f32.xlu0 %v270
  %v272 = vpop.xlane.xlu0 %271
  %v273 = vsel %vm21, %v262, 0.0
  %274 = vadd.xlane.f32.xlu0 %v273
  %v275 = vpop.xlane.xlu0 %274
  %v276 = vsel %vm21, %v263, 0.0
  %277 = vadd.xlane.f32.xlu0 %v276
  %v278 = vpop.xlane.xlu0 %277
  %v279 = vsel %vm21, %v264, 0.0
  %280 = vadd.xlane.f32.xlu0 %v279
  %v281 = vpop.xlane.xlu0 %280
  %v282 = vmul.f32 %v269, %v37
  %v283 = vmul.f32 %v272, %v37
  %v284 = vmul.f32 %v275, %v37
  %v285 = vmul.f32 %v278, %v37
  %v286 = vmul.f32 %v281, %v37
  %v287 = vsub.f32 %v260, %v282
  %v288 = vsub.f32 %v261, %v283
  %v289 = vsub.f32 %v262, %v284
  %v290 = vsub.f32 %v263, %v285
  %v291 = vsub.f32 %v264, %v286
  %v292 = vmul.f32 %v287, %v287
  %v293 = vmul.f32 %v288, %v288
  %v294 = vmul.f32 %v289, %v289
  %v295 = vmul.f32 %v290, %v290
  %v296 = vmul.f32 %v291, %v291
  %v297 = vsel %vm21, %v292, 0.0
  %298 = vadd.xlane.f32.xlu0 %v297
  %v299 = vpop.xlane.xlu0 %298
  %v300 = vsel %vm21, %v293, 0.0
  %301 = vadd.xlane.f32.xlu0 %v300
  %v302 = vpop.xlane.xlu0 %301
  %v303 = vsel %vm21, %v294, 0.0
  %304 = vadd.xlane.f32.xlu0 %v303
  %v305 = vpop.xlane.xlu0 %304
  %v306 = vsel %vm21, %v295, 0.0
  %307 = vadd.xlane.f32.xlu0 %v306
  %v308 = vpop.xlane.xlu0 %307
  %v309 = vsel %vm21, %v296, 0.0
  %310 = vadd.xlane.f32.xlu0 %v309
  %v311 = vpop.xlane.xlu0 %310
  %v312 = vmul.f32 %v299, %v37
  %v313 = vmul.f32 %v302, %v37
  %v314 = vmul.f32 %v305, %v37
  %v315 = vmul.f32 %v308, %v37
  %v316 = vmul.f32 %v311, %v37
  %v317 = vadd.f32 %v312, 1e-05
  %v318 = vadd.f32 %v313, 1e-05
  %v319 = vadd.f32 %v314, 1e-05
  %v320 = vadd.f32 %v315, 1e-05
  %v321 = vadd.f32 %v316, 1e-05
  %v322 = vrsqrt.pop %v317
  %v323 = vrsqrt.pop %v318
  %v324 = vrsqrt.pop %v319
  %v325 = vrsqrt.pop %v320
  %v326 = vrsqrt.pop %v321
  %v327 = vmul.f32 %v287, %v322
  %v328 = vmul.f32 %v288, %v323
  %v329 = vmul.f32 %v289, %v324
  %v330 = vmul.f32 %v290, %v325
  %v331 = vmul.f32 %v291, %v326
  %v332 = vlaneseq
  %v333 = vshrl.u32 %v332, 7
  %v334 = vsub.s32 0, %v333
  %v335 = vrot.slane %v265, %v334
  %v336 = vmul.f32 %v327, %v335
  %v337 = vmul.f32 %v328, %v335
  %v338 = vmul.f32 %v329, %v335
  %v339 = vmul.f32 %v330, %v335
  %v340 = vmul.f32 %v331, %v335
  %v341 = vlaneseq
  %v342 = vshrl.u32 %v341, 7
  %v343 = vsub.s32 0, %v342
  %v344 = vrot.slane %v266, %v343
  %v345 = vadd.f32 %v336, %v344
  %v346 = vadd.f32 %v337, %v344
  %v347 = vadd.f32 %v338, %v344
  %v348 = vadd.f32 %v339, %v344
  %v349 = vadd.f32 %v340, %v344
  %v350 = vld [vmem:[%s1] sm:$0xff]
  %v351 = vld [vmem:[%s1 + $0x8] sm:$0xff]
  %v352 = vld [vmem:[%s1 + $0x10] sm:$0xff]
  %v353 = vld [vmem:[%s1 + $0x18] sm:$0xff]
  %v354 = vld [vmem:[%s1 + $0x20] sm:$0xff]
  %v355 = vld [vmem:[%s1 + $0x28] sm:$0xff]
  %v356 = vld [vmem:[%s1 + $0x30] sm:$0xff]
  %v357 = vld [vmem:[%s1 + $0x38] sm:$0xff]
  %v358 = vld [vmem:[%s1 + $0x40] sm:$0xff]
  %v359 = vld [vmem:[%s1 + $0x48] sm:$0xff]
  %v360 = vld [vmem:[%s1 + $0x50] sm:$0xff]
  %v361 = vld [vmem:[%s1 + $0x58] sm:$0xff]
  %v362 = vld [vmem:[%s1 + $0x60] sm:$0xff]
  %v363 = vld [vmem:[%s1 + $0x68] sm:$0xff]
  %v364 = vld [vmem:[%s1 + $0x70] sm:$0xff]
  %v365 = vld [vmem:[%s1 + $0x78] sm:$0xff]
  %v366 = vld [vmem:[%s1 + $0x80] sm:$0xff]
  %v367 = vld [vmem:[%s1 + $0x88] sm:$0xff]
  %v368 = vld [vmem:[%s1 + $0x90] sm:$0xff]
  %v369 = vld [vmem:[%s1 + $0x98] sm:$0xff]
  %v370 = vld [vmem:[%s2 + $0x4] sm:$0x1]
  %v371 = vld [vmem:[%s2 + $0x5] sm:$0x1]
  %vm372 = vcmask 392192
  %v373 = vsel %vm372, %v350, 0.0
  %374 = vadd.xlane.f32.xlu0 %v373
  %v375 = vpop.xlane.xlu0 %374
  %v376 = vsel %vm372, %v351, 0.0
  %377 = vadd.xlane.f32.xlu0 %v376
  %v378 = vpop.xlane.xlu0 %377
  %v379 = vsel %vm372, %v352, 0.0
  %380 = vadd.xlane.f32.xlu0 %v379
  %v381 = vpop.xlane.xlu0 %380
  %v382 = vsel %vm372, %v353, 0.0
  %383 = vadd.xlane.f32.xlu0 %v382
  %v384 = vpop.xlane.xlu0 %383
  %v385 = vsel %vm372, %v354, 0.0
  %386 = vadd.xlane.f32.xlu0 %v385
  %v387 = vpop.xlane.xlu0 %386
  %v388 = vsel %vm372, %v355, 0.0
  %389 = vadd.xlane.f32.xlu0 %v388
  %v390 = vpop.xlane.xlu0 %389
  %v391 = vsel %vm372, %v356, 0.0
  %392 = vadd.xlane.f32.xlu0 %v391
  %v393 = vpop.xlane.xlu0 %392
  %v394 = vsel %vm372, %v357, 0.0
  %395 = vadd.xlane.f32.xlu0 %v394
  %v396 = vpop.xlane.xlu0 %395
  %v397 = vsel %vm372, %v358, 0.0
  %398 = vadd.xlane.f32.xlu0 %v397
  %v399 = vpop.xlane.xlu0 %398
  %v400 = vsel %vm372, %v359, 0.0
  %401 = vadd.xlane.f32.xlu0 %v400
  %v402 = vpop.xlane.xlu0 %401
  %v403 = vsel %vm372, %v360, 0.0
  %404 = vadd.xlane.f32.xlu0 %v403
  %v405 = vpop.xlane.xlu0 %404
  %v406 = vsel %vm372, %v361, 0.0
  %407 = vadd.xlane.f32.xlu0 %v406
  %v408 = vpop.xlane.xlu0 %407
  %v409 = vsel %vm372, %v362, 0.0
  %410 = vadd.xlane.f32.xlu0 %v409
  %v411 = vpop.xlane.xlu0 %410
  %v412 = vsel %vm372, %v363, 0.0
  %413 = vadd.xlane.f32.xlu0 %v412
  %v414 = vpop.xlane.xlu0 %413
  %v415 = vsel %vm372, %v364, 0.0
  %416 = vadd.xlane.f32.xlu0 %v415
  %v417 = vpop.xlane.xlu0 %416
  %v418 = vsel %vm372, %v365, 0.0
  %419 = vadd.xlane.f32.xlu0 %v418
  %v420 = vpop.xlane.xlu0 %419
  %v421 = vsel %vm372, %v366, 0.0
  %422 = vadd.xlane.f32.xlu0 %v421
  %v423 = vpop.xlane.xlu0 %422
  %v424 = vsel %vm372, %v367, 0.0
  %425 = vadd.xlane.f32.xlu0 %v424
  %v426 = vpop.xlane.xlu0 %425
  %v427 = vsel %vm372, %v368, 0.0
  %428 = vadd.xlane.f32.xlu0 %v427
  %v429 = vpop.xlane.xlu0 %428
  %v430 = vsel %vm372, %v369, 0.0
  %431 = vadd.xlane.f32.xlu0 %v430
  %v432 = vpop.xlane.xlu0 %431
  %v433 = vrcp.pop 48.0
  %v434 = vmul.f32 %v375, %v433
  %v435 = vmul.f32 %v378, %v433
  %v436 = vmul.f32 %v381, %v433
  %v437 = vmul.f32 %v384, %v433
  %v438 = vmul.f32 %v387, %v433
  %v439 = vmul.f32 %v390, %v433
  %v440 = vmul.f32 %v393, %v433
  %v441 = vmul.f32 %v396, %v433
  %v442 = vmul.f32 %v399, %v433
  %v443 = vmul.f32 %v402, %v433
  %v444 = vmul.f32 %v405, %v433
  %v445 = vmul.f32 %v408, %v433
  %v446 = vmul.f32 %v411, %v433
  %v447 = vmul.f32 %v414, %v433
  %v448 = vmul.f32 %v417, %v433
  %v449 = vmul.f32 %v420, %v433
  %v450 = vmul.f32 %v423, %v433
  %v451 = vmul.f32 %v426, %v433
  %v452 = vmul.f32 %v429, %v433
  %v453 = vmul.f32 %v432, %v433
  %v454 = vsub.f32 %v350, %v434
  %v455 = vsub.f32 %v351, %v435
  %v456 = vsub.f32 %v352, %v436
  %v457 = vsub.f32 %v353, %v437
  %v458 = vsub.f32 %v354, %v438
  %v459 = vsub.f32 %v355, %v439
  %v460 = vsub.f32 %v356, %v440
  %v461 = vsub.f32 %v357, %v441
  %v462 = vsub.f32 %v358, %v442
  %v463 = vsub.f32 %v359, %v443
  %v464 = vsub.f32 %v360, %v444
  %v465 = vsub.f32 %v361, %v445
  %v466 = vsub.f32 %v362, %v446
  %v467 = vsub.f32 %v363, %v447
  %v468 = vsub.f32 %v364, %v448
  %v469 = vsub.f32 %v365, %v449
  %v470 = vsub.f32 %v366, %v450
  %v471 = vsub.f32 %v367, %v451
  %v472 = vsub.f32 %v368, %v452
  %v473 = vsub.f32 %v369, %v453
  %v474 = vmul.f32 %v454, %v454
  %v475 = vmul.f32 %v455, %v455
  %v476 = vmul.f32 %v456, %v456
  %v477 = vmul.f32 %v457, %v457
  %v478 = vmul.f32 %v458, %v458
  %v479 = vmul.f32 %v459, %v459
  %v480 = vmul.f32 %v460, %v460
  %v481 = vmul.f32 %v461, %v461
  %v482 = vmul.f32 %v462, %v462
  %v483 = vmul.f32 %v463, %v463
  %v484 = vmul.f32 %v464, %v464
  %v485 = vmul.f32 %v465, %v465
  %v486 = vmul.f32 %v466, %v466
  %v487 = vmul.f32 %v467, %v467
  %v488 = vmul.f32 %v468, %v468
  %v489 = vmul.f32 %v469, %v469
  %v490 = vmul.f32 %v470, %v470
  %v491 = vmul.f32 %v471, %v471
  %v492 = vmul.f32 %v472, %v472
  %v493 = vmul.f32 %v473, %v473
  %v494 = vsel %vm372, %v474, 0.0
  %495 = vadd.xlane.f32.xlu0 %v494
  %v496 = vpop.xlane.xlu0 %495
  %v497 = vsel %vm372, %v475, 0.0
  %498 = vadd.xlane.f32.xlu0 %v497
  %v499 = vpop.xlane.xlu0 %498
  %v500 = vsel %vm372, %v476, 0.0
  %501 = vadd.xlane.f32.xlu0 %v500
  %v502 = vpop.xlane.xlu0 %501
  %v503 = vsel %vm372, %v477, 0.0
  %504 = vadd.xlane.f32.xlu0 %v503
  %v505 = vpop.xlane.xlu0 %504
  %v506 = vsel %vm372, %v478, 0.0
  %507 = vadd.xlane.f32.xlu0 %v506
  %v508 = vpop.xlane.xlu0 %507
  %v509 = vsel %vm372, %v479, 0.0
  %510 = vadd.xlane.f32.xlu0 %v509
  %v511 = vpop.xlane.xlu0 %510
  %v512 = vsel %vm372, %v480, 0.0
  %513 = vadd.xlane.f32.xlu0 %v512
  %v514 = vpop.xlane.xlu0 %513
  %v515 = vsel %vm372, %v481, 0.0
  %516 = vadd.xlane.f32.xlu0 %v515
  %v517 = vpop.xlane.xlu0 %516
  %v518 = vsel %vm372, %v482, 0.0
  %519 = vadd.xlane.f32.xlu0 %v518
  %v520 = vpop.xlane.xlu0 %519
  %v521 = vsel %vm372, %v483, 0.0
  %522 = vadd.xlane.f32.xlu0 %v521
  %v523 = vpop.xlane.xlu0 %522
  %v524 = vsel %vm372, %v484, 0.0
  %525 = vadd.xlane.f32.xlu0 %v524
  %v526 = vpop.xlane.xlu0 %525
  %v527 = vsel %vm372, %v485, 0.0
  %528 = vadd.xlane.f32.xlu0 %v527
  %v529 = vpop.xlane.xlu0 %528
  %v530 = vsel %vm372, %v486, 0.0
  %531 = vadd.xlane.f32.xlu0 %v530
  %v532 = vpop.xlane.xlu0 %531
  %v533 = vsel %vm372, %v487, 0.0
  %534 = vadd.xlane.f32.xlu0 %v533
  %v535 = vpop.xlane.xlu0 %534
  %v536 = vsel %vm372, %v488, 0.0
  %537 = vadd.xlane.f32.xlu0 %v536
  %v538 = vpop.xlane.xlu0 %537
  %v539 = vsel %vm372, %v489, 0.0
  %540 = vadd.xlane.f32.xlu0 %v539
  %v541 = vpop.xlane.xlu0 %540
  %v542 = vsel %vm372, %v490, 0.0
  %543 = vadd.xlane.f32.xlu0 %v542
  %v544 = vpop.xlane.xlu0 %543
  %v545 = vsel %vm372, %v491, 0.0
  %546 = vadd.xlane.f32.xlu0 %v545
  %v547 = vpop.xlane.xlu0 %546
  %v548 = vsel %vm372, %v492, 0.0
  %549 = vadd.xlane.f32.xlu0 %v548
  %v550 = vpop.xlane.xlu0 %549
  %v551 = vsel %vm372, %v493, 0.0
  %552 = vadd.xlane.f32.xlu0 %v551
  %v553 = vpop.xlane.xlu0 %552
  %v554 = vmul.f32 %v496, %v433
  %v555 = vmul.f32 %v499, %v433
  %v556 = vmul.f32 %v502, %v433
  %v557 = vmul.f32 %v505, %v433
  %v558 = vmul.f32 %v508, %v433
  %v559 = vmul.f32 %v511, %v433
  %v560 = vmul.f32 %v514, %v433
  %v561 = vmul.f32 %v517, %v433
  %v562 = vmul.f32 %v520, %v433
  %v563 = vmul.f32 %v523, %v433
  %v564 = vmul.f32 %v526, %v433
  %v565 = vmul.f32 %v529, %v433
  %v566 = vmul.f32 %v532, %v433
  %v567 = vmul.f32 %v535, %v433
  %v568 = vmul.f32 %v538, %v433
  %v569 = vmul.f32 %v541, %v433
  %v570 = vmul.f32 %v544, %v433
  %v571 = vmul.f32 %v547, %v433
  %v572 = vmul.f32 %v550, %v433
  %v573 = vmul.f32 %v553, %v433
  %v574 = vadd.f32 %v554, 1e-05
  %v575 = vadd.f32 %v555, 1e-05
  %v576 = vadd.f32 %v556, 1e-05
  %v577 = vadd.f32 %v557, 1e-05
  %v578 = vadd.f32 %v558, 1e-05
  %v579 = vadd.f32 %v559, 1e-05
  %v580 = vadd.f32 %v560, 1e-05
  %v581 = vadd.f32 %v561, 1e-05
  %v582 = vadd.f32 %v562, 1e-05
  %v583 = vadd.f32 %v563, 1e-05
  %v584 = vadd.f32 %v564, 1e-05
  %v585 = vadd.f32 %v565, 1e-05
  %v586 = vadd.f32 %v566, 1e-05
  %v587 = vadd.f32 %v567, 1e-05
  %v588 = vadd.f32 %v568, 1e-05
  %v589 = vadd.f32 %v569, 1e-05
  %v590 = vadd.f32 %v570, 1e-05
  %v591 = vadd.f32 %v571, 1e-05
  %v592 = vadd.f32 %v572, 1e-05
  %v593 = vadd.f32 %v573, 1e-05
  %v594 = vrsqrt.pop %v574
  %v595 = vrsqrt.pop %v575
  %v596 = vrsqrt.pop %v576
  %v597 = vrsqrt.pop %v577
  %v598 = vrsqrt.pop %v578
  %v599 = vrsqrt.pop %v579
  %v600 = vrsqrt.pop %v580
  %v601 = vrsqrt.pop %v581
  %v602 = vrsqrt.pop %v582
  %v603 = vrsqrt.pop %v583
  %v604 = vrsqrt.pop %v584
  %v605 = vrsqrt.pop %v585
  %v606 = vrsqrt.pop %v586
  %v607 = vrsqrt.pop %v587
  %v608 = vrsqrt.pop %v588
  %v609 = vrsqrt.pop %v589
  %v610 = vrsqrt.pop %v590
  %v611 = vrsqrt.pop %v591
  %v612 = vrsqrt.pop %v592
  %v613 = vrsqrt.pop %v593
  %v614 = vmul.f32 %v454, %v594
  %v615 = vmul.f32 %v455, %v595
  %v616 = vmul.f32 %v456, %v596
  %v617 = vmul.f32 %v457, %v597
  %v618 = vmul.f32 %v458, %v598
  %v619 = vmul.f32 %v459, %v599
  %v620 = vmul.f32 %v460, %v600
  %v621 = vmul.f32 %v461, %v601
  %v622 = vmul.f32 %v462, %v602
  %v623 = vmul.f32 %v463, %v603
  %v624 = vmul.f32 %v464, %v604
  %v625 = vmul.f32 %v465, %v605
  %v626 = vmul.f32 %v466, %v606
  %v627 = vmul.f32 %v467, %v607
  %v628 = vmul.f32 %v468, %v608
  %v629 = vmul.f32 %v469, %v609
  %v630 = vmul.f32 %v470, %v610
  %v631 = vmul.f32 %v471, %v611
  %v632 = vmul.f32 %v472, %v612
  %v633 = vmul.f32 %v473, %v613
  %v634 = vlaneseq
  %v635 = vshrl.u32 %v634, 7
  %v636 = vsub.s32 0, %v635
  %v637 = vrot.slane %v370, %v636
  %v638 = vmul.f32 %v614, %v637
  %v639 = vmul.f32 %v615, %v637
  %v640 = vmul.f32 %v616, %v637
  %v641 = vmul.f32 %v617, %v637
  %v642 = vmul.f32 %v618, %v637
  %v643 = vmul.f32 %v619, %v637
  %v644 = vmul.f32 %v620, %v637
  %v645 = vmul.f32 %v621, %v637
  %v646 = vmul.f32 %v622, %v637
  %v647 = vmul.f32 %v623, %v637
  %v648 = vmul.f32 %v624, %v637
  %v649 = vmul.f32 %v625, %v637
  %v650 = vmul.f32 %v626, %v637
  %v651 = vmul.f32 %v627, %v637
  %v652 = vmul.f32 %v628, %v637
  %v653 = vmul.f32 %v629, %v637
  %v654 = vmul.f32 %v630, %v637
  %v655 = vmul.f32 %v631, %v637
  %v656 = vmul.f32 %v632, %v637
  %v657 = vmul.f32 %v633, %v637
  %v658 = vlaneseq
  %v659 = vshrl.u32 %v658, 7
  %v660 = vsub.s32 0, %v659
  %v661 = vrot.slane %v371, %v660
  %v662 = vadd.f32 %v638, %v661
  %v663 = vadd.f32 %v639, %v661
  %v664 = vadd.f32 %v640, %v661
  %v665 = vadd.f32 %v641, %v661
  %v666 = vadd.f32 %v642, %v661
  %v667 = vadd.f32 %v643, %v661
  %v668 = vadd.f32 %v644, %v661
  %v669 = vadd.f32 %v645, %v661
  %v670 = vadd.f32 %v646, %v661
  %v671 = vadd.f32 %v647, %v661
  %v672 = vadd.f32 %v648, %v661
  %v673 = vadd.f32 %v649, %v661
  %v674 = vadd.f32 %v650, %v661
  %v675 = vadd.f32 %v651, %v661
  %v676 = vadd.f32 %v652, %v661
  %v677 = vadd.f32 %v653, %v661
  %v678 = vadd.f32 %v654, %v661
  %v679 = vadd.f32 %v655, %v661
  %v680 = vadd.f32 %v656, %v661
  %v681 = vadd.f32 %v657, %v661
  %v682 = vld [vmem:[%s2 + $0x38] sm:$0xff]
  %v683 = vld [vmem:[%s2 + $0x40] sm:$0xff]
  %v684 = vld [vmem:[%s2 + $0x48] sm:$0xff]
  %v685 = vld [vmem:[%s2 + $0x50] sm:$0xff]
  %v686 = vld [vmem:[%s2 + $0x58] sm:$0xff]
  %v687 = vld [vmem:[%s2 + $0x60] sm:$0xff]
  %v688 = vld [vmem:[%s2 + $0x11] sm:$0x1]
  %v689 = vlaneseq
  %v690 = vshrl.u32 %v689, 7
  %v691 = vsub.s32 0, %v690
  %v692 = vrot.slane %v688, %v691
  %v694 = vsel %vm372, %v662, 0
  %v697 = vsel %vm372, %v663, 0
  %v700 = vsel %vm372, %v664, 0
  %v703 = vsel %vm372, %v665, 0
  %v706 = vsel %vm372, %v666, 0
  %v709 = vsel %vm372, %v667, 0
  %v712 = vsel %vm372, %v668, 0
  %v715 = vsel %vm372, %v669, 0
  %v718 = vsel %vm372, %v670, 0
  %v721 = vsel %vm372, %v671, 0
  %v724 = vsel %vm372, %v672, 0
  %v727 = vsel %vm372, %v673, 0
  %v730 = vsel %vm372, %v674, 0
  %v733 = vsel %vm372, %v675, 0
  %v736 = vsel %vm372, %v676, 0
  %v739 = vsel %vm372, %v677, 0
  %v742 = vsel %vm372, %v678, 0
  %v745 = vsel %vm372, %v679, 0
  %v748 = vsel %vm372, %v680, 0
  %v751 = vsel %vm372, %v681, 0
  %753 = vmatprep.subr.mxu0 0.0
  %754 = vmatpush1.msra.mxu0 %v682
  %755 = vmatprep.subr.mxu0 0.0
  %756 = vmatpush1.msra.mxu0 %v683
  %757 = vmatprep.subr.mxu0 0.0
  %758 = vmatpush1.msra.mxu0 %v684
  %759 = vmatprep.subr.mxu0 0.0
  %760 = vmatpush1.msra.mxu0 %v685
  %761 = vmatprep.subr.mxu0 0.0
  %762 = vmatpush1.msra.mxu0 %v686
  %763 = vmatprep.subr.mxu0 0.0
  %764 = vmatpush1.msra.mxu0 %v687
  %765 = vmatprep.subr.mxu0 0.0
  %766 = vmatpush1.msra.mxu0 0.0
  %767 = vmatprep.subr.mxu0 0.0
  %768 = vmatpush1.msra.mxu0 0.0
  %769 = vmatprep.subr.mxu0 0.0
  %770 = vmatpush1.msra.mxu0 0.0
  %771 = vmatprep.subr.mxu0 0.0
  %772 = vmatpush1.msra.mxu0 0.0
  %773 = vmatprep.subr.mxu0 0.0
  %774 = vmatpush1.msra.mxu0 0.0
  %775 = vmatprep.subr.mxu0 0.0
  %776 = vmatpush1.msra.mxu0 0.0
  %777 = vmatprep.subr.mxu0 0.0
  %778 = vmatpush1.msra.mxu0 0.0
  %779 = vmatprep.subr.mxu0 0.0
  %780 = vmatpush1.msra.mxu0 0.0
  %781 = vmatprep.subr.mxu0 0.0
  %782 = vmatpush1.msra.mxu0 0.0
  %783 = vmatprep.subr.mxu0 0.0
  %784 = vmatpush1.msra.mxu0 0.0
  %785 = vmatprep.subr.mxu0 0.0
  %786 = vmatpush1.msra.mxu0 0.0
  %787 = vmatprep.subr.mxu0 0.0
  %788 = vmatpush1.msra.mxu0 0.0
  %789 = vmatprep.subr.mxu0 0.0
  %790 = vmatpush1.msra.mxu0 0.0
  %791 = vmatprep.subr.mxu0 0.0
  %792 = vmatpush1.msra.mxu0 0.0
  %793 = vmatprep.subr.mxu0 0.0
  %794 = vmatpush1.msra.mxu0 0.0
  %795 = vmatprep.subr.mxu0 0.0
  %796 = vmatpush1.msra.mxu0 0.0
  %797 = vmatprep.subr.mxu0 0.0
  %798 = vmatpush1.msra.mxu0 0.0
  %799 = vmatprep.subr.mxu0 0.0
  %800 = vmatpush1.msra.mxu0 0.0
  %801 = vmatprep.subr.mxu0 0.0
  %802 = vmatpush1.msra.mxu0 0.0
  %803 = vmatprep.subr.mxu0 0.0
  %804 = vmatpush1.msra.mxu0 0.0
  %805 = vmatprep.subr.mxu0 0.0
  %806 = vmatpush1.msra.mxu0 0.0
  %807 = vmatprep.subr.mxu0 0.0
  %808 = vmatpush1.msra.mxu0 0.0
  %809 = vmatprep.subr.mxu0 0.0
  %810 = vmatpush1.msra.mxu0 0.0
  %811 = vmatprep.subr.mxu0 0.0
  %812 = vmatpush1.msra.mxu0 0.0
  %813 = vmatprep.subr.mxu0 0.0
  %814 = vmatpush1.msra.mxu0 0.0
  %815 = vmatprep.subr.mxu0 0.0
  %816 = vmatpush1.msra.mxu0 0.0
  %817 = vmatprep.mubr.f32.mxu0 0.0
  %818 = vmatmul.mubr.f32.gmra.mrb[0].mxu0 %v694
  %v819 = vpop.f32.mrb[0].mxu0
  %v820 = vadd.f32 %v692, %v819
  %v821 = vpop.f32.mrb[0].mxu0
  %822 = vmatprep.mubr.f32.mxu0 0.0
  %823 = vmatmul.mubr.f32.gmra.mrb[0].mxu0 %v697
  %v824 = vpop.f32.mrb[0].mxu0
  %v825 = vadd.f32 %v692, %v824
  %v826 = vpop.f32.mrb[0].mxu0
  %827 = vmatprep.mubr.f32.mxu0 0.0
  %828 = vmatmul.mubr.f32.gmra.mrb[0].mxu0 %v700
  %v829 = vpop.f32.mrb[0].mxu0
  %v830 = vadd.f32 %v692, %v829
  %v831 = vpop.f32.mrb[0].mxu0
  %832 = vmatprep.mubr.f32.mxu0 0.0
  %833 = vmatmul.mubr.f32.gmra.mrb[0].mxu0 %v703
  %v834 = vpop.f32.mrb[0].mxu0
  %v835 = vadd.f32 %v692, %v834
  %v836 = vpop.f32.mrb[0].mxu0
  %837 = vmatprep.mubr.f32.mxu0 0.0
  %838 = vmatmul.mubr.f32.gmra.mrb[0].mxu0 %v706
  %v839 = vpop.f32.mrb[0].mxu0
  %v840 = vadd.f32 %v692, %v839
  %v841 = vpop.f32.mrb[0].mxu0
  %842 = vmatprep.mubr.f32.mxu0 0.0
  %843 = vmatmul.mubr.f32.gmra.mrb[0].mxu0 %v709
  %v844 = vpop.f32.mrb[0].mxu0
  %v845 = vadd.f32 %v692, %v844
  %v846 = vpop.f32.mrb[0].mxu0
  %847 = vmatprep.mubr.f32.mxu0 0.0
  %848 = vmatmul.mubr.f32.gmra.mrb[0].mxu0 %v712
  %v849 = vpop.f32.mrb[0].mxu0
  %v850 = vadd.f32 %v692, %v849
  %v851 = vpop.f32.mrb[0].mxu0
  %852 = vmatprep.mubr.f32.mxu0 0.0
  %853 = vmatmul.mubr.f32.gmra.mrb[0].mxu0 %v715
  %v854 = vpop.f32.mrb[0].mxu0
  %v855 = vadd.f32 %v692, %v854
  %v856 = vpop.f32.mrb[0].mxu0
  %857 = vmatprep.mubr.f32.mxu0 0.0
  %858 = vmatmul.mubr.f32.gmra.mrb[0].mxu0 %v718
  %v859 = vpop.f32.mrb[0].mxu0
  %v860 = vadd.f32 %v692, %v859
  %v861 = vpop.f32.mrb[0].mxu0
  %862 = vmatprep.mubr.f32.mxu0 0.0
  %863 = vmatmul.mubr.f32.gmra.mrb[0].mxu0 %v721
  %v864 = vpop.f32.mrb[0].mxu0
  %v865 = vadd.f32 %v692, %v864
  %v866 = vpop.f32.mrb[0].mxu0
  %867 = vmatprep.mubr.f32.mxu0 0.0
  %868 = vmatmul.mubr.f32.gmra.mrb[0].mxu0 %v724
  %v869 = vpop.f32.mrb[0].mxu0
  %v870 = vadd.f32 %v692, %v869
  %v871 = vpop.f32.mrb[0].mxu0
  %872 = vmatprep.mubr.f32.mxu0 0.0
  %873 = vmatmul.mubr.f32.gmra.mrb[0].mxu0 %v727
  %v874 = vpop.f32.mrb[0].mxu0
  %v875 = vadd.f32 %v692, %v874
  %v876 = vpop.f32.mrb[0].mxu0
  %877 = vmatprep.mubr.f32.mxu0 0.0
  %878 = vmatmul.mubr.f32.gmra.mrb[0].mxu0 %v730
  %v879 = vpop.f32.mrb[0].mxu0
  %v880 = vadd.f32 %v692, %v879
  %v881 = vpop.f32.mrb[0].mxu0
  %882 = vmatprep.mubr.f32.mxu0 0.0
  %883 = vmatmul.mubr.f32.gmra.mrb[0].mxu0 %v733
  %v884 = vpop.f32.mrb[0].mxu0
  %v885 = vadd.f32 %v692, %v884
  %v886 = vpop.f32.mrb[0].mxu0
  %887 = vmatprep.mubr.f32.mxu0 0.0
  %888 = vmatmul.mubr.f32.gmra.mrb[0].mxu0 %v736
  %v889 = vpop.f32.mrb[0].mxu0
  %v890 = vadd.f32 %v692, %v889
  %v891 = vpop.f32.mrb[0].mxu0
  %892 = vmatprep.mubr.f32.mxu0 0.0
  %893 = vmatmul.mubr.f32.gmra.mrb[0].mxu0 %v739
  %v894 = vpop.f32.mrb[0].mxu0
  %v895 = vadd.f32 %v692, %v894
  %v896 = vpop.f32.mrb[0].mxu0
  %897 = vmatprep.mubr.f32.mxu0 0.0
  %898 = vmatmul.mubr.f32.gmra.mrb[0].mxu0 %v742
  %v899 = vpop.f32.mrb[0].mxu0
  %v900 = vadd.f32 %v692, %v899
  %v901 = vpop.f32.mrb[0].mxu0
  %902 = vmatprep.mubr.f32.mxu0 0.0
  %903 = vmatmul.mubr.f32.gmra.mrb[0].mxu0 %v745
  %v904 = vpop.f32.mrb[0].mxu0
  %v905 = vadd.f32 %v692, %v904
  %v906 = vpop.f32.mrb[0].mxu0
  %907 = vmatprep.mubr.f32.mxu0 0.0
  %908 = vmatmul.mubr.f32.gmra.mrb[0].mxu0 %v748
  %v909 = vpop.f32.mrb[0].mxu0
  %v910 = vadd.f32 %v692, %v909
  %v911 = vpop.f32.mrb[0].mxu0
  %912 = vmatprep.mubr.f32.mxu0 0.0
  %913 = vmatmul.mubr.f32.gmra.mrb[0].mxu0 %v751
  %v914 = vpop.f32.mrb[0].mxu0
  %v915 = vadd.f32 %v692, %v914
  %v916 = vpop.f32.mrb[0].mxu0
  %917 = vdwg.mxu0
  %v918 = vmul.f32 %v820, 0.5
  %v919 = vmul.f32 %v825, 0.5
  %v920 = vmul.f32 %v830, 0.5
  %v921 = vmul.f32 %v835, 0.5
  %v922 = vmul.f32 %v840, 0.5
  %v923 = vmul.f32 %v845, 0.5
  %v924 = vmul.f32 %v850, 0.5
  %v925 = vmul.f32 %v855, 0.5
  %v926 = vmul.f32 %v860, 0.5
  %v927 = vmul.f32 %v865, 0.5
  %v928 = vmul.f32 %v870, 0.5
  %v929 = vmul.f32 %v875, 0.5
  %v930 = vmul.f32 %v880, 0.5
  %v931 = vmul.f32 %v885, 0.5
  %v932 = vmul.f32 %v890, 0.5
  %v933 = vmul.f32 %v895, 0.5
  %v934 = vmul.f32 %v900, 0.5
  %v935 = vmul.f32 %v905, 0.5
  %v936 = vmul.f32 %v910, 0.5
  %v937 = vmul.f32 %v915, 0.5
  %v938 = vmul.f32 %v820, 0.044715
  %v939 = vmul.f32 %v825, 0.044715
  %v940 = vmul.f32 %v830, 0.044715
  %v941 = vmul.f32 %v835, 0.044715
  %v942 = vmul.f32 %v840, 0.044715
  %v943 = vmul.f32 %v845, 0.044715
  %v944 = vmul.f32 %v850, 0.044715
  %v945 = vmul.f32 %v855, 0.044715
  %v946 = vmul.f32 %v860, 0.044715
  %v947 = vmul.f32 %v865, 0.044715
  %v948 = vmul.f32 %v870, 0.044715
  %v949 = vmul.f32 %v875, 0.044715
  %v950 = vmul.f32 %v880, 0.044715
  %v951 = vmul.f32 %v885, 0.044715
  %v952 = vmul.f32 %v890, 0.044715
  %v953 = vmul.f32 %v895, 0.044715
  %v954 = vmul.f32 %v900, 0.044715
  %v955 = vmul.f32 %v905, 0.044715
  %v956 = vmul.f32 %v910, 0.044715
  %v957 = vmul.f32 %v915, 0.044715
  %v958 = vmul.f32 %v938, %v820
  %v959 = vmul.f32 %v939, %v825
  %v960 = vmul.f32 %v940, %v830
  %v961 = vmul.f32 %v941, %v835
  %v962 = vmul.f32 %v942, %v840
  %v963 = vmul.f32 %v943, %v845
  %v964 = vmul.f32 %v944, %v850
  %v965 = vmul.f32 %v945, %v855
  %v966 = vmul.f32 %v946, %v860
  %v967 = vmul.f32 %v947, %v865
  %v968 = vmul.f32 %v948, %v870
  %v969 = vmul.f32 %v949, %v875
  %v970 = vmul.f32 %v950, %v880
  %v971 = vmul.f32 %v951, %v885
  %v972 = vmul.f32 %v952, %v890
  %v973 = vmul.f32 %v953, %v895
  %v974 = vmul.f32 %v954, %v900
  %v975 = vmul.f32 %v955, %v905
  %v976 = vmul.f32 %v956, %v910
  %v977 = vmul.f32 %v957, %v915
  %v978 = vmul.f32 %v958, %v820
  %v979 = vmul.f32 %v959, %v825
  %v980 = vmul.f32 %v960, %v830
  %v981 = vmul.f32 %v961, %v835
  %v982 = vmul.f32 %v962, %v840
  %v983 = vmul.f32 %v963, %v845
  %v984 = vmul.f32 %v964, %v850
  %v985 = vmul.f32 %v965, %v855
  %v986 = vmul.f32 %v966, %v860
  %v987 = vmul.f32 %v967, %v865
  %v988 = vmul.f32 %v968, %v870
  %v989 = vmul.f32 %v969, %v875
  %v990 = vmul.f32 %v970, %v880
  %v991 = vmul.f32 %v971, %v885
  %v992 = vmul.f32 %v972, %v890
  %v993 = vmul.f32 %v973, %v895
  %v994 = vmul.f32 %v974, %v900
  %v995 = vmul.f32 %v975, %v905
  %v996 = vmul.f32 %v976, %v910
  %v997 = vmul.f32 %v977, %v915
  %v998 = vadd.f32 %v820, %v978
  %v999 = vadd.f32 %v825, %v979
  %v1000 = vadd.f32 %v830, %v980
  %v1001 = vadd.f32 %v835, %v981
  %v1002 = vadd.f32 %v840, %v982
  %v1003 = vadd.f32 %v845, %v983
  %v1004 = vadd.f32 %v850, %v984
  %v1005 = vadd.f32 %v855, %v985
  %v1006 = vadd.f32 %v860, %v986
  %v1007 = vadd.f32 %v865, %v987
  %v1008 = vadd.f32 %v870, %v988
  %v1009 = vadd.f32 %v875, %v989
  %v1010 = vadd.f32 %v880, %v990
  %v1011 = vadd.f32 %v885, %v991
  %v1012 = vadd.f32 %v890, %v992
  %v1013 = vadd.f32 %v895, %v993
  %v1014 = vadd.f32 %v900, %v994
  %v1015 = vadd.f32 %v905, %v995
  %v1016 = vadd.f32 %v910, %v996
  %v1017 = vadd.f32 %v915, %v997
  %v1018 = vmul.f32 %v998, 0.7978846
  %v1019 = vmul.f32 %v999, 0.7978846
  %v1020 = vmul.f32 %v1000, 0.7978846
  %v1021 = vmul.f32 %v1001, 0.7978846
  %v1022 = vmul.f32 %v1002, 0.7978846
  %v1023 = vmul.f32 %v1003, 0.7978846
  %v1024 = vmul.f32 %v1004, 0.7978846
  %v1025 = vmul.f32 %v1005, 0.7978846
  %v1026 = vmul.f32 %v1006, 0.7978846
  %v1027 = vmul.f32 %v1007, 0.7978846
  %v1028 = vmul.f32 %v1008, 0.7978846
  %v1029 = vmul.f32 %v1009, 0.7978846
  %v1030 = vmul.f32 %v1010, 0.7978846
  %v1031 = vmul.f32 %v1011, 0.7978846
  %v1032 = vmul.f32 %v1012, 0.7978846
  %v1033 = vmul.f32 %v1013, 0.7978846
  %v1034 = vmul.f32 %v1014, 0.7978846
  %v1035 = vmul.f32 %v1015, 0.7978846
  %v1036 = vmul.f32 %v1016, 0.7978846
  %v1037 = vmul.f32 %v1017, 0.7978846
  %v1038 = vtanh.pop %v1018
  %v1039 = vtanh.pop %v1019
  %v1040 = vtanh.pop %v1020
  %v1041 = vtanh.pop %v1021
  %v1042 = vtanh.pop %v1022
  %v1043 = vtanh.pop %v1023
  %v1044 = vtanh.pop %v1024
  %v1045 = vtanh.pop %v1025
  %v1046 = vtanh.pop %v1026
  %v1047 = vtanh.pop %v1027
  %v1048 = vtanh.pop %v1028
  %v1049 = vtanh.pop %v1029
  %v1050 = vtanh.pop %v1030
  %v1051 = vtanh.pop %v1031
  %v1052 = vtanh.pop %v1032
  %v1053 = vtanh.pop %v1033
  %v1054 = vtanh.pop %v1034
  %v1055 = vtanh.pop %v1035
  %v1056 = vtanh.pop %v1036
  %v1057 = vtanh.pop %v1037
  %v1058 = vadd.f32 %v1038, 1.0
  %v1059 = vadd.f32 %v1039, 1.0
  %v1060 = vadd.f32 %v1040, 1.0
  %v1061 = vadd.f32 %v1041, 1.0
  %v1062 = vadd.f32 %v1042, 1.0
  %v1063 = vadd.f32 %v1043, 1.0
  %v1064 = vadd.f32 %v1044, 1.0
  %v1065 = vadd.f32 %v1045, 1.0
  %v1066 = vadd.f32 %v1046, 1.0
  %v1067 = vadd.f32 %v1047, 1.0
  %v1068 = vadd.f32 %v1048, 1.0
  %v1069 = vadd.f32 %v1049, 1.0
  %v1070 = vadd.f32 %v1050, 1.0
  %v1071 = vadd.f32 %v1051, 1.0
  %v1072 = vadd.f32 %v1052, 1.0
  %v1073 = vadd.f32 %v1053, 1.0
  %v1074 = vadd.f32 %v1054, 1.0
  %v1075 = vadd.f32 %v1055, 1.0
  %v1076 = vadd.f32 %v1056, 1.0
  %v1077 = vadd.f32 %v1057, 1.0
  %v1078 = vmul.f32 %v918, %v1058
  %v1079 = vmul.f32 %v919, %v1059
  %v1080 = vmul.f32 %v920, %v1060
  %v1081 = vmul.f32 %v921, %v1061
  %v1082 = vmul.f32 %v922, %v1062
  %v1083 = vmul.f32 %v923, %v1063
  %v1084 = vmul.f32 %v924, %v1064
  %v1085 = vmul.f32 %v925, %v1065
  %v1086 = vmul.f32 %v926, %v1066
  %v1087 = vmul.f32 %v927, %v1067
  %v1088 = vmul.f32 %v928, %v1068
  %v1089 = vmul.f32 %v929, %v1069
  %v1090 = vmul.f32 %v930, %v1070
  %v1091 = vmul.f32 %v931, %v1071
  %v1092 = vmul.f32 %v932, %v1072
  %v1093 = vmul.f32 %v933, %v1073
  %v1094 = vmul.f32 %v934, %v1074
  %v1095 = vmul.f32 %v935, %v1075
  %v1096 = vmul.f32 %v936, %v1076
  %v1097 = vmul.f32 %v937, %v1077
  %v1098 = vld [vmem:[%s2 + $0x6] sm:$0x1]
  %v1099 = vld [vmem:[%s2 + $0x7] sm:$0x1]
  %v1100 = vsel %vm21, %v1078, 0.0
  %1101 = vadd.xlane.f32.xlu0 %v1100
  %v1102 = vpop.xlane.xlu0 %1101
  %v1103 = vsel %vm21, %v1079, 0.0
  %1104 = vadd.xlane.f32.xlu0 %v1103
  %v1105 = vpop.xlane.xlu0 %1104
  %v1106 = vsel %vm21, %v1080, 0.0
  %1107 = vadd.xlane.f32.xlu0 %v1106
  %v1108 = vpop.xlane.xlu0 %1107
  %v1109 = vsel %vm21, %v1081, 0.0
  %1110 = vadd.xlane.f32.xlu0 %v1109
  %v1111 = vpop.xlane.xlu0 %1110
  %v1112 = vsel %vm21, %v1082, 0.0
  %1113 = vadd.xlane.f32.xlu0 %v1112
  %v1114 = vpop.xlane.xlu0 %1113
  %v1115 = vsel %vm21, %v1083, 0.0
  %1116 = vadd.xlane.f32.xlu0 %v1115
  %v1117 = vpop.xlane.xlu0 %1116
  %v1118 = vsel %vm21, %v1084, 0.0
  %1119 = vadd.xlane.f32.xlu0 %v1118
  %v1120 = vpop.xlane.xlu0 %1119
  %v1121 = vsel %vm21, %v1085, 0.0
  %1122 = vadd.xlane.f32.xlu0 %v1121
  %v1123 = vpop.xlane.xlu0 %1122
  %v1124 = vsel %vm21, %v1086, 0.0
  %1125 = vadd.xlane.f32.xlu0 %v1124
  %v1126 = vpop.xlane.xlu0 %1125
  %v1127 = vsel %vm21, %v1087, 0.0
  %1128 = vadd.xlane.f32.xlu0 %v1127
  %v1129 = vpop.xlane.xlu0 %1128
  %v1130 = vsel %vm21, %v1088, 0.0
  %1131 = vadd.xlane.f32.xlu0 %v1130
  %v1132 = vpop.xlane.xlu0 %1131
  %v1133 = vsel %vm21, %v1089, 0.0
  %1134 = vadd.xlane.f32.xlu0 %v1133
  %v1135 = vpop.xlane.xlu0 %1134
  %v1136 = vsel %vm21, %v1090, 0.0
  %1137 = vadd.xlane.f32.xlu0 %v1136
  %v1138 = vpop.xlane.xlu0 %1137
  %v1139 = vsel %vm21, %v1091, 0.0
  %1140 = vadd.xlane.f32.xlu0 %v1139
  %v1141 = vpop.xlane.xlu0 %1140
  %v1142 = vsel %vm21, %v1092, 0.0
  %1143 = vadd.xlane.f32.xlu0 %v1142
  %v1144 = vpop.xlane.xlu0 %1143
  %v1145 = vsel %vm21, %v1093, 0.0
  %1146 = vadd.xlane.f32.xlu0 %v1145
  %v1147 = vpop.xlane.xlu0 %1146
  %v1148 = vsel %vm21, %v1094, 0.0
  %1149 = vadd.xlane.f32.xlu0 %v1148
  %v1150 = vpop.xlane.xlu0 %1149
  %v1151 = vsel %vm21, %v1095, 0.0
  %1152 = vadd.xlane.f32.xlu0 %v1151
  %v1153 = vpop.xlane.xlu0 %1152
  %v1154 = vsel %vm21, %v1096, 0.0
  %1155 = vadd.xlane.f32.xlu0 %v1154
  %v1156 = vpop.xlane.xlu0 %1155
  %v1157 = vsel %vm21, %v1097, 0.0
  %1158 = vadd.xlane.f32.xlu0 %v1157
  %v1159 = vpop.xlane.xlu0 %1158
  %v1160 = vmul.f32 %v1102, %v37
  %v1161 = vmul.f32 %v1105, %v37
  %v1162 = vmul.f32 %v1108, %v37
  %v1163 = vmul.f32 %v1111, %v37
  %v1164 = vmul.f32 %v1114, %v37
  %v1165 = vmul.f32 %v1117, %v37
  %v1166 = vmul.f32 %v1120, %v37
  %v1167 = vmul.f32 %v1123, %v37
  %v1168 = vmul.f32 %v1126, %v37
  %v1169 = vmul.f32 %v1129, %v37
  %v1170 = vmul.f32 %v1132, %v37
  %v1171 = vmul.f32 %v1135, %v37
  %v1172 = vmul.f32 %v1138, %v37
  %v1173 = vmul.f32 %v1141, %v37
  %v1174 = vmul.f32 %v1144, %v37
  %v1175 = vmul.f32 %v1147, %v37
  %v1176 = vmul.f32 %v1150, %v37
  %v1177 = vmul.f32 %v1153, %v37
  %v1178 = vmul.f32 %v1156, %v37
  %v1179 = vmul.f32 %v1159, %v37
  %v1180 = vsub.f32 %v1078, %v1160
  %v1181 = vsub.f32 %v1079, %v1161
  %v1182 = vsub.f32 %v1080, %v1162
  %v1183 = vsub.f32 %v1081, %v1163
  %v1184 = vsub.f32 %v1082, %v1164
  %v1185 = vsub.f32 %v1083, %v1165
  %v1186 = vsub.f32 %v1084, %v1166
  %v1187 = vsub.f32 %v1085, %v1167
  %v1188 = vsub.f32 %v1086, %v1168
  %v1189 = vsub.f32 %v1087, %v1169
  %v1190 = vsub.f32 %v1088, %v1170
  %v1191 = vsub.f32 %v1089, %v1171
  %v1192 = vsub.f32 %v1090, %v1172
  %v1193 = vsub.f32 %v1091, %v1173
  %v1194 = vsub.f32 %v1092, %v1174
  %v1195 = vsub.f32 %v1093, %v1175
  %v1196 = vsub.f32 %v1094, %v1176
  %v1197 = vsub.f32 %v1095, %v1177
  %v1198 = vsub.f32 %v1096, %v1178
  %v1199 = vsub.f32 %v1097, %v1179
  %v1200 = vmul.f32 %v1180, %v1180
  %v1201 = vmul.f32 %v1181, %v1181
  %v1202 = vmul.f32 %v1182, %v1182
  %v1203 = vmul.f32 %v1183, %v1183
  %v1204 = vmul.f32 %v1184, %v1184
  %v1205 = vmul.f32 %v1185, %v1185
  %v1206 = vmul.f32 %v1186, %v1186
  %v1207 = vmul.f32 %v1187, %v1187
  %v1208 = vmul.f32 %v1188, %v1188
  %v1209 = vmul.f32 %v1189, %v1189
  %v1210 = vmul.f32 %v1190, %v1190
  %v1211 = vmul.f32 %v1191, %v1191
  %v1212 = vmul.f32 %v1192, %v1192
  %v1213 = vmul.f32 %v1193, %v1193
  %v1214 = vmul.f32 %v1194, %v1194
  %v1215 = vmul.f32 %v1195, %v1195
  %v1216 = vmul.f32 %v1196, %v1196
  %v1217 = vmul.f32 %v1197, %v1197
  %v1218 = vmul.f32 %v1198, %v1198
  %v1219 = vmul.f32 %v1199, %v1199
  %v1220 = vsel %vm21, %v1200, 0.0
  %1221 = vadd.xlane.f32.xlu0 %v1220
  %v1222 = vpop.xlane.xlu0 %1221
  %v1223 = vsel %vm21, %v1201, 0.0
  %1224 = vadd.xlane.f32.xlu0 %v1223
  %v1225 = vpop.xlane.xlu0 %1224
  %v1226 = vsel %vm21, %v1202, 0.0
  %1227 = vadd.xlane.f32.xlu0 %v1226
  %v1228 = vpop.xlane.xlu0 %1227
  %v1229 = vsel %vm21, %v1203, 0.0
  %1230 = vadd.xlane.f32.xlu0 %v1229
  %v1231 = vpop.xlane.xlu0 %1230
  %v1232 = vsel %vm21, %v1204, 0.0
  %1233 = vadd.xlane.f32.xlu0 %v1232
  %v1234 = vpop.xlane.xlu0 %1233
  %v1235 = vsel %vm21, %v1205, 0.0
  %1236 = vadd.xlane.f32.xlu0 %v1235
  %v1237 = vpop.xlane.xlu0 %1236
  %v1238 = vsel %vm21, %v1206, 0.0
  %1239 = vadd.xlane.f32.xlu0 %v1238
  %v1240 = vpop.xlane.xlu0 %1239
  %v1241 = vsel %vm21, %v1207, 0.0
  %1242 = vadd.xlane.f32.xlu0 %v1241
  %v1243 = vpop.xlane.xlu0 %1242
  %v1244 = vsel %vm21, %v1208, 0.0
  %1245 = vadd.xlane.f32.xlu0 %v1244
  %v1246 = vpop.xlane.xlu0 %1245
  %v1247 = vsel %vm21, %v1209, 0.0
  %1248 = vadd.xlane.f32.xlu0 %v1247
  %v1249 = vpop.xlane.xlu0 %1248
  %v1250 = vsel %vm21, %v1210, 0.0
  %1251 = vadd.xlane.f32.xlu0 %v1250
  %v1252 = vpop.xlane.xlu0 %1251
  %v1253 = vsel %vm21, %v1211, 0.0
  %1254 = vadd.xlane.f32.xlu0 %v1253
  %v1255 = vpop.xlane.xlu0 %1254
  %v1256 = vsel %vm21, %v1212, 0.0
  %1257 = vadd.xlane.f32.xlu0 %v1256
  %v1258 = vpop.xlane.xlu0 %1257
  %v1259 = vsel %vm21, %v1213, 0.0
  %1260 = vadd.xlane.f32.xlu0 %v1259
  %v1261 = vpop.xlane.xlu0 %1260
  %v1262 = vsel %vm21, %v1214, 0.0
  %1263 = vadd.xlane.f32.xlu0 %v1262
  %v1264 = vpop.xlane.xlu0 %1263
  %v1265 = vsel %vm21, %v1215, 0.0
  %1266 = vadd.xlane.f32.xlu0 %v1265
  %v1267 = vpop.xlane.xlu0 %1266
  %v1268 = vsel %vm21, %v1216, 0.0
  %1269 = vadd.xlane.f32.xlu0 %v1268
  %v1270 = vpop.xlane.xlu0 %1269
  %v1271 = vsel %vm21, %v1217, 0.0
  %1272 = vadd.xlane.f32.xlu0 %v1271
  %v1273 = vpop.xlane.xlu0 %1272
  %v1274 = vsel %vm21, %v1218, 0.0
  %1275 = vadd.xlane.f32.xlu0 %v1274
  %v1276 = vpop.xlane.xlu0 %1275
  %v1277 = vsel %vm21, %v1219, 0.0
  %1278 = vadd.xlane.f32.xlu0 %v1277
  %v1279 = vpop.xlane.xlu0 %1278
  %v1280 = vmul.f32 %v1222, %v37
  %v1281 = vmul.f32 %v1225, %v37
  %v1282 = vmul.f32 %v1228, %v37
  %v1283 = vmul.f32 %v1231, %v37
  %v1284 = vmul.f32 %v1234, %v37
  %v1285 = vmul.f32 %v1237, %v37
  %v1286 = vmul.f32 %v1240, %v37
  %v1287 = vmul.f32 %v1243, %v37
  %v1288 = vmul.f32 %v1246, %v37
  %v1289 = vmul.f32 %v1249, %v37
  %v1290 = vmul.f32 %v1252, %v37
  %v1291 = vmul.f32 %v1255, %v37
  %v1292 = vmul.f32 %v1258, %v37
  %v1293 = vmul.f32 %v1261, %v37
  %v1294 = vmul.f32 %v1264, %v37
  %v1295 = vmul.f32 %v1267, %v37
  %v1296 = vmul.f32 %v1270, %v37
  %v1297 = vmul.f32 %v1273, %v37
  %v1298 = vmul.f32 %v1276, %v37
  %v1299 = vmul.f32 %v1279, %v37
  %v1300 = vadd.f32 %v1280, 1e-05
  %v1301 = vadd.f32 %v1281, 1e-05
  %v1302 = vadd.f32 %v1282, 1e-05
  %v1303 = vadd.f32 %v1283, 1e-05
  %v1304 = vadd.f32 %v1284, 1e-05
  %v1305 = vadd.f32 %v1285, 1e-05
  %v1306 = vadd.f32 %v1286, 1e-05
  %v1307 = vadd.f32 %v1287, 1e-05
  %v1308 = vadd.f32 %v1288, 1e-05
  %v1309 = vadd.f32 %v1289, 1e-05
  %v1310 = vadd.f32 %v1290, 1e-05
  %v1311 = vadd.f32 %v1291, 1e-05
  %v1312 = vadd.f32 %v1292, 1e-05
  %v1313 = vadd.f32 %v1293, 1e-05
  %v1314 = vadd.f32 %v1294, 1e-05
  %v1315 = vadd.f32 %v1295, 1e-05
  %v1316 = vadd.f32 %v1296, 1e-05
  %v1317 = vadd.f32 %v1297, 1e-05
  %v1318 = vadd.f32 %v1298, 1e-05
  %v1319 = vadd.f32 %v1299, 1e-05
  %v1320 = vrsqrt.pop %v1300
  %v1321 = vrsqrt.pop %v1301
  %v1322 = vrsqrt.pop %v1302
  %v1323 = vrsqrt.pop %v1303
  %v1324 = vrsqrt.pop %v1304
  %v1325 = vrsqrt.pop %v1305
  %v1326 = vrsqrt.pop %v1306
  %v1327 = vrsqrt.pop %v1307
  %v1328 = vrsqrt.pop %v1308
  %v1329 = vrsqrt.pop %v1309
  %v1330 = vrsqrt.pop %v1310
  %v1331 = vrsqrt.pop %v1311
  %v1332 = vrsqrt.pop %v1312
  %v1333 = vrsqrt.pop %v1313
  %v1334 = vrsqrt.pop %v1314
  %v1335 = vrsqrt.pop %v1315
  %v1336 = vrsqrt.pop %v1316
  %v1337 = vrsqrt.pop %v1317
  %v1338 = vrsqrt.pop %v1318
  %v1339 = vrsqrt.pop %v1319
  %v1340 = vmul.f32 %v1180, %v1320
  %v1341 = vmul.f32 %v1181, %v1321
  %v1342 = vmul.f32 %v1182, %v1322
  %v1343 = vmul.f32 %v1183, %v1323
  %v1344 = vmul.f32 %v1184, %v1324
  %v1345 = vmul.f32 %v1185, %v1325
  %v1346 = vmul.f32 %v1186, %v1326
  %v1347 = vmul.f32 %v1187, %v1327
  %v1348 = vmul.f32 %v1188, %v1328
  %v1349 = vmul.f32 %v1189, %v1329
  %v1350 = vmul.f32 %v1190, %v1330
  %v1351 = vmul.f32 %v1191, %v1331
  %v1352 = vmul.f32 %v1192, %v1332
  %v1353 = vmul.f32 %v1193, %v1333
  %v1354 = vmul.f32 %v1194, %v1334
  %v1355 = vmul.f32 %v1195, %v1335
  %v1356 = vmul.f32 %v1196, %v1336
  %v1357 = vmul.f32 %v1197, %v1337
  %v1358 = vmul.f32 %v1198, %v1338
  %v1359 = vmul.f32 %v1199, %v1339
  %v1360 = vlaneseq
  %v1361 = vshrl.u32 %v1360, 7
  %v1362 = vsub.s32 0, %v1361
  %v1363 = vrot.slane %v1098, %v1362
  %v1364 = vmul.f32 %v1340, %v1363
  %v1365 = vmul.f32 %v1341, %v1363
  %v1366 = vmul.f32 %v1342, %v1363
  %v1367 = vmul.f32 %v1343, %v1363
  %v1368 = vmul.f32 %v1344, %v1363
  %v1369 = vmul.f32 %v1345, %v1363
  %v1370 = vmul.f32 %v1346, %v1363
  %v1371 = vmul.f32 %v1347, %v1363
  %v1372 = vmul.f32 %v1348, %v1363
  %v1373 = vmul.f32 %v1349, %v1363
  %v1374 = vmul.f32 %v1350, %v1363
  %v1375 = vmul.f32 %v1351, %v1363
  %v1376 = vmul.f32 %v1352, %v1363
  %v1377 = vmul.f32 %v1353, %v1363
  %v1378 = vmul.f32 %v1354, %v1363
  %v1379 = vmul.f32 %v1355, %v1363
  %v1380 = vmul.f32 %v1356, %v1363
  %v1381 = vmul.f32 %v1357, %v1363
  %v1382 = vmul.f32 %v1358, %v1363
  %v1383 = vmul.f32 %v1359, %v1363
  %v1384 = vlaneseq
  %v1385 = vshrl.u32 %v1384, 7
  %v1386 = vsub.s32 0, %v1385
  %v1387 = vrot.slane %v1099, %v1386
  %v1388 = vadd.f32 %v1364, %v1387
  %v1389 = vadd.f32 %v1365, %v1387
  %v1390 = vadd.f32 %v1366, %v1387
  %v1391 = vadd.f32 %v1367, %v1387
  %v1392 = vadd.f32 %v1368, %v1387
  %v1393 = vadd.f32 %v1369, %v1387
  %v1394 = vadd.f32 %v1370, %v1387
  %v1395 = vadd.f32 %v1371, %v1387
  %v1396 = vadd.f32 %v1372, %v1387
  %v1397 = vadd.f32 %v1373, %v1387
  %v1398 = vadd.f32 %v1374, %v1387
  %v1399 = vadd.f32 %v1375, %v1387
  %v1400 = vadd.f32 %v1376, %v1387
  %v1401 = vadd.f32 %v1377, %v1387
  %v1402 = vadd.f32 %v1378, %v1387
  %v1403 = vadd.f32 %v1379, %v1387
  %v1404 = vadd.f32 %v1380, %v1387
  %v1405 = vadd.f32 %v1381, %v1387
  %v1406 = vadd.f32 %v1382, %v1387
  %v1407 = vadd.f32 %v1383, %v1387
  %v1408 = vld [vmem:[%s2 + $0xe8] sm:$0xff]
  %v1409 = vld [vmem:[%s2 + $0xf0] sm:$0xff]
  %v1410 = vld [vmem:[%s2 + $0xf8] sm:$0xff]
  %v1411 = vld [vmem:[%s2 + $0x100] sm:$0xff]
  %v1412 = vld [vmem:[%s2 + $0x12] sm:$0x1]
  %v1413 = vlaneseq
  %v1414 = vshrl.u32 %v1413, 7
  %v1415 = vsub.s32 0, %v1414
  %v1416 = vrot.slane %v1412, %v1415
  %v1418 = vsel %vm21, %v345, 0
  %v1421 = vsel %vm21, %v346, 0
  %v1424 = vsel %vm21, %v347, 0
  %v1427 = vsel %vm21, %v348, 0
  %v1430 = vsel %vm21, %v349, 0
  %1432 = vmatprep.subr.mxu0 0.0
  %1433 = vmatpush1.msra.mxu0 %v1408
  %1434 = vmatprep.subr.mxu0 0.0
  %1435 = vmatpush1.msra.mxu0 %v1409
  %1436 = vmatprep.subr.mxu0 0.0
  %1437 = vmatpush1.msra.mxu0 %v1410
  %1438 = vmatprep.subr.mxu0 0.0
  %1439 = vmatpush1.msra.mxu0 %v1411
  %1440 = vmatprep.subr.mxu0 0.0
  %1441 = vmatpush1.msra.mxu0 0.0
  %1442 = vmatprep.subr.mxu0 0.0
  %1443 = vmatpush1.msra.mxu0 0.0
  %1444 = vmatprep.subr.mxu0 0.0
  %1445 = vmatpush1.msra.mxu0 0.0
  %1446 = vmatprep.subr.mxu0 0.0
  %1447 = vmatpush1.msra.mxu0 0.0
  %1448 = vmatprep.subr.mxu0 0.0
  %1449 = vmatpush1.msra.mxu0 0.0
  %1450 = vmatprep.subr.mxu0 0.0
  %1451 = vmatpush1.msra.mxu0 0.0
  %1452 = vmatprep.subr.mxu0 0.0
  %1453 = vmatpush1.msra.mxu0 0.0
  %1454 = vmatprep.subr.mxu0 0.0
  %1455 = vmatpush1.msra.mxu0 0.0
  %1456 = vmatprep.subr.mxu0 0.0
  %1457 = vmatpush1.msra.mxu0 0.0
  %1458 = vmatprep.subr.mxu0 0.0
  %1459 = vmatpush1.msra.mxu0 0.0
  %1460 = vmatprep.subr.mxu0 0.0
  %1461 = vmatpush1.msra.mxu0 0.0
  %1462 = vmatprep.subr.mxu0 0.0
  %1463 = vmatpush1.msra.mxu0 0.0
  %1464 = vmatprep.subr.mxu0 0.0
  %1465 = vmatpush1.msra.mxu0 0.0
  %1466 = vmatprep.subr.mxu0 0.0
  %1467 = vmatpush1.msra.mxu0 0.0
  %1468 = vmatprep.subr.mxu0 0.0
  %1469 = vmatpush1.msra.mxu0 0.0
  %1470 = vmatprep.subr.mxu0 0.0
  %1471 = vmatpush1.msra.mxu0 0.0
  %1472 = vmatprep.subr.mxu0 0.0
  %1473 = vmatpush1.msra.mxu0 0.0
  %1474 = vmatprep.subr.mxu0 0.0
  %1475 = vmatpush1.msra.mxu0 0.0
  %1476 = vmatprep.subr.mxu0 0.0
  %1477 = vmatpush1.msra.mxu0 0.0
  %1478 = vmatprep.subr.mxu0 0.0
  %1479 = vmatpush1.msra.mxu0 0.0
  %1480 = vmatprep.subr.mxu0 0.0
  %1481 = vmatpush1.msra.mxu0 0.0
  %1482 = vmatprep.subr.mxu0 0.0
  %1483 = vmatpush1.msra.mxu0 0.0
  %1484 = vmatprep.subr.mxu0 0.0
  %1485 = vmatpush1.msra.mxu0 0.0
  %1486 = vmatprep.subr.mxu0 0.0
  %1487 = vmatpush1.msra.mxu0 0.0
  %1488 = vmatprep.subr.mxu0 0.0
  %1489 = vmatpush1.msra.mxu0 0.0
  %1490 = vmatprep.subr.mxu0 0.0
  %1491 = vmatpush1.msra.mxu0 0.0
  %1492 = vmatprep.subr.mxu0 0.0
  %1493 = vmatpush1.msra.mxu0 0.0
  %1494 = vmatprep.subr.mxu0 0.0
  %1495 = vmatpush1.msra.mxu0 0.0
  %1496 = vmatprep.mubr.f32.mxu0 0.0
  %1497 = vmatmul.mubr.f32.gmra.mrb[0].mxu0 %v1418
  %v1498 = vpop.f32.mrb[0].mxu0
  %v1499 = vadd.f32 %v1416, %v1498
  %v1500 = vpop.f32.mrb[0].mxu0
  %1501 = vmatprep.mubr.f32.mxu0 0.0
  %1502 = vmatmul.mubr.f32.gmra.mrb[0].mxu0 %v1421
  %v1503 = vpop.f32.mrb[0].mxu0
  %v1504 = vadd.f32 %v1416, %v1503
  %v1505 = vpop.f32.mrb[0].mxu0
  %1506 = vmatprep.mubr.f32.mxu0 0.0
  %1507 = vmatmul.mubr.f32.gmra.mrb[0].mxu0 %v1424
  %v1508 = vpop.f32.mrb[0].mxu0
  %v1509 = vadd.f32 %v1416, %v1508
  %v1510 = vpop.f32.mrb[0].mxu0
  %1511 = vmatprep.mubr.f32.mxu0 0.0
  %1512 = vmatmul.mubr.f32.gmra.mrb[0].mxu0 %v1427
  %v1513 = vpop.f32.mrb[0].mxu0
  %v1514 = vadd.f32 %v1416, %v1513
  %v1515 = vpop.f32.mrb[0].mxu0
  %1516 = vmatprep.mubr.f32.mxu0 0.0
  %1517 = vmatmul.mubr.f32.gmra.mrb[0].mxu0 %v1430
  %v1518 = vpop.f32.mrb[0].mxu0
  %v1519 = vadd.f32 %v1416, %v1518
  %v1520 = vpop.f32.mrb[0].mxu0
  %1521 = vdwg.mxu0
  %v1522 = vld [vmem:[%s2 + $0x68] sm:$0xff]
  %v1523 = vld [vmem:[%s2 + $0x70] sm:$0xff]
  %v1524 = vld [vmem:[%s2 + $0x78] sm:$0xff]
  %v1525 = vld [vmem:[%s2 + $0x80] sm:$0xff]
  %v1527 = vsel %vm21, %v1388, 0
  %v1530 = vsel %vm21, %v1389, 0
  %v1533 = vsel %vm21, %v1390, 0
  %v1536 = vsel %vm21, %v1391, 0
  %v1539 = vsel %vm21, %v1392, 0
  %1541 = vmatprep.subr.mxu0 0.0
  %1542 = vmatpush1.msra.mxu0 %v1522
  %1543 = vmatprep.subr.mxu0 0.0
  %1544 = vmatpush1.msra.mxu0 %v1523
  %1545 = vmatprep.subr.mxu0 0.0
  %1546 = vmatpush1.msra.mxu0 %v1524
  %1547 = vmatprep.subr.mxu0 0.0
  %1548 = vmatpush1.msra.mxu0 %v1525
  %1549 = vmatprep.subr.mxu0 0.0
  %1550 = vmatpush1.msra.mxu0 0.0
  %1551 = vmatprep.subr.mxu0 0.0
  %1552 = vmatpush1.msra.mxu0 0.0
  %1553 = vmatprep.subr.mxu0 0.0
  %1554 = vmatpush1.msra.mxu0 0.0
  %1555 = vmatprep.subr.mxu0 0.0
  %1556 = vmatpush1.msra.mxu0 0.0
  %1557 = vmatprep.subr.mxu0 0.0
  %1558 = vmatpush1.msra.mxu0 0.0
  %1559 = vmatprep.subr.mxu0 0.0
  %1560 = vmatpush1.msra.mxu0 0.0
  %1561 = vmatprep.subr.mxu0 0.0
  %1562 = vmatpush1.msra.mxu0 0.0
  %1563 = vmatprep.subr.mxu0 0.0
  %1564 = vmatpush1.msra.mxu0 0.0
  %1565 = vmatprep.subr.mxu0 0.0
  %1566 = vmatpush1.msra.mxu0 0.0
  %1567 = vmatprep.subr.mxu0 0.0
  %1568 = vmatpush1.msra.mxu0 0.0
  %1569 = vmatprep.subr.mxu0 0.0
  %1570 = vmatpush1.msra.mxu0 0.0
  %1571 = vmatprep.subr.mxu0 0.0
  %1572 = vmatpush1.msra.mxu0 0.0
  %1573 = vmatprep.subr.mxu0 0.0
  %1574 = vmatpush1.msra.mxu0 0.0
  %1575 = vmatprep.subr.mxu0 0.0
  %1576 = vmatpush1.msra.mxu0 0.0
  %1577 = vmatprep.subr.mxu0 0.0
  %1578 = vmatpush1.msra.mxu0 0.0
  %1579 = vmatprep.subr.mxu0 0.0
  %1580 = vmatpush1.msra.mxu0 0.0
  %1581 = vmatprep.subr.mxu0 0.0
  %1582 = vmatpush1.msra.mxu0 0.0
  %1583 = vmatprep.subr.mxu0 0.0
  %1584 = vmatpush1.msra.mxu0 0.0
  %1585 = vmatprep.subr.mxu0 0.0
  %1586 = vmatpush1.msra.mxu0 0.0
  %1587 = vmatprep.subr.mxu0 0.0
  %1588 = vmatpush1.msra.mxu0 0.0
  %1589 = vmatprep.subr.mxu0 0.0
  %1590 = vmatpush1.msra.mxu0 0.0
  %1591 = vmatprep.subr.mxu0 0.0
  %1592 = vmatpush1.msra.mxu0 0.0
  %1593 = vmatprep.subr.mxu0 0.0
  %1594 = vmatpush1.msra.mxu0 0.0
  %1595 = vmatprep.subr.mxu0 0.0
  %1596 = vmatpush1.msra.mxu0 0.0
  %1597 = vmatprep.subr.mxu0 0.0
  %1598 = vmatpush1.msra.mxu0 0.0
  %1599 = vmatprep.subr.mxu0 0.0
  %1600 = vmatpush1.msra.mxu0 0.0
  %1601 = vmatprep.subr.mxu0 0.0
  %1602 = vmatpush1.msra.mxu0 0.0
  %1603 = vmatprep.subr.mxu0 0.0
  %1604 = vmatpush1.msra.mxu0 0.0
  %1605 = vmatprep.mubr.f32.mxu0 0.0
  %1606 = vmatmul.mubr.f32.gmra.mrb[0].mxu0 %v1527
  %v1607 = vpop.f32.mrb[0].mxu0
  %v1608 = vadd.f32 0.0, %v1607
  %v1609 = vpop.f32.mrb[0].mxu0
  %1610 = vmatprep.mubr.f32.mxu0 0.0
  %1611 = vmatmul.mubr.f32.gmra.mrb[0].mxu0 %v1530
  %v1612 = vpop.f32.mrb[0].mxu0
  %v1613 = vadd.f32 0.0, %v1612
  %v1614 = vpop.f32.mrb[0].mxu0
  %1615 = vmatprep.mubr.f32.mxu0 0.0
  %1616 = vmatmul.mubr.f32.gmra.mrb[0].mxu0 %v1533
  %v1617 = vpop.f32.mrb[0].mxu0
  %v1618 = vadd.f32 0.0, %v1617
  %v1619 = vpop.f32.mrb[0].mxu0
  %1620 = vmatprep.mubr.f32.mxu0 0.0
  %1621 = vmatmul.mubr.f32.gmra.mrb[0].mxu0 %v1536
  %v1622 = vpop.f32.mrb[0].mxu0
  %v1623 = vadd.f32 0.0, %v1622
  %v1624 = vpop.f32.mrb[0].mxu0
  %1625 = vmatprep.mubr.f32.mxu0 0.0
  %1626 = vmatmul.mubr.f32.gmra.mrb[0].mxu0 %v1539
  %v1627 = vpop.f32.mrb[0].mxu0
  %v1628 = vadd.f32 0.0, %v1627
  %v1629 = vpop.f32.mrb[0].mxu0
  %1630 = vdwg.mxu0
  %v1631 = vadd.f32 %v1499, %v1608
  %v1632 = vadd.f32 %v1504, %v1613
  %v1633 = vadd.f32 %v1509, %v1618
  %v1634 = vadd.f32 %v1514, %v1623
  %v1635 = vadd.f32 %v1519, %v1628
  %v1636 = vld [vmem:[%s2 + $0x88] sm:$0xff]
  %v1637 = vld [vmem:[%s2 + $0x90] sm:$0xff]
  %v1638 = vld [vmem:[%s2 + $0x98] sm:$0xff]
  %v1639 = vld [vmem:[%s2 + $0xa0] sm:$0xff]
  %v1641 = vsel %vm21, %v1393, 0
  %v1644 = vsel %vm21, %v1394, 0
  %v1647 = vsel %vm21, %v1395, 0
  %v1650 = vsel %vm21, %v1396, 0
  %v1653 = vsel %vm21, %v1397, 0
  %1655 = vmatprep.subr.mxu0 0.0
  %1656 = vmatpush1.msra.mxu0 %v1636
  %1657 = vmatprep.subr.mxu0 0.0
  %1658 = vmatpush1.msra.mxu0 %v1637
  %1659 = vmatprep.subr.mxu0 0.0
  %1660 = vmatpush1.msra.mxu0 %v1638
  %1661 = vmatprep.subr.mxu0 0.0
  %1662 = vmatpush1.msra.mxu0 %v1639
  %1663 = vmatprep.subr.mxu0 0.0
  %1664 = vmatpush1.msra.mxu0 0.0
  %1665 = vmatprep.subr.mxu0 0.0
  %1666 = vmatpush1.msra.mxu0 0.0
  %1667 = vmatprep.subr.mxu0 0.0
  %1668 = vmatpush1.msra.mxu0 0.0
  %1669 = vmatprep.subr.mxu0 0.0
  %1670 = vmatpush1.msra.mxu0 0.0
  %1671 = vmatprep.subr.mxu0 0.0
  %1672 = vmatpush1.msra.mxu0 0.0
  %1673 = vmatprep.subr.mxu0 0.0
  %1674 = vmatpush1.msra.mxu0 0.0
  %1675 = vmatprep.subr.mxu0 0.0
  %1676 = vmatpush1.msra.mxu0 0.0
  %1677 = vmatprep.subr.mxu0 0.0
  %1678 = vmatpush1.msra.mxu0 0.0
  %1679 = vmatprep.subr.mxu0 0.0
  %1680 = vmatpush1.msra.mxu0 0.0
  %1681 = vmatprep.subr.mxu0 0.0
  %1682 = vmatpush1.msra.mxu0 0.0
  %1683 = vmatprep.subr.mxu0 0.0
  %1684 = vmatpush1.msra.mxu0 0.0
  %1685 = vmatprep.subr.mxu0 0.0
  %1686 = vmatpush1.msra.mxu0 0.0
  %1687 = vmatprep.subr.mxu0 0.0
  %1688 = vmatpush1.msra.mxu0 0.0
  %1689 = vmatprep.subr.mxu0 0.0
  %1690 = vmatpush1.msra.mxu0 0.0
  %1691 = vmatprep.subr.mxu0 0.0
  %1692 = vmatpush1.msra.mxu0 0.0
  %1693 = vmatprep.subr.mxu0 0.0
  %1694 = vmatpush1.msra.mxu0 0.0
  %1695 = vmatprep.subr.mxu0 0.0
  %1696 = vmatpush1.msra.mxu0 0.0
  %1697 = vmatprep.subr.mxu0 0.0
  %1698 = vmatpush1.msra.mxu0 0.0
  %1699 = vmatprep.subr.mxu0 0.0
  %1700 = vmatpush1.msra.mxu0 0.0
  %1701 = vmatprep.subr.mxu0 0.0
  %1702 = vmatpush1.msra.mxu0 0.0
  %1703 = vmatprep.subr.mxu0 0.0
  %1704 = vmatpush1.msra.mxu0 0.0
  %1705 = vmatprep.subr.mxu0 0.0
  %1706 = vmatpush1.msra.mxu0 0.0
  %1707 = vmatprep.subr.mxu0 0.0
  %1708 = vmatpush1.msra.mxu0 0.0
  %1709 = vmatprep.subr.mxu0 0.0
  %1710 = vmatpush1.msra.mxu0 0.0
  %1711 = vmatprep.subr.mxu0 0.0
  %1712 = vmatpush1.msra.mxu0 0.0
  %1713 = vmatprep.subr.mxu0 0.0
  %1714 = vmatpush1.msra.mxu0 0.0
  %1715 = vmatprep.subr.mxu0 0.0
  %1716 = vmatpush1.msra.mxu0 0.0
  %1717 = vmatprep.subr.mxu0 0.0
  %1718 = vmatpush1.msra.mxu0 0.0
  %1719 = vmatprep.mubr.f32.mxu0 0.0
  %1720 = vmatmul.mubr.f32.gmra.mrb[0].mxu0 %v1641
  %v1721 = vpop.f32.mrb[0].mxu0
  %v1722 = vadd.f32 0.0, %v1721
  %v1723 = vpop.f32.mrb[0].mxu0
  %1724 = vmatprep.mubr.f32.mxu0 0.0
  %1725 = vmatmul.mubr.f32.gmra.mrb[0].mxu0 %v1644
  %v1726 = vpop.f32.mrb[0].mxu0
  %v1727 = vadd.f32 0.0, %v1726
  %v1728 = vpop.f32.mrb[0].mxu0
  %1729 = vmatprep.mubr.f32.mxu0 0.0
  %1730 = vmatmul.mubr.f32.gmra.mrb[0].mxu0 %v1647
  %v1731 = vpop.f32.mrb[0].mxu0
  %v1732 = vadd.f32 0.0, %v1731
  %v1733 = vpop.f32.mrb[0].mxu0
  %1734 = vmatprep.mubr.f32.mxu0 0.0
  %1735 = vmatmul.mubr.f32.gmra.mrb[0].mxu0 %v1650
  %v1736 = vpop.f32.mrb[0].mxu0
  %v1737 = vadd.f32 0.0, %v1736
  %v1738 = vpop.f32.mrb[0].mxu0
  %1739 = vmatprep.mubr.f32.mxu0 0.0
  %1740 = vmatmul.mubr.f32.gmra.mrb[0].mxu0 %v1653
  %v1741 = vpop.f32.mrb[0].mxu0
  %v1742 = vadd.f32 0.0, %v1741
  %v1743 = vpop.f32.mrb[0].mxu0
  %1744 = vdwg.mxu0
  %v1745 = vadd.f32 %v1631, %v1722
  %v1746 = vadd.f32 %v1632, %v1727
  %v1747 = vadd.f32 %v1633, %v1732
  %v1748 = vadd.f32 %v1634, %v1737
  %v1749 = vadd.f32 %v1635, %v1742
  %v1750 = vld [vmem:[%s2 + $0xa8] sm:$0xff]
  %v1751 = vld [vmem:[%s2 + $0xb0] sm:$0xff]
  %v1752 = vld [vmem:[%s2 + $0xb8] sm:$0xff]
  %v1753 = vld [vmem:[%s2 + $0xc0] sm:$0xff]
  %v1755 = vsel %vm21, %v1398, 0
  %v1758 = vsel %vm21, %v1399, 0
  %v1761 = vsel %vm21, %v1400, 0
  %v1764 = vsel %vm21, %v1401, 0
  %v1767 = vsel %vm21, %v1402, 0
  %1769 = vmatprep.subr.mxu0 0.0
  %1770 = vmatpush1.msra.mxu0 %v1750
  %1771 = vmatprep.subr.mxu0 0.0
  %1772 = vmatpush1.msra.mxu0 %v1751
  %1773 = vmatprep.subr.mxu0 0.0
  %1774 = vmatpush1.msra.mxu0 %v1752
  %1775 = vmatprep.subr.mxu0 0.0
  %1776 = vmatpush1.msra.mxu0 %v1753
  %1777 = vmatprep.subr.mxu0 0.0
  %1778 = vmatpush1.msra.mxu0 0.0
  %1779 = vmatprep.subr.mxu0 0.0
  %1780 = vmatpush1.msra.mxu0 0.0
  %1781 = vmatprep.subr.mxu0 0.0
  %1782 = vmatpush1.msra.mxu0 0.0
  %1783 = vmatprep.subr.mxu0 0.0
  %1784 = vmatpush1.msra.mxu0 0.0
  %1785 = vmatprep.subr.mxu0 0.0
  %1786 = vmatpush1.msra.mxu0 0.0
  %1787 = vmatprep.subr.mxu0 0.0
  %1788 = vmatpush1.msra.mxu0 0.0
  %1789 = vmatprep.subr.mxu0 0.0
  %1790 = vmatpush1.msra.mxu0 0.0
  %1791 = vmatprep.subr.mxu0 0.0
  %1792 = vmatpush1.msra.mxu0 0.0
  %1793 = vmatprep.subr.mxu0 0.0
  %1794 = vmatpush1.msra.mxu0 0.0
  %1795 = vmatprep.subr.mxu0 0.0
  %1796 = vmatpush1.msra.mxu0 0.0
  %1797 = vmatprep.subr.mxu0 0.0
  %1798 = vmatpush1.msra.mxu0 0.0
  %1799 = vmatprep.subr.mxu0 0.0
  %1800 = vmatpush1.msra.mxu0 0.0
  %1801 = vmatprep.subr.mxu0 0.0
  %1802 = vmatpush1.msra.mxu0 0.0
  %1803 = vmatprep.subr.mxu0 0.0
  %1804 = vmatpush1.msra.mxu0 0.0
  %1805 = vmatprep.subr.mxu0 0.0
  %1806 = vmatpush1.msra.mxu0 0.0
  %1807 = vmatprep.subr.mxu0 0.0
  %1808 = vmatpush1.msra.mxu0 0.0
  %1809 = vmatprep.subr.mxu0 0.0
  %1810 = vmatpush1.msra.mxu0 0.0
  %1811 = vmatprep.subr.mxu0 0.0
  %1812 = vmatpush1.msra.mxu0 0.0
  %1813 = vmatprep.subr.mxu0 0.0
  %1814 = vmatpush1.msra.mxu0 0.0
  %1815 = vmatprep.subr.mxu0 0.0
  %1816 = vmatpush1.msra.mxu0 0.0
  %1817 = vmatprep.subr.mxu0 0.0
  %1818 = vmatpush1.msra.mxu0 0.0
  %1819 = vmatprep.subr.mxu0 0.0
  %1820 = vmatpush1.msra.mxu0 0.0
  %1821 = vmatprep.subr.mxu0 0.0
  %1822 = vmatpush1.msra.mxu0 0.0
  %1823 = vmatprep.subr.mxu0 0.0
  %1824 = vmatpush1.msra.mxu0 0.0
  %1825 = vmatprep.subr.mxu0 0.0
  %1826 = vmatpush1.msra.mxu0 0.0
  %1827 = vmatprep.subr.mxu0 0.0
  %1828 = vmatpush1.msra.mxu0 0.0
  %1829 = vmatprep.subr.mxu0 0.0
  %1830 = vmatpush1.msra.mxu0 0.0
  %1831 = vmatprep.subr.mxu0 0.0
  %1832 = vmatpush1.msra.mxu0 0.0
  %1833 = vmatprep.mubr.f32.mxu0 0.0
  %1834 = vmatmul.mubr.f32.gmra.mrb[0].mxu0 %v1755
  %v1835 = vpop.f32.mrb[0].mxu0
  %v1836 = vadd.f32 0.0, %v1835
  %v1837 = vpop.f32.mrb[0].mxu0
  %1838 = vmatprep.mubr.f32.mxu0 0.0
  %1839 = vmatmul.mubr.f32.gmra.mrb[0].mxu0 %v1758
  %v1840 = vpop.f32.mrb[0].mxu0
  %v1841 = vadd.f32 0.0, %v1840
  %v1842 = vpop.f32.mrb[0].mxu0
  %1843 = vmatprep.mubr.f32.mxu0 0.0
  %1844 = vmatmul.mubr.f32.gmra.mrb[0].mxu0 %v1761
  %v1845 = vpop.f32.mrb[0].mxu0
  %v1846 = vadd.f32 0.0, %v1845
  %v1847 = vpop.f32.mrb[0].mxu0
  %1848 = vmatprep.mubr.f32.mxu0 0.0
  %1849 = vmatmul.mubr.f32.gmra.mrb[0].mxu0 %v1764
  %v1850 = vpop.f32.mrb[0].mxu0
  %v1851 = vadd.f32 0.0, %v1850
  %v1852 = vpop.f32.mrb[0].mxu0
  %1853 = vmatprep.mubr.f32.mxu0 0.0
  %1854 = vmatmul.mubr.f32.gmra.mrb[0].mxu0 %v1767
  %v1855 = vpop.f32.mrb[0].mxu0
  %v1856 = vadd.f32 0.0, %v1855
  %v1857 = vpop.f32.mrb[0].mxu0
  %1858 = vdwg.mxu0
  %v1859 = vadd.f32 %v1745, %v1836
  %v1860 = vadd.f32 %v1746, %v1841
  %v1861 = vadd.f32 %v1747, %v1846
  %v1862 = vadd.f32 %v1748, %v1851
  %v1863 = vadd.f32 %v1749, %v1856
  %v1864 = vld [vmem:[%s2 + $0xc8] sm:$0xff]
  %v1865 = vld [vmem:[%s2 + $0xd0] sm:$0xff]
  %v1866 = vld [vmem:[%s2 + $0xd8] sm:$0xff]
  %v1867 = vld [vmem:[%s2 + $0xe0] sm:$0xff]
  %v1869 = vsel %vm21, %v1403, 0
  %v1872 = vsel %vm21, %v1404, 0
  %v1875 = vsel %vm21, %v1405, 0
  %v1878 = vsel %vm21, %v1406, 0
  %v1881 = vsel %vm21, %v1407, 0
  %1883 = vmatprep.subr.mxu0 0.0
  %1884 = vmatpush1.msra.mxu0 %v1864
  %1885 = vmatprep.subr.mxu0 0.0
  %1886 = vmatpush1.msra.mxu0 %v1865
  %1887 = vmatprep.subr.mxu0 0.0
  %1888 = vmatpush1.msra.mxu0 %v1866
  %1889 = vmatprep.subr.mxu0 0.0
  %1890 = vmatpush1.msra.mxu0 %v1867
  %1891 = vmatprep.subr.mxu0 0.0
  %1892 = vmatpush1.msra.mxu0 0.0
  %1893 = vmatprep.subr.mxu0 0.0
  %1894 = vmatpush1.msra.mxu0 0.0
  %1895 = vmatprep.subr.mxu0 0.0
  %1896 = vmatpush1.msra.mxu0 0.0
  %1897 = vmatprep.subr.mxu0 0.0
  %1898 = vmatpush1.msra.mxu0 0.0
  %1899 = vmatprep.subr.mxu0 0.0
  %1900 = vmatpush1.msra.mxu0 0.0
  %1901 = vmatprep.subr.mxu0 0.0
  %1902 = vmatpush1.msra.mxu0 0.0
  %1903 = vmatprep.subr.mxu0 0.0
  %1904 = vmatpush1.msra.mxu0 0.0
  %1905 = vmatprep.subr.mxu0 0.0
  %1906 = vmatpush1.msra.mxu0 0.0
  %1907 = vmatprep.subr.mxu0 0.0
  %1908 = vmatpush1.msra.mxu0 0.0
  %1909 = vmatprep.subr.mxu0 0.0
  %1910 = vmatpush1.msra.mxu0 0.0
  %1911 = vmatprep.subr.mxu0 0.0
  %1912 = vmatpush1.msra.mxu0 0.0
  %1913 = vmatprep.subr.mxu0 0.0
  %1914 = vmatpush1.msra.mxu0 0.0
  %1915 = vmatprep.subr.mxu0 0.0
  %1916 = vmatpush1.msra.mxu0 0.0
  %1917 = vmatprep.subr.mxu0 0.0
  %1918 = vmatpush1.msra.mxu0 0.0
  %1919 = vmatprep.subr.mxu0 0.0
  %1920 = vmatpush1.msra.mxu0 0.0
  %1921 = vmatprep.subr.mxu0 0.0
  %1922 = vmatpush1.msra.mxu0 0.0
  %1923 = vmatprep.subr.mxu0 0.0
  %1924 = vmatpush1.msra.mxu0 0.0
  %1925 = vmatprep.subr.mxu0 0.0
  %1926 = vmatpush1.msra.mxu0 0.0
  %1927 = vmatprep.subr.mxu0 0.0
  %1928 = vmatpush1.msra.mxu0 0.0
  %1929 = vmatprep.subr.mxu0 0.0
  %1930 = vmatpush1.msra.mxu0 0.0
  %1931 = vmatprep.subr.mxu0 0.0
  %1932 = vmatpush1.msra.mxu0 0.0
  %1933 = vmatprep.subr.mxu0 0.0
  %1934 = vmatpush1.msra.mxu0 0.0
  %1935 = vmatprep.subr.mxu0 0.0
  %1936 = vmatpush1.msra.mxu0 0.0
  %1937 = vmatprep.subr.mxu0 0.0
  %1938 = vmatpush1.msra.mxu0 0.0
  %1939 = vmatprep.subr.mxu0 0.0
  %1940 = vmatpush1.msra.mxu0 0.0
  %1941 = vmatprep.subr.mxu0 0.0
  %1942 = vmatpush1.msra.mxu0 0.0
  %1943 = vmatprep.subr.mxu0 0.0
  %1944 = vmatpush1.msra.mxu0 0.0
  %1945 = vmatprep.subr.mxu0 0.0
  %1946 = vmatpush1.msra.mxu0 0.0
  %1947 = vmatprep.mubr.f32.mxu0 0.0
  %1948 = vmatmul.mubr.f32.gmra.mrb[0].mxu0 %v1869
  %v1949 = vpop.f32.mrb[0].mxu0
  %v1950 = vadd.f32 0.0, %v1949
  %v1951 = vpop.f32.mrb[0].mxu0
  %1952 = vmatprep.mubr.f32.mxu0 0.0
  %1953 = vmatmul.mubr.f32.gmra.mrb[0].mxu0 %v1872
  %v1954 = vpop.f32.mrb[0].mxu0
  %v1955 = vadd.f32 0.0, %v1954
  %v1956 = vpop.f32.mrb[0].mxu0
  %1957 = vmatprep.mubr.f32.mxu0 0.0
  %1958 = vmatmul.mubr.f32.gmra.mrb[0].mxu0 %v1875
  %v1959 = vpop.f32.mrb[0].mxu0
  %v1960 = vadd.f32 0.0, %v1959
  %v1961 = vpop.f32.mrb[0].mxu0
  %1962 = vmatprep.mubr.f32.mxu0 0.0
  %1963 = vmatmul.mubr.f32.gmra.mrb[0].mxu0 %v1878
  %v1964 = vpop.f32.mrb[0].mxu0
  %v1965 = vadd.f32 0.0, %v1964
  %v1966 = vpop.f32.mrb[0].mxu0
  %1967 = vmatprep.mubr.f32.mxu0 0.0
  %1968 = vmatmul.mubr.f32.gmra.mrb[0].mxu0 %v1881
  %v1969 = vpop.f32.mrb[0].mxu0
  %v1970 = vadd.f32 0.0, %v1969
  %v1971 = vpop.f32.mrb[0].mxu0
  %1972 = vdwg.mxu0
  %v1973 = vadd.f32 %v1859, %v1950
  %v1974 = vadd.f32 %v1860, %v1955
  %v1975 = vadd.f32 %v1861, %v1960
  %v1976 = vadd.f32 %v1862, %v1965
  %v1977 = vadd.f32 %v1863, %v1970
  %v1978 = vld [vmem:[%s2 + $0x8] sm:$0x1]
  %v1979 = vld [vmem:[%s2 + $0x9] sm:$0x1]
  %v1980 = vsel %vm21, %v1973, 0.0
  %1981 = vadd.xlane.f32.xlu0 %v1980
  %v1982 = vpop.xlane.xlu0 %1981
  %v1983 = vsel %vm21, %v1974, 0.0
  %1984 = vadd.xlane.f32.xlu0 %v1983
  %v1985 = vpop.xlane.xlu0 %1984
  %v1986 = vsel %vm21, %v1975, 0.0
  %1987 = vadd.xlane.f32.xlu0 %v1986
  %v1988 = vpop.xlane.xlu0 %1987
  %v1989 = vsel %vm21, %v1976, 0.0
  %1990 = vadd.xlane.f32.xlu0 %v1989
  %v1991 = vpop.xlane.xlu0 %1990
  %v1992 = vsel %vm21, %v1977, 0.0
  %1993 = vadd.xlane.f32.xlu0 %v1992
  %v1994 = vpop.xlane.xlu0 %1993
  %v1995 = vmul.f32 %v1982, %v37
  %v1996 = vmul.f32 %v1985, %v37
  %v1997 = vmul.f32 %v1988, %v37
  %v1998 = vmul.f32 %v1991, %v37
  %v1999 = vmul.f32 %v1994, %v37
  %v2000 = vsub.f32 %v1973, %v1995
  %v2001 = vsub.f32 %v1974, %v1996
  %v2002 = vsub.f32 %v1975, %v1997
  %v2003 = vsub.f32 %v1976, %v1998
  %v2004 = vsub.f32 %v1977, %v1999
  %v2005 = vmul.f32 %v2000, %v2000
  %v2006 = vmul.f32 %v2001, %v2001
  %v2007 = vmul.f32 %v2002, %v2002
  %v2008 = vmul.f32 %v2003, %v2003
  %v2009 = vmul.f32 %v2004, %v2004
  %v2010 = vsel %vm21, %v2005, 0.0
  %2011 = vadd.xlane.f32.xlu0 %v2010
  %v2012 = vpop.xlane.xlu0 %2011
  %v2013 = vsel %vm21, %v2006, 0.0
  %2014 = vadd.xlane.f32.xlu0 %v2013
  %v2015 = vpop.xlane.xlu0 %2014
  %v2016 = vsel %vm21, %v2007, 0.0
  %2017 = vadd.xlane.f32.xlu0 %v2016
  %v2018 = vpop.xlane.xlu0 %2017
  %v2019 = vsel %vm21, %v2008, 0.0
  %2020 = vadd.xlane.f32.xlu0 %v2019
  %v2021 = vpop.xlane.xlu0 %2020
  %v2022 = vsel %vm21, %v2009, 0.0
  %2023 = vadd.xlane.f32.xlu0 %v2022
  %v2024 = vpop.xlane.xlu0 %2023
  %v2025 = vmul.f32 %v2012, %v37
  %v2026 = vmul.f32 %v2015, %v37
  %v2027 = vmul.f32 %v2018, %v37
  %v2028 = vmul.f32 %v2021, %v37
  %v2029 = vmul.f32 %v2024, %v37
  %v2030 = vadd.f32 %v2025, 1e-05
  %v2031 = vadd.f32 %v2026, 1e-05
  %v2032 = vadd.f32 %v2027, 1e-05
  %v2033 = vadd.f32 %v2028, 1e-05
  %v2034 = vadd.f32 %v2029, 1e-05
  %v2035 = vrsqrt.pop %v2030
  %v2036 = vrsqrt.pop %v2031
  %v2037 = vrsqrt.pop %v2032
  %v2038 = vrsqrt.pop %v2033
  %v2039 = vrsqrt.pop %v2034
  %v2040 = vmul.f32 %v2000, %v2035
  %v2041 = vmul.f32 %v2001, %v2036
  %v2042 = vmul.f32 %v2002, %v2037
  %v2043 = vmul.f32 %v2003, %v2038
  %v2044 = vmul.f32 %v2004, %v2039
  %v2045 = vlaneseq
  %v2046 = vshrl.u32 %v2045, 7
  %v2047 = vsub.s32 0, %v2046
  %v2048 = vrot.slane %v1978, %v2047
  %v2049 = vmul.f32 %v2040, %v2048
  %v2050 = vmul.f32 %v2041, %v2048
  %v2051 = vmul.f32 %v2042, %v2048
  %v2052 = vmul.f32 %v2043, %v2048
  %v2053 = vmul.f32 %v2044, %v2048
  %v2054 = vlaneseq
  %v2055 = vshrl.u32 %v2054, 7
  %v2056 = vsub.s32 0, %v2055
  %v2057 = vrot.slane %v1979, %v2056
  %v2058 = vadd.f32 %v2049, %v2057
  %v2059 = vadd.f32 %v2050, %v2057
  %v2060 = vadd.f32 %v2051, %v2057
  %v2061 = vadd.f32 %v2052, %v2057
  %v2062 = vadd.f32 %v2053, %v2057
  %v2063 = vxor.u32 %v2058, 2147483648
  %v2064 = vxor.u32 %v2059, 2147483648
  %v2065 = vxor.u32 %v2060, 2147483648
  %v2066 = vxor.u32 %v2061, 2147483648
  %v2067 = vxor.u32 %v2062, 2147483648
  %v2068 = vmul.f32 %v2063, 1.442695
  %v2069 = vpow.pop %v2068
  %v2070 = vmul.f32 %v2064, 1.442695
  %v2071 = vpow.pop %v2070
  %v2072 = vmul.f32 %v2065, 1.442695
  %v2073 = vpow.pop %v2072
  %v2074 = vmul.f32 %v2066, 1.442695
  %v2075 = vpow.pop %v2074
  %v2076 = vmul.f32 %v2067, 1.442695
  %v2077 = vpow.pop %v2076
  %v2078 = vadd.f32 %v2069, 1.0
  %v2079 = vadd.f32 %v2071, 1.0
  %v2080 = vadd.f32 %v2073, 1.0
  %v2081 = vadd.f32 %v2075, 1.0
  %v2082 = vadd.f32 %v2077, 1.0
  %v2083 = vrcp.pop %v2078
  %v2084 = vmul.f32 1.0, %v2083
  %v2085 = vrcp.pop %v2079
  %v2086 = vmul.f32 1.0, %v2085
  %v2087 = vrcp.pop %v2080
  %v2088 = vmul.f32 1.0, %v2087
  %v2089 = vrcp.pop %v2081
  %v2090 = vmul.f32 1.0, %v2089
  %v2091 = vrcp.pop %v2082
  %v2092 = vmul.f32 1.0, %v2091
  %v2093 = vmul.f32 %v2058, %v2084
  %v2094 = vmul.f32 %v2059, %v2086
  %v2095 = vmul.f32 %v2060, %v2088
  %v2096 = vmul.f32 %v2061, %v2090
  %v2097 = vmul.f32 %v2062, %v2092
  %v2098 = vld [vmem:[%s2 + $0x13] sm:$0x1]
  %v2099 = vld [vmem:[%s2 + $0x108] sm:$0xff]
  %v2100 = vld [vmem:[%s2 + $0x110] sm:$0xff]
  %v2101 = vld [vmem:[%s2 + $0x118] sm:$0xff]
  %v2102 = vld [vmem:[%s2 + $0x120] sm:$0xff]
  %v2104 = vsel %vm21, %v2093, 0
  %2106 = vmatprep.subr.mxu0 0.0
  %2107 = vmatpush1.msra.mxu0 %v2099
  %2108 = vmatprep.subr.mxu0 0.0
  %2109 = vmatpush1.msra.mxu0 %v2100
  %2110 = vmatprep.subr.mxu0 0.0
  %2111 = vmatpush1.msra.mxu0 %v2101
  %2112 = vmatprep.subr.mxu0 0.0
  %2113 = vmatpush1.msra.mxu0 %v2102
  %2114 = vmatprep.subr.mxu0 0.0
  %2115 = vmatpush1.msra.mxu0 0.0
  %2116 = vmatprep.subr.mxu0 0.0
  %2117 = vmatpush1.msra.mxu0 0.0
  %2118 = vmatprep.subr.mxu0 0.0
  %2119 = vmatpush1.msra.mxu0 0.0
  %2120 = vmatprep.subr.mxu0 0.0
  %2121 = vmatpush1.msra.mxu0 0.0
  %2122 = vmatprep.subr.mxu0 0.0
  %2123 = vmatpush1.msra.mxu0 0.0
  %2124 = vmatprep.subr.mxu0 0.0
  %2125 = vmatpush1.msra.mxu0 0.0
  %2126 = vmatprep.subr.mxu0 0.0
  %2127 = vmatpush1.msra.mxu0 0.0
  %2128 = vmatprep.subr.mxu0 0.0
  %2129 = vmatpush1.msra.mxu0 0.0
  %2130 = vmatprep.subr.mxu0 0.0
  %2131 = vmatpush1.msra.mxu0 0.0
  %2132 = vmatprep.subr.mxu0 0.0
  %2133 = vmatpush1.msra.mxu0 0.0
  %2134 = vmatprep.subr.mxu0 0.0
  %2135 = vmatpush1.msra.mxu0 0.0
  %2136 = vmatprep.subr.mxu0 0.0
  %2137 = vmatpush1.msra.mxu0 0.0
  %2138 = vmatprep.subr.mxu0 0.0
  %2139 = vmatpush1.msra.mxu0 0.0
  %2140 = vmatprep.subr.mxu0 0.0
  %2141 = vmatpush1.msra.mxu0 0.0
  %2142 = vmatprep.subr.mxu0 0.0
  %2143 = vmatpush1.msra.mxu0 0.0
  %2144 = vmatprep.subr.mxu0 0.0
  %2145 = vmatpush1.msra.mxu0 0.0
  %2146 = vmatprep.subr.mxu0 0.0
  %2147 = vmatpush1.msra.mxu0 0.0
  %2148 = vmatprep.subr.mxu0 0.0
  %2149 = vmatpush1.msra.mxu0 0.0
  %2150 = vmatprep.subr.mxu0 0.0
  %2151 = vmatpush1.msra.mxu0 0.0
  %2152 = vmatprep.subr.mxu0 0.0
  %2153 = vmatpush1.msra.mxu0 0.0
  %2154 = vmatprep.subr.mxu0 0.0
  %2155 = vmatpush1.msra.mxu0 0.0
  %2156 = vmatprep.subr.mxu0 0.0
  %2157 = vmatpush1.msra.mxu0 0.0
  %2158 = vmatprep.subr.mxu0 0.0
  %2159 = vmatpush1.msra.mxu0 0.0
  %2160 = vmatprep.subr.mxu0 0.0
  %2161 = vmatpush1.msra.mxu0 0.0
  %2162 = vmatprep.subr.mxu0 0.0
  %2163 = vmatpush1.msra.mxu0 0.0
  %2164 = vmatprep.subr.mxu0 0.0
  %2165 = vmatpush1.msra.mxu0 0.0
  %2166 = vmatprep.subr.mxu0 0.0
  %2167 = vmatpush1.msra.mxu0 0.0
  %2168 = vmatprep.subr.mxu0 0.0
  %2169 = vmatpush1.msra.mxu0 0.0
  %2170 = vmatprep.mubr.f32.mxu0 0.0
  %2171 = vmatmul.mubr.f32.gmra.mrb[0].mxu0 %v2104
  %v2172 = vpop.f32.mrb[0].mxu0
  %v2173 = vadd.f32 0.0, %v2172
  %v2174 = vpop.f32.mrb[0].mxu0
  %2175 = vdwg.mxu0
  %v2176 = vlaneseq
  %v2177 = vshrl.u32 %v2176, 7
  %v2178 = vsub.s32 0, %v2177
  %v2179 = vrot.slane %v2098, %v2178
  %v2180 = vadd.f32 %v2179, %v2173
  %v2181 = vld [vmem:[%s2 + $0x128] sm:$0xff]
  %v2182 = vld [vmem:[%s2 + $0x130] sm:$0xff]
  %v2183 = vld [vmem:[%s2 + $0x138] sm:$0xff]
  %v2184 = vld [vmem:[%s2 + $0x140] sm:$0xff]
  %v2186 = vsel %vm21, %v2094, 0
  %2188 = vmatprep.subr.mxu0 0.0
  %2189 = vmatpush1.msra.mxu0 %v2181
  %2190 = vmatprep.subr.mxu0 0.0
  %2191 = vmatpush1.msra.mxu0 %v2182
  %2192 = vmatprep.subr.mxu0 0.0
  %2193 = vmatpush1.msra.mxu0 %v2183
  %2194 = vmatprep.subr.mxu0 0.0
  %2195 = vmatpush1.msra.mxu0 %v2184
  %2196 = vmatprep.subr.mxu0 0.0
  %2197 = vmatpush1.msra.mxu0 0.0
  %2198 = vmatprep.subr.mxu0 0.0
  %2199 = vmatpush1.msra.mxu0 0.0
  %2200 = vmatprep.subr.mxu0 0.0
  %2201 = vmatpush1.msra.mxu0 0.0
  %2202 = vmatprep.subr.mxu0 0.0
  %2203 = vmatpush1.msra.mxu0 0.0
  %2204 = vmatprep.subr.mxu0 0.0
  %2205 = vmatpush1.msra.mxu0 0.0
  %2206 = vmatprep.subr.mxu0 0.0
  %2207 = vmatpush1.msra.mxu0 0.0
  %2208 = vmatprep.subr.mxu0 0.0
  %2209 = vmatpush1.msra.mxu0 0.0
  %2210 = vmatprep.subr.mxu0 0.0
  %2211 = vmatpush1.msra.mxu0 0.0
  %2212 = vmatprep.subr.mxu0 0.0
  %2213 = vmatpush1.msra.mxu0 0.0
  %2214 = vmatprep.subr.mxu0 0.0
  %2215 = vmatpush1.msra.mxu0 0.0
  %2216 = vmatprep.subr.mxu0 0.0
  %2217 = vmatpush1.msra.mxu0 0.0
  %2218 = vmatprep.subr.mxu0 0.0
  %2219 = vmatpush1.msra.mxu0 0.0
  %2220 = vmatprep.subr.mxu0 0.0
  %2221 = vmatpush1.msra.mxu0 0.0
  %2222 = vmatprep.subr.mxu0 0.0
  %2223 = vmatpush1.msra.mxu0 0.0
  %2224 = vmatprep.subr.mxu0 0.0
  %2225 = vmatpush1.msra.mxu0 0.0
  %2226 = vmatprep.subr.mxu0 0.0
  %2227 = vmatpush1.msra.mxu0 0.0
  %2228 = vmatprep.subr.mxu0 0.0
  %2229 = vmatpush1.msra.mxu0 0.0
  %2230 = vmatprep.subr.mxu0 0.0
  %2231 = vmatpush1.msra.mxu0 0.0
  %2232 = vmatprep.subr.mxu0 0.0
  %2233 = vmatpush1.msra.mxu0 0.0
  %2234 = vmatprep.subr.mxu0 0.0
  %2235 = vmatpush1.msra.mxu0 0.0
  %2236 = vmatprep.subr.mxu0 0.0
  %2237 = vmatpush1.msra.mxu0 0.0
  %2238 = vmatprep.subr.mxu0 0.0
  %2239 = vmatpush1.msra.mxu0 0.0
  %2240 = vmatprep.subr.mxu0 0.0
  %2241 = vmatpush1.msra.mxu0 0.0
  %2242 = vmatprep.subr.mxu0 0.0
  %2243 = vmatpush1.msra.mxu0 0.0
  %2244 = vmatprep.subr.mxu0 0.0
  %2245 = vmatpush1.msra.mxu0 0.0
  %2246 = vmatprep.subr.mxu0 0.0
  %2247 = vmatpush1.msra.mxu0 0.0
  %2248 = vmatprep.subr.mxu0 0.0
  %2249 = vmatpush1.msra.mxu0 0.0
  %2250 = vmatprep.subr.mxu0 0.0
  %2251 = vmatpush1.msra.mxu0 0.0
  %2252 = vmatprep.mubr.f32.mxu0 0.0
  %2253 = vmatmul.mubr.f32.gmra.mrb[0].mxu0 %v2186
  %v2254 = vpop.f32.mrb[0].mxu0
  %v2255 = vadd.f32 0.0, %v2254
  %v2256 = vpop.f32.mrb[0].mxu0
  %2257 = vdwg.mxu0
  %v2258 = vadd.f32 %v2180, %v2255
  %v2259 = vld [vmem:[%s2 + $0x148] sm:$0xff]
  %v2260 = vld [vmem:[%s2 + $0x150] sm:$0xff]
  %v2261 = vld [vmem:[%s2 + $0x158] sm:$0xff]
  %v2262 = vld [vmem:[%s2 + $0x160] sm:$0xff]
  %v2264 = vsel %vm21, %v2096, 0
  %2266 = vmatprep.subr.mxu0 0.0
  %2267 = vmatpush1.msra.mxu0 %v2259
  %2268 = vmatprep.subr.mxu0 0.0
  %2269 = vmatpush1.msra.mxu0 %v2260
  %2270 = vmatprep.subr.mxu0 0.0
  %2271 = vmatpush1.msra.mxu0 %v2261
  %2272 = vmatprep.subr.mxu0 0.0
  %2273 = vmatpush1.msra.mxu0 %v2262
  %2274 = vmatprep.subr.mxu0 0.0
  %2275 = vmatpush1.msra.mxu0 0.0
  %2276 = vmatprep.subr.mxu0 0.0
  %2277 = vmatpush1.msra.mxu0 0.0
  %2278 = vmatprep.subr.mxu0 0.0
  %2279 = vmatpush1.msra.mxu0 0.0
  %2280 = vmatprep.subr.mxu0 0.0
  %2281 = vmatpush1.msra.mxu0 0.0
  %2282 = vmatprep.subr.mxu0 0.0
  %2283 = vmatpush1.msra.mxu0 0.0
  %2284 = vmatprep.subr.mxu0 0.0
  %2285 = vmatpush1.msra.mxu0 0.0
  %2286 = vmatprep.subr.mxu0 0.0
  %2287 = vmatpush1.msra.mxu0 0.0
  %2288 = vmatprep.subr.mxu0 0.0
  %2289 = vmatpush1.msra.mxu0 0.0
  %2290 = vmatprep.subr.mxu0 0.0
  %2291 = vmatpush1.msra.mxu0 0.0
  %2292 = vmatprep.subr.mxu0 0.0
  %2293 = vmatpush1.msra.mxu0 0.0
  %2294 = vmatprep.subr.mxu0 0.0
  %2295 = vmatpush1.msra.mxu0 0.0
  %2296 = vmatprep.subr.mxu0 0.0
  %2297 = vmatpush1.msra.mxu0 0.0
  %2298 = vmatprep.subr.mxu0 0.0
  %2299 = vmatpush1.msra.mxu0 0.0
  %2300 = vmatprep.subr.mxu0 0.0
  %2301 = vmatpush1.msra.mxu0 0.0
  %2302 = vmatprep.subr.mxu0 0.0
  %2303 = vmatpush1.msra.mxu0 0.0
  %2304 = vmatprep.subr.mxu0 0.0
  %2305 = vmatpush1.msra.mxu0 0.0
  %2306 = vmatprep.subr.mxu0 0.0
  %2307 = vmatpush1.msra.mxu0 0.0
  %2308 = vmatprep.subr.mxu0 0.0
  %2309 = vmatpush1.msra.mxu0 0.0
  %2310 = vmatprep.subr.mxu0 0.0
  %2311 = vmatpush1.msra.mxu0 0.0
  %2312 = vmatprep.subr.mxu0 0.0
  %2313 = vmatpush1.msra.mxu0 0.0
  %2314 = vmatprep.subr.mxu0 0.0
  %2315 = vmatpush1.msra.mxu0 0.0
  %2316 = vmatprep.subr.mxu0 0.0
  %2317 = vmatpush1.msra.mxu0 0.0
  %2318 = vmatprep.subr.mxu0 0.0
  %2319 = vmatpush1.msra.mxu0 0.0
  %2320 = vmatprep.subr.mxu0 0.0
  %2321 = vmatpush1.msra.mxu0 0.0
  %2322 = vmatprep.subr.mxu0 0.0
  %2323 = vmatpush1.msra.mxu0 0.0
  %2324 = vmatprep.subr.mxu0 0.0
  %2325 = vmatpush1.msra.mxu0 0.0
  %2326 = vmatprep.subr.mxu0 0.0
  %2327 = vmatpush1.msra.mxu0 0.0
  %2328 = vmatprep.subr.mxu0 0.0
  %2329 = vmatpush1.msra.mxu0 0.0
  %2330 = vmatprep.mubr.f32.mxu0 0.0
  %2331 = vmatmul.mubr.f32.gmra.mrb[0].mxu0 %v2264
  %v2332 = vpop.f32.mrb[0].mxu0
  %v2333 = vadd.f32 0.0, %v2332
  %v2334 = vpop.f32.mrb[0].mxu0
  %2335 = vdwg.mxu0
  %v2336 = vadd.f32 %v2258, %v2333
  %v2337 = vld [vmem:[%s2 + $0x168] sm:$0xff]
  %v2338 = vld [vmem:[%s2 + $0x170] sm:$0xff]
  %v2339 = vld [vmem:[%s2 + $0x178] sm:$0xff]
  %v2340 = vld [vmem:[%s2 + $0x180] sm:$0xff]
  %v2342 = vsel %vm21, %v2097, 0
  %2344 = vmatprep.subr.mxu0 0.0
  %2345 = vmatpush1.msra.mxu0 %v2337
  %2346 = vmatprep.subr.mxu0 0.0
  %2347 = vmatpush1.msra.mxu0 %v2338
  %2348 = vmatprep.subr.mxu0 0.0
  %2349 = vmatpush1.msra.mxu0 %v2339
  %2350 = vmatprep.subr.mxu0 0.0
  %2351 = vmatpush1.msra.mxu0 %v2340
  %2352 = vmatprep.subr.mxu0 0.0
  %2353 = vmatpush1.msra.mxu0 0.0
  %2354 = vmatprep.subr.mxu0 0.0
  %2355 = vmatpush1.msra.mxu0 0.0
  %2356 = vmatprep.subr.mxu0 0.0
  %2357 = vmatpush1.msra.mxu0 0.0
  %2358 = vmatprep.subr.mxu0 0.0
  %2359 = vmatpush1.msra.mxu0 0.0
  %2360 = vmatprep.subr.mxu0 0.0
  %2361 = vmatpush1.msra.mxu0 0.0
  %2362 = vmatprep.subr.mxu0 0.0
  %2363 = vmatpush1.msra.mxu0 0.0
  %2364 = vmatprep.subr.mxu0 0.0
  %2365 = vmatpush1.msra.mxu0 0.0
  %2366 = vmatprep.subr.mxu0 0.0
  %2367 = vmatpush1.msra.mxu0 0.0
  %2368 = vmatprep.subr.mxu0 0.0
  %2369 = vmatpush1.msra.mxu0 0.0
  %2370 = vmatprep.subr.mxu0 0.0
  %2371 = vmatpush1.msra.mxu0 0.0
  %2372 = vmatprep.subr.mxu0 0.0
  %2373 = vmatpush1.msra.mxu0 0.0
  %2374 = vmatprep.subr.mxu0 0.0
  %2375 = vmatpush1.msra.mxu0 0.0
  %2376 = vmatprep.subr.mxu0 0.0
  %2377 = vmatpush1.msra.mxu0 0.0
  %2378 = vmatprep.subr.mxu0 0.0
  %2379 = vmatpush1.msra.mxu0 0.0
  %2380 = vmatprep.subr.mxu0 0.0
  %2381 = vmatpush1.msra.mxu0 0.0
  %2382 = vmatprep.subr.mxu0 0.0
  %2383 = vmatpush1.msra.mxu0 0.0
  %2384 = vmatprep.subr.mxu0 0.0
  %2385 = vmatpush1.msra.mxu0 0.0
  %2386 = vmatprep.subr.mxu0 0.0
  %2387 = vmatpush1.msra.mxu0 0.0
  %2388 = vmatprep.subr.mxu0 0.0
  %2389 = vmatpush1.msra.mxu0 0.0
  %2390 = vmatprep.subr.mxu0 0.0
  %2391 = vmatpush1.msra.mxu0 0.0
  %2392 = vmatprep.subr.mxu0 0.0
  %2393 = vmatpush1.msra.mxu0 0.0
  %2394 = vmatprep.subr.mxu0 0.0
  %2395 = vmatpush1.msra.mxu0 0.0
  %2396 = vmatprep.subr.mxu0 0.0
  %2397 = vmatpush1.msra.mxu0 0.0
  %2398 = vmatprep.subr.mxu0 0.0
  %2399 = vmatpush1.msra.mxu0 0.0
  %2400 = vmatprep.subr.mxu0 0.0
  %2401 = vmatpush1.msra.mxu0 0.0
  %2402 = vmatprep.subr.mxu0 0.0
  %2403 = vmatpush1.msra.mxu0 0.0
  %2404 = vmatprep.subr.mxu0 0.0
  %2405 = vmatpush1.msra.mxu0 0.0
  %2406 = vmatprep.subr.mxu0 0.0
  %2407 = vmatpush1.msra.mxu0 0.0
  %2408 = vmatprep.mubr.f32.mxu0 0.0
  %2409 = vmatmul.mubr.f32.gmra.mrb[0].mxu0 %v2342
  %v2410 = vpop.f32.mrb[0].mxu0
  %v2411 = vadd.f32 0.0, %v2410
  %v2412 = vpop.f32.mrb[0].mxu0
  %2413 = vdwg.mxu0
  %v2414 = vadd.f32 %v2336, %v2411
  %v2415 = vld [vmem:[%s2 + $0xa] sm:$0x1]
  %v2416 = vld [vmem:[%s2 + $0xb] sm:$0x1]
  %v2417 = vsel %vm21, %v2414, 0.0
  %2418 = vadd.xlane.f32.xlu0 %v2417
  %v2419 = vpop.xlane.xlu0 %2418
  %v2420 = vmul.f32 %v2419, %v37
  %v2421 = vsub.f32 %v2414, %v2420
  %v2422 = vmul.f32 %v2421, %v2421
  %v2423 = vsel %vm21, %v2422, 0.0
  %2424 = vadd.xlane.f32.xlu0 %v2423
  %v2425 = vpop.xlane.xlu0 %2424
  %v2426 = vmul.f32 %v2425, %v37
  %v2427 = vadd.f32 %v2426, 1e-05
  %v2428 = vrsqrt.pop %v2427
  %v2429 = vmul.f32 %v2421, %v2428
  %v2430 = vlaneseq
  %v2431 = vshrl.u32 %v2430, 7
  %v2432 = vsub.s32 0, %v2431
  %v2433 = vrot.slane %v2415, %v2432
  %v2434 = vmul.f32 %v2429, %v2433
  %v2435 = vlaneseq
  %v2436 = vshrl.u32 %v2435, 7
  %v2437 = vsub.s32 0, %v2436
  %v2438 = vrot.slane %v2416, %v2437
  %v2439 = vadd.f32 %v2434, %v2438
  %v2440 = vmul.f32 %v2439, 0.5
  %v2441 = vmul.f32 %v2439, 0.044715
  %v2442 = vmul.f32 %v2441, %v2439
  %v2443 = vmul.f32 %v2442, %v2439
  %v2444 = vadd.f32 %v2439, %v2443
  %v2445 = vmul.f32 %v2444, 0.7978846
  %v2446 = vtanh.pop %v2445
  %v2447 = vadd.f32 %v2446, 1.0
  %v2448 = vmul.f32 %v2440, %v2447
  %v2449 = vld [vmem:[%s2 + $0x188] sm:$0xff]
  %v2450 = vld [vmem:[%s2 + $0x190] sm:$0xff]
  %v2451 = vld [vmem:[%s2 + $0x198] sm:$0xff]
  %v2452 = vld [vmem:[%s2 + $0x1a0] sm:$0xff]
  %v2453 = vld [vmem:[%s2 + $0x1a8] sm:$0xff]
  %v2454 = vld [vmem:[%s2 + $0x1b0] sm:$0xff]
  %v2455 = vld [vmem:[%s2 + $0x1b8] sm:$0xff]
  %v2456 = vld [vmem:[%s2 + $0x1c0] sm:$0xff]
  %v2458 = vsel %vm21, %v2448, 0
  %2460 = vmatprep.subr.mxu0 0.0
  %2461 = vmatpush1.msra.mxu0 %v2453
  %2462 = vmatprep.subr.mxu0 0.0
  %2463 = vmatpush1.msra.mxu0 %v2454
  %2464 = vmatprep.subr.mxu0 0.0
  %2465 = vmatpush1.msra.mxu0 %v2455
  %2466 = vmatprep.subr.mxu0 0.0
  %2467 = vmatpush1.msra.mxu0 %v2456
  %2468 = vmatprep.subr.mxu0 0.0
  %2469 = vmatpush1.msra.mxu0 0.0
  %2470 = vmatprep.subr.mxu0 0.0
  %2471 = vmatpush1.msra.mxu0 0.0
  %2472 = vmatprep.subr.mxu0 0.0
  %2473 = vmatpush1.msra.mxu0 0.0
  %2474 = vmatprep.subr.mxu0 0.0
  %2475 = vmatpush1.msra.mxu0 0.0
  %2476 = vmatprep.subr.mxu0 0.0
  %2477 = vmatpush1.msra.mxu0 0.0
  %2478 = vmatprep.subr.mxu0 0.0
  %2479 = vmatpush1.msra.mxu0 0.0
  %2480 = vmatprep.subr.mxu0 0.0
  %2481 = vmatpush1.msra.mxu0 0.0
  %2482 = vmatprep.subr.mxu0 0.0
  %2483 = vmatpush1.msra.mxu0 0.0
  %2484 = vmatprep.subr.mxu0 0.0
  %2485 = vmatpush1.msra.mxu0 0.0
  %2486 = vmatprep.subr.mxu0 0.0
  %2487 = vmatpush1.msra.mxu0 0.0
  %2488 = vmatprep.subr.mxu0 0.0
  %2489 = vmatpush1.msra.mxu0 0.0
  %2490 = vmatprep.subr.mxu0 0.0
  %2491 = vmatpush1.msra.mxu0 0.0
  %2492 = vmatprep.subr.mxu0 0.0
  %2493 = vmatpush1.msra.mxu0 0.0
  %2494 = vmatprep.subr.mxu0 0.0
  %2495 = vmatpush1.msra.mxu0 0.0
  %2496 = vmatprep.subr.mxu0 0.0
  %2497 = vmatpush1.msra.mxu0 0.0
  %2498 = vmatprep.subr.mxu0 0.0
  %2499 = vmatpush1.msra.mxu0 0.0
  %2500 = vmatprep.subr.mxu0 0.0
  %2501 = vmatpush1.msra.mxu0 0.0
  %2502 = vmatprep.subr.mxu0 0.0
  %2503 = vmatpush1.msra.mxu0 0.0
  %2504 = vmatprep.subr.mxu0 0.0
  %2505 = vmatpush1.msra.mxu0 0.0
  %2506 = vmatprep.subr.mxu0 0.0
  %2507 = vmatpush1.msra.mxu0 0.0
  %2508 = vmatprep.subr.mxu0 0.0
  %2509 = vmatpush1.msra.mxu0 0.0
  %2510 = vmatprep.subr.mxu0 0.0
  %2511 = vmatpush1.msra.mxu0 0.0
  %2512 = vmatprep.subr.mxu0 0.0
  %2513 = vmatpush1.msra.mxu0 0.0
  %2514 = vmatprep.subr.mxu0 0.0
  %2515 = vmatpush1.msra.mxu0 0.0
  %2516 = vmatprep.subr.mxu0 0.0
  %2517 = vmatpush1.msra.mxu0 0.0
  %2518 = vmatprep.subr.mxu0 0.0
  %2519 = vmatpush1.msra.mxu0 0.0
  %2520 = vmatprep.subr.mxu0 0.0
  %2521 = vmatpush1.msra.mxu0 0.0
  %2522 = vmatprep.subr.mxu0 0.0
  %2523 = vmatpush1.msra.mxu0 0.0
  %2524 = vmatprep.mubr.f32.mxu0 0.0
  %2525 = vmatmul.mubr.f32.gmra.mrb[0].mxu0 %v2458
  %v2526 = vpop.f32.mrb[0].mxu0
  %v2527 = vadd.f32 0.0, %v2526
  %v2528 = vpop.f32.mrb[0].mxu0
  %2529 = vdwg.mxu0
  %v2531 = vsel %vm21, %v2095, 0
  %2533 = vmatprep.subr.mxu0 0.0
  %2534 = vmatpush1.msra.mxu0 %v2449
  %2535 = vmatprep.subr.mxu0 0.0
  %2536 = vmatpush1.msra.mxu0 %v2450
  %2537 = vmatprep.subr.mxu0 0.0
  %2538 = vmatpush1.msra.mxu0 %v2451
  %2539 = vmatprep.subr.mxu0 0.0
  %2540 = vmatpush1.msra.mxu0 %v2452
  %2541 = vmatprep.subr.mxu0 0.0
  %2542 = vmatpush1.msra.mxu0 0.0
  %2543 = vmatprep.subr.mxu0 0.0
  %2544 = vmatpush1.msra.mxu0 0.0
  %2545 = vmatprep.subr.mxu0 0.0
  %2546 = vmatpush1.msra.mxu0 0.0
  %2547 = vmatprep.subr.mxu0 0.0
  %2548 = vmatpush1.msra.mxu0 0.0
  %2549 = vmatprep.subr.mxu0 0.0
  %2550 = vmatpush1.msra.mxu0 0.0
  %2551 = vmatprep.subr.mxu0 0.0
  %2552 = vmatpush1.msra.mxu0 0.0
  %2553 = vmatprep.subr.mxu0 0.0
  %2554 = vmatpush1.msra.mxu0 0.0
  %2555 = vmatprep.subr.mxu0 0.0
  %2556 = vmatpush1.msra.mxu0 0.0
  %2557 = vmatprep.subr.mxu0 0.0
  %2558 = vmatpush1.msra.mxu0 0.0
  %2559 = vmatprep.subr.mxu0 0.0
  %2560 = vmatpush1.msra.mxu0 0.0
  %2561 = vmatprep.subr.mxu0 0.0
  %2562 = vmatpush1.msra.mxu0 0.0
  %2563 = vmatprep.subr.mxu0 0.0
  %2564 = vmatpush1.msra.mxu0 0.0
  %2565 = vmatprep.subr.mxu0 0.0
  %2566 = vmatpush1.msra.mxu0 0.0
  %2567 = vmatprep.subr.mxu0 0.0
  %2568 = vmatpush1.msra.mxu0 0.0
  %2569 = vmatprep.subr.mxu0 0.0
  %2570 = vmatpush1.msra.mxu0 0.0
  %2571 = vmatprep.subr.mxu0 0.0
  %2572 = vmatpush1.msra.mxu0 0.0
  %2573 = vmatprep.subr.mxu0 0.0
  %2574 = vmatpush1.msra.mxu0 0.0
  %2575 = vmatprep.subr.mxu0 0.0
  %2576 = vmatpush1.msra.mxu0 0.0
  %2577 = vmatprep.subr.mxu0 0.0
  %2578 = vmatpush1.msra.mxu0 0.0
  %2579 = vmatprep.subr.mxu0 0.0
  %2580 = vmatpush1.msra.mxu0 0.0
  %2581 = vmatprep.subr.mxu0 0.0
  %2582 = vmatpush1.msra.mxu0 0.0
  %2583 = vmatprep.subr.mxu0 0.0
  %2584 = vmatpush1.msra.mxu0 0.0
  %2585 = vmatprep.subr.mxu0 0.0
  %2586 = vmatpush1.msra.mxu0 0.0
  %2587 = vmatprep.subr.mxu0 0.0
  %2588 = vmatpush1.msra.mxu0 0.0
  %2589 = vmatprep.subr.mxu0 0.0
  %2590 = vmatpush1.msra.mxu0 0.0
  %2591 = vmatprep.subr.mxu0 0.0
  %2592 = vmatpush1.msra.mxu0 0.0
  %2593 = vmatprep.subr.mxu0 0.0
  %2594 = vmatpush1.msra.mxu0 0.0
  %2595 = vmatprep.subr.mxu0 0.0
  %2596 = vmatpush1.msra.mxu0 0.0
  %2597 = vmatprep.mubr.f32.mxu0 0.0
  %2598 = vmatmul.mubr.f32.gmra.mrb[0].mxu0 %v2531
  %v2599 = vpop.f32.mrb[0].mxu0
  %v2600 = vadd.f32 %v2527, %v2599
  %v2601 = vpop.f32.mrb[0].mxu0
  %2602 = vdwg.mxu0
  %v2603 = vld [vmem:[%s2 + $0x14] sm:$0x1]
  %v2604 = vlaneseq
  %v2605 = vshrl.u32 %v2604, 7
  %v2606 = vsub.s32 0, %v2605
  %v2607 = vrot.slane %v2603, %v2606
  %v2608 = vadd.f32 %v2600, %v2607
  %v2609 = vld [vmem:[%s2 + $0xc] sm:$0x1]
  %v2610 = vld [vmem:[%s2 + $0xd] sm:$0x1]
  %v2611 = vsel %vm21, %v2608, 0.0
  %2612 = vadd.xlane.f32.xlu0 %v2611
  %v2613 = vpop.xlane.xlu0 %2612
  %v2614 = vmul.f32 %v2613, %v37
  %v2615 = vsub.f32 %v2608, %v2614
  %v2616 = vmul.f32 %v2615, %v2615
  %v2617 = vsel %vm21, %v2616, 0.0
  %2618 = vadd.xlane.f32.xlu0 %v2617
  %v2619 = vpop.xlane.xlu0 %2618
  %v2620 = vmul.f32 %v2619, %v37
  %v2621 = vadd.f32 %v2620, 1e-05
  %v2622 = vrsqrt.pop %v2621
  %v2623 = vmul.f32 %v2615, %v2622
  %v2624 = vlaneseq
  %v2625 = vshrl.u32 %v2624, 7
  %v2626 = vsub.s32 0, %v2625
  %v2627 = vrot.slane %v2609, %v2626
  %v2628 = vmul.f32 %v2623, %v2627
  %v2629 = vlaneseq
  %v2630 = vshrl.u32 %v2629, 7
  %v2631 = vsub.s32 0, %v2630
  %v2632 = vrot.slane %v2610, %v2631
  %v2633 = vadd.f32 %v2628, %v2632
  %v2634 = vxor.u32 %v2633, 2147483648
  %v2635 = vmul.f32 %v2634, 1.442695
  %v2636 = vpow.pop %v2635
  %v2637 = vadd.f32 %v2636, 1.0
  %v2638 = vrcp.pop %v2637
  %v2639 = vmul.f32 1.0, %v2638
  %v2640 = vmul.f32 %v2633, %v2639
  %v2641 = vld [vmem:[%s2 + $0x1c8] sm:$0xff]
  %v2642 = vld [vmem:[%s2 + $0x1d0] sm:$0xff]
  %v2643 = vld [vmem:[%s2 + $0x1d8] sm:$0xff]
  %v2644 = vld [vmem:[%s2 + $0x1e0] sm:$0xff]
  %v2645 = vld [vmem:[%s2 + $0x15] sm:$0x1]
  %v2646 = vlaneseq
  %v2647 = vshrl.u32 %v2646, 7
  %v2648 = vsub.s32 0, %v2647
  %v2649 = vrot.slane %v2645, %v2648
  %v2651 = vsel %vm21, %v2640, 0
  %2653 = vmatprep.subr.mxu0 0.0
  %2654 = vmatpush1.msra.mxu0 %v2641
  %2655 = vmatprep.subr.mxu0 0.0
  %2656 = vmatpush1.msra.mxu0 %v2642
  %2657 = vmatprep.subr.mxu0 0.0
  %2658 = vmatpush1.msra.mxu0 %v2643
  %2659 = vmatprep.subr.mxu0 0.0
  %2660 = vmatpush1.msra.mxu0 %v2644
  %2661 = vmatprep.subr.mxu0 0.0
  %2662 = vmatpush1.msra.mxu0 0.0
  %2663 = vmatprep.subr.mxu0 0.0
  %2664 = vmatpush1.msra.mxu0 0.0
  %2665 = vmatprep.subr.mxu0 0.0
  %2666 = vmatpush1.msra.mxu0 0.0
  %2667 = vmatprep.subr.mxu0 0.0
  %2668 = vmatpush1.msra.mxu0 0.0
  %2669 = vmatprep.subr.mxu0 0.0
  %2670 = vmatpush1.msra.mxu0 0.0
  %2671 = vmatprep.subr.mxu0 0.0
  %2672 = vmatpush1.msra.mxu0 0.0
  %2673 = vmatprep.subr.mxu0 0.0
  %2674 = vmatpush1.msra.mxu0 0.0
  %2675 = vmatprep.subr.mxu0 0.0
  %2676 = vmatpush1.msra.mxu0 0.0
  %2677 = vmatprep.subr.mxu0 0.0
  %2678 = vmatpush1.msra.mxu0 0.0
  %2679 = vmatprep.subr.mxu0 0.0
  %2680 = vmatpush1.msra.mxu0 0.0
  %2681 = vmatprep.subr.mxu0 0.0
  %2682 = vmatpush1.msra.mxu0 0.0
  %2683 = vmatprep.subr.mxu0 0.0
  %2684 = vmatpush1.msra.mxu0 0.0
  %2685 = vmatprep.subr.mxu0 0.0
  %2686 = vmatpush1.msra.mxu0 0.0
  %2687 = vmatprep.subr.mxu0 0.0
  %2688 = vmatpush1.msra.mxu0 0.0
  %2689 = vmatprep.subr.mxu0 0.0
  %2690 = vmatpush1.msra.mxu0 0.0
  %2691 = vmatprep.subr.mxu0 0.0
  %2692 = vmatpush1.msra.mxu0 0.0
  %2693 = vmatprep.subr.mxu0 0.0
  %2694 = vmatpush1.msra.mxu0 0.0
  %2695 = vmatprep.subr.mxu0 0.0
  %2696 = vmatpush1.msra.mxu0 0.0
  %2697 = vmatprep.subr.mxu0 0.0
  %2698 = vmatpush1.msra.mxu0 0.0
  %2699 = vmatprep.subr.mxu0 0.0
  %2700 = vmatpush1.msra.mxu0 0.0
  %2701 = vmatprep.subr.mxu0 0.0
  %2702 = vmatpush1.msra.mxu0 0.0
  %2703 = vmatprep.subr.mxu0 0.0
  %2704 = vmatpush1.msra.mxu0 0.0
  %2705 = vmatprep.subr.mxu0 0.0
  %2706 = vmatpush1.msra.mxu0 0.0
  %2707 = vmatprep.subr.mxu0 0.0
  %2708 = vmatpush1.msra.mxu0 0.0
  %2709 = vmatprep.subr.mxu0 0.0
  %2710 = vmatpush1.msra.mxu0 0.0
  %2711 = vmatprep.subr.mxu0 0.0
  %2712 = vmatpush1.msra.mxu0 0.0
  %2713 = vmatprep.subr.mxu0 0.0
  %2714 = vmatpush1.msra.mxu0 0.0
  %2715 = vmatprep.subr.mxu0 0.0
  %2716 = vmatpush1.msra.mxu0 0.0
  %2717 = vmatprep.mubr.f32.mxu0 0.0
  %2718 = vmatmul.mubr.f32.gmra.mrb[0].mxu0 %v2651
  %v2719 = vpop.f32.mrb[0].mxu0
  %v2720 = vadd.f32 %v2649, %v2719
  %v2721 = vpop.f32.mrb[0].mxu0
  %2722 = vdwg.mxu0
  %v2723 = vld [vmem:[%s2 + $0xe] sm:$0x1]
  %v2724 = vld [vmem:[%s2 + $0xf] sm:$0x1]
  %vm2725 = vcmask 130048
  %v2726 = vsel %vm2725, %v2720, 0.0
  %2727 = vadd.xlane.f32.xlu0 %v2726
  %v2728 = vpop.xlane.xlu0 %2727
  %v2729 = vrcp.pop 16.0
  %v2730 = vmul.f32 %v2728, %v2729
  %v2731 = vsub.f32 %v2720, %v2730
  %v2732 = vmul.f32 %v2731, %v2731
  %v2733 = vsel %vm2725, %v2732, 0.0
  %2734 = vadd.xlane.f32.xlu0 %v2733
  %v2735 = vpop.xlane.xlu0 %2734
  %v2736 = vmul.f32 %v2735, %v2729
  %v2737 = vadd.f32 %v2736, 1e-05
  %v2738 = vrsqrt.pop %v2737
  %v2739 = vmul.f32 %v2731, %v2738
  %v2740 = vlaneseq
  %v2741 = vshrl.u32 %v2740, 7
  %v2742 = vsub.s32 0, %v2741
  %v2743 = vrot.slane %v2723, %v2742
  %v2744 = vmul.f32 %v2739, %v2743
  %v2745 = vlaneseq
  %v2746 = vshrl.u32 %v2745, 7
  %v2747 = vsub.s32 0, %v2746
  %v2748 = vrot.slane %v2724, %v2747
  %v2749 = vadd.f32 %v2744, %v2748
  %v2750 = vxor.u32 %v2749, 2147483648
  %v2751 = vmul.f32 %v2750, 1.442695
  %v2752 = vpow.pop %v2751
  %v2753 = vadd.f32 %v2752, 1.0
  %v2754 = vrcp.pop %v2753
  %v2755 = vmul.f32 1.0, %v2754
  %v2756 = vmul.f32 %v2749, %v2755
  %v2757 = vld [vmem:[%s2 + $0x1e8] sm:$0xff]
  %v2758 = vld [vmem:[%s2 + $0x1f0] sm:$0xff]
  %v2759 = vld [vmem:[%s2 + $0x16] sm:$0x1]
  %v2760 = vlaneseq
  %v2761 = vshrl.u32 %v2760, 7
  %v2762 = vsub.s32 0, %v2761
  %v2763 = vrot.slane %v2759, %v2762
  %v2765 = vsel %vm2725, %v2756, 0
  %2767 = vmatprep.subr.mxu0 0.0
  %2768 = vmatpush1.msra.mxu0 %v2757
  %2769 = vmatprep.subr.mxu0 0.0
  %2770 = vmatpush1.msra.mxu0 %v2758
  %2771 = vmatprep.subr.mxu0 0.0
  %2772 = vmatpush1.msra.mxu0 0.0
  %2773 = vmatprep.subr.mxu0 0.0
  %2774 = vmatpush1.msra.mxu0 0.0
  %2775 = vmatprep.subr.mxu0 0.0
  %2776 = vmatpush1.msra.mxu0 0.0
  %2777 = vmatprep.subr.mxu0 0.0
  %2778 = vmatpush1.msra.mxu0 0.0
  %2779 = vmatprep.subr.mxu0 0.0
  %2780 = vmatpush1.msra.mxu0 0.0
  %2781 = vmatprep.subr.mxu0 0.0
  %2782 = vmatpush1.msra.mxu0 0.0
  %2783 = vmatprep.subr.mxu0 0.0
  %2784 = vmatpush1.msra.mxu0 0.0
  %2785 = vmatprep.subr.mxu0 0.0
  %2786 = vmatpush1.msra.mxu0 0.0
  %2787 = vmatprep.subr.mxu0 0.0
  %2788 = vmatpush1.msra.mxu0 0.0
  %2789 = vmatprep.subr.mxu0 0.0
  %2790 = vmatpush1.msra.mxu0 0.0
  %2791 = vmatprep.subr.mxu0 0.0
  %2792 = vmatpush1.msra.mxu0 0.0
  %2793 = vmatprep.subr.mxu0 0.0
  %2794 = vmatpush1.msra.mxu0 0.0
  %2795 = vmatprep.subr.mxu0 0.0
  %2796 = vmatpush1.msra.mxu0 0.0
  %2797 = vmatprep.subr.mxu0 0.0
  %2798 = vmatpush1.msra.mxu0 0.0
  %2799 = vmatprep.subr.mxu0 0.0
  %2800 = vmatpush1.msra.mxu0 0.0
  %2801 = vmatprep.subr.mxu0 0.0
  %2802 = vmatpush1.msra.mxu0 0.0
  %2803 = vmatprep.subr.mxu0 0.0
  %2804 = vmatpush1.msra.mxu0 0.0
  %2805 = vmatprep.subr.mxu0 0.0
  %2806 = vmatpush1.msra.mxu0 0.0
  %2807 = vmatprep.subr.mxu0 0.0
  %2808 = vmatpush1.msra.mxu0 0.0
  %2809 = vmatprep.subr.mxu0 0.0
  %2810 = vmatpush1.msra.mxu0 0.0
  %2811 = vmatprep.subr.mxu0 0.0
  %2812 = vmatpush1.msra.mxu0 0.0
  %2813 = vmatprep.subr.mxu0 0.0
  %2814 = vmatpush1.msra.mxu0 0.0
  %2815 = vmatprep.subr.mxu0 0.0
  %2816 = vmatpush1.msra.mxu0 0.0
  %2817 = vmatprep.subr.mxu0 0.0
  %2818 = vmatpush1.msra.mxu0 0.0
  %2819 = vmatprep.subr.mxu0 0.0
  %2820 = vmatpush1.msra.mxu0 0.0
  %2821 = vmatprep.subr.mxu0 0.0
  %2822 = vmatpush1.msra.mxu0 0.0
  %2823 = vmatprep.subr.mxu0 0.0
  %2824 = vmatpush1.msra.mxu0 0.0
  %2825 = vmatprep.subr.mxu0 0.0
  %2826 = vmatpush1.msra.mxu0 0.0
  %2827 = vmatprep.subr.mxu0 0.0
  %2828 = vmatpush1.msra.mxu0 0.0
  %2829 = vmatprep.subr.mxu0 0.0
  %2830 = vmatpush1.msra.mxu0 0.0
  %2831 = vmatprep.mubr.f32.mxu0 0.0
  %2832 = vmatmul.mubr.f32.gmra.mrb[0].mxu0 %v2765
  %v2833 = vpop.f32.mrb[0].mxu0
  %v2834 = vadd.f32 %v2763, %v2833
  %v2835 = vpop.f32.mrb[0].mxu0
  %2836 = vdwg.mxu0
  %2837 = vst [vmem:[%s3] sm:$0xff] %v2834
  %v2838 = vlaneseq
  %v2839 = vand.u32 %v2838, 127
  %vm2840 = vcmp.lt.s32.totalorder %v2839, 2
  %v2841 = vsel %vm2840, %v2834, -inf
  %2842 = vmax.xlane.f32.xlu0 %v2841
  %v2843 = vpop.xlane.xlu0 %2842
  %v2844 = vsub.f32 %v2841, %v2843
  %v2845 = vmul.f32 %v2844, 1.442695
  %v2846 = vpow.pop %v2845
  %2847 = vadd.xlane.f32.xlu0 %v2846
  %v2848 = vpop.xlane.xlu0 %2847
  %v2849 = vrcp.pop %v2848
  %v2850 = vmul.f32 %v2846, %v2849
  %2851 = vst [vmem:[%s3 + $0x8] sm:$0xff] %v2850
  // Predicated region
  $region14: #{two_stream_forward.1} parent=0 // pred_check
    _
  $region15: #{two_stream_forward.1} parent=0 // pred_check_branch
    %2853 = sbr.rel (0) target = $region17
  $region16: #{two_stream_forward.1} parent=0 // pred_region
    _
  $region17: #{two_stream_forward.1} parent=0 // pred_fallthru
    _
  // Predicated region
  $region18: #{two_stream_forward.1} parent=0 // pred_check
    _
  $region19: #{two_stream_forward.1} parent=0 // pred_check_branch
    %2855 = sbr.rel (0) target = $region21
  $region20: #{two_stream_forward.1} parent=0 // pred_region
    _
  $region21: #{two_stream_forward.1} parent=0 // pred_fallthru
    _

</llo_original>
